<compile_context>
chip_gen: v7x
topology: tpu7x:2x2x1
jax: 0.10.0
libtpu: 0.0.40
codegen_flags: <defaults>
</compile_context>

<pallas_src>
import functools
import math

import jax
import jax.numpy as jnp
from jax.experimental import pallas as pl
from jax.experimental.pallas import tpu as pltpu


def _encoder_layer_kernel(x_ref, wqkv_ref, bqkv_ref, wout_ref, bout_ref,
                          n1w_ref, n1b_ref, w1_ref, b1_ref, w2_ref, b2_ref,
                          n2w_ref, n2b_ref, o_ref, xs_ref, *, nhead, mm_dtype):
    blk_b, S, D = x_ref.shape
    hd = D // nhead
    M = blk_b * S
    eps = 1e-5
    l = pl.program_id(1)

    # Layer 0: pull this batch block into the f32 VMEM activation scratch; it stays
    # resident there across the whole "arbitrary" layer axis (no HBM round trips).
    @pl.when(l == 0)
    def _():
        xs_ref[...] = x_ref[...].reshape(M, D).astype(jnp.float32)

    x = xs_ref[...]                                            # (M, D) f32

    # --------------------------- self-attention --------------------------------
    # QKV: one (M, D) @ (D, 3D) matmul. The softmax 1/sqrt(hd) scale is pre-folded
    # into the Q columns of wqkv / bqkv at parameter-prep time.
    qkv = jnp.dot(x.astype(mm_dtype), wqkv_ref[0],
                  preferred_element_type=jnp.float32) + bqkv_ref[0]        # (M, 3D)

    # Single relayout to head-major; q/k/v become cheap leading-dim slices
    # (replaces 3*nhead 16-lane slices + concats).
    qkv_h = jnp.transpose(qkv.reshape(blk_b, S, 3 * nhead, hd), (0, 2, 1, 3))
    q = qkv_h[:, 0 * nhead:1 * nhead].reshape(blk_b * nhead, S, hd)
    k = qkv_h[:, 1 * nhead:2 * nhead].reshape(blk_b * nhead, S, hd)
    v = qkv_h[:, 2 * nhead:3 * nhead].reshape(blk_b * nhead, S, hd)

    s = jnp.einsum('bqd,bkd->bqk', q.astype(mm_dtype), k.astype(mm_dtype),
                   preferred_element_type=jnp.float32)         # (blk_b*nhead, S, S)
    m = jnp.max(s, axis=-1, keepdims=True)                     # softmax in f32
    p = jnp.exp(s - m)
    p = p * pl.reciprocal(jnp.sum(p, axis=-1, keepdims=True), approx=True)
    pv = jnp.einsum('bqk,bkd->bqd', p.astype(mm_dtype), v.astype(mm_dtype),
                    preferred_element_type=jnp.float32)        # (blk_b*nhead, S, hd)

    # Reassemble heads once, then ONE lane-dense K=128 output projection.
    attn_cat = jnp.transpose(pv.reshape(blk_b, nhead, S, hd),
                             (0, 2, 1, 3)).reshape(M, D)
    attn = jnp.dot(attn_cat.astype(mm_dtype), wout_ref[0],
                   preferred_element_type=jnp.float32) + bout_ref[0]

    # -------------- residual + LayerNorm1 (post-norm; eval: dropout == id) -----
    x1 = x + attn
    mu1 = jnp.mean(x1, axis=-1, keepdims=True)
    var1 = jnp.mean(x1 * x1, axis=-1, keepdims=True) - mu1 * mu1   # one-pass stats
    x1 = (x1 - mu1) * jax.lax.rsqrt(var1 + eps) * n1w_ref[0] + n1b_ref[0]

    # -------------------- FFN (ReLU) + residual + LayerNorm2 -------------------
    h1 = jnp.maximum(
        jnp.dot(x1.astype(mm_dtype), w1_ref[0],
                preferred_element_type=jnp.float32) + b1_ref[0], 0.0)
    y = jnp.dot(h1.astype(mm_dtype), w2_ref[0],
                preferred_element_type=jnp.float32) + b2_ref[0]
    x2 = x1 + y
    mu2 = jnp.mean(x2, axis=-1, keepdims=True)
    var2 = jnp.mean(x2 * x2, axis=-1, keepdims=True) - mu2 * mu2
    x_out = (x2 - mu2) * jax.lax.rsqrt(var2 + eps) * n2w_ref[0] + n2b_ref[0]

    xs_ref[...] = x_out                                        # carry to next layer

    # Final layer: the module only consumes the CLS row -> write just that row.
    @pl.when(l == pl.num_programs(1) - 1)
    def _():
        o_ref[...] = x_out.reshape(blk_b, S, D)[:, 0:1, :].astype(o_ref.dtype)


def _pick_block_b(B, S, target_rows=1024):
    """Largest divisor of B with block_b*S <= target_rows, preferring >=2 grid blocks
    so the 'parallel' batch axis can feed both v7x TensorCores."""
    divs = [d for d in range(1, B + 1) if B % d == 0 and d * S <= max(target_rows, S)]
    multi = [d for d in divs if B // d >= 2]
    return max(multi) if multi else max(divs)


def _vmem_limit_bytes(weights, block_b, S, D, dff):
    # Streamed-weight footprint: ~2 layers of weights (double buffer) + activations.
    layer_w = sum((int(a.size) // int(a.shape[0])) * a.dtype.itemsize for a in weights)
    M = block_b * S
    x_blk = block_b * S * D * 4
    act = M * max(3 * D, dff) * 4
    est = 2 * layer_w + 2 * x_blk + 10 * act + (4 << 20)       # slack for intermediates
    try:
        cap_hw = int(pltpu.get_tpu_info().vmem_capacity_bytes)
    except Exception:                                          # conservative fallback
        cap_hw = 64 << 20
    cap = min(cap_hw - (16 << 20), 100 << 20)                  # leave compiler headroom
    return int(min(max(est, 32 << 20), max(cap, 32 << 20)))


def _encoder_stack(x, p, nhead, num_layers, block_b, mm_dtype):
    B, S, D = x.shape
    dff = p['w1_t'].shape[-1]
    names = ('wqkv_t', 'bqkv', 'wout_t', 'bout', 'n1w', 'n1b',
             'w1_t', 'b1', 'w2_t', 'b2', 'n2w', 'n2b')
    weights = [p[k] for k in names]

    def layer_spec(a):
        # Stream one layer's block per grid step along the layer axis (auto prefetch).
        nd = a.ndim
        return pl.BlockSpec((1,) + a.shape[1:],
                            lambda b, l, _n=nd: (l,) + (0,) * (_n - 1))

    kernel = functools.partial(_encoder_layer_kernel, nhead=nhead, mm_dtype=mm_dtype)
    out = pl.pallas_call(
        kernel,
        out_shape=jax.ShapeDtypeStruct((B, 1, D), jnp.float32),
        grid=(B // block_b, num_layers),
        in_specs=[pl.BlockSpec((block_b, S, D), lambda b, l: (b, 0, 0))]
                 + [layer_spec(w) for w in weights],
        out_specs=pl.BlockSpec((block_b, 1, D), lambda b, l: (b, 0, 0)),
        scratch_shapes=[pltpu.VMEM((block_b * S, D), jnp.float32)],
        compiler_params=pltpu.CompilerParams(
            dimension_semantics=("parallel", "arbitrary"),
            vmem_limit_bytes=_vmem_limit_bytes(weights, block_b, S, D, dff)),
    )(x, *weights)
    return out[:, 0, :]


def transformer_encoder_block(x, params, nhead, auto_add_cls=True):
    """Pallas equivalent of TransformerEncoderBlock.forward (eval mode)."""
    if auto_add_cls:
        # TODO(synk): prepending the zero CLS row in-kernel would need an unaligned
        # sublane concat; the single XLA copy here is tiny (B x (L+1) x D).
        cls = jnp.zeros((x.shape[0], 1, x.shape[2]), x.dtype)
        x = jnp.concatenate([cls, x], axis=1)
    S = x.shape[1]
    num_layers = params['wqkv_t'].shape[0]
    block_b = _pick_block_b(x.shape[0], S)
    return _encoder_stack(x, params, nhead, num_layers, block_b,
                          mm_dtype=params['wqkv_t'].dtype)


def init_params(key, d_model, nhead, dim_feedforward, num_layers,
                mm_dtype=jnp.bfloat16):
    hd = d_model // nhead
    scale = 1.0 / math.sqrt(hd)
    names = ('wqkv_t', 'bqkv', 'wout_t', 'bout', 'n1w', 'n1b',
             'w1_t', 'b1', 'w2_t', 'b2', 'n2w', 'n2b')
    per_layer = {k: [] for k in names}
    # fold the softmax 1/sqrt(hd) into the Q projection (weights AND bias)
    q_scale = jnp.concatenate([jnp.full((d_model,), scale, jnp.float32),
                               jnp.ones((2 * d_model,), jnp.float32)])
    for l in range(num_layers):
        ks = jax.random.split(jax.random.fold_in(key, l), 8)
        wqkv = jax.random.normal(ks[0], (3 * d_model, d_model), jnp.float32) * 0.02
        bqkv = jax.random.normal(ks[1], (3 * d_model,), jnp.float32) * 0.02
        wout = jax.random.normal(ks[2], (d_model, d_model), jnp.float32) * 0.02
        bout = jax.random.normal(ks[3], (d_model,), jnp.float32) * 0.02
        w1 = jax.random.normal(ks[4], (dim_feedforward, d_model), jnp.float32) * 0.02
        b1 = jax.random.normal(ks[5], (dim_feedforward,), jnp.float32) * 0.02
        w2 = jax.random.normal(ks[6], (d_model, dim_feedforward), jnp.float32) * 0.02
        b2 = jax.random.normal(ks[7], (d_model,), jnp.float32) * 0.02
        wqkv = wqkv * q_scale[:, None]
        bqkv = bqkv * q_scale
        # pre-transpose PyTorch (out, in) linear weights -> (in, out); matmul weights
        # stored in bf16 for native MXU throughput (f32 accumulation in-kernel).
        per_layer['wqkv_t'].append(wqkv.T.astype(mm_dtype))
        per_layer['bqkv'].append(bqkv.reshape(1, -1))
        per_layer['wout_t'].append(wout.T.astype(mm_dtype))
        per_layer['bout'].append(bout.reshape(1, -1))
        per_layer['n1w'].append(jnp.ones((1, d_model), jnp.float32))
        per_layer['n1b'].append(jnp.zeros((1, d_model), jnp.float32))
        per_layer['w1_t'].append(w1.T.astype(mm_dtype))
        per_layer['b1'].append(b1.reshape(1, -1))
        per_layer['w2_t'].append(w2.T.astype(mm_dtype))
        per_layer['b2'].append(b2.reshape(1, -1))
        per_layer['n2w'].append(jnp.ones((1, d_model), jnp.float32))
        per_layer['n2b'].append(jnp.zeros((1, d_model), jnp.float32))
    return {k: jnp.stack(v, axis=0) for k, v in per_layer.items()}


def _ref_forward(x_cls, p, nhead):
    """Pure-JAX f32 reference (eval-mode post-norm TransformerEncoder) for tolerance check."""
    xf = x_cls.astype(jnp.float32)
    num_layers, D, _ = p['wqkv_t'].shape
    B, S, _ = xf.shape
    hd = D // nhead
    eps = 1e-5

    def ln(z, w, b):
        mu = jnp.mean(z, -1, keepdims=True)
        var = jnp.mean((z - mu) ** 2, -1, keepdims=True)
        return (z - mu) / jnp.sqrt(var + eps) * w + b

    for l in range(num_layers):
        qkv = xf @ p['wqkv_t'][l].astype(jnp.float32) + p['bqkv'][l]
        q, k, v = jnp.split(qkv, 3, axis=-1)
        hsplit = lambda t: t.reshape(B, S, nhead, hd).transpose(0, 2, 1, 3)
        q, k, v = hsplit(q), hsplit(k), hsplit(v)
        s = jnp.einsum('bhqd,bhkd->bhqk', q, k)          # scale already folded into Q
        pr = jax.nn.softmax(s, axis=-1)
        ctx = jnp.einsum('bhqk,bhkd->bhqd', pr, v).transpose(0, 2, 1, 3).reshape(B, S, D)
        attn = ctx @ p['wout_t'][l].astype(jnp.float32) + p['bout'][l]
        xf = ln(xf + attn, p['n1w'][l], p['n1b'][l])
        h = jax.nn.relu(xf @ p['w1_t'][l].astype(jnp.float32) + p['b1'][l])
        y = h @ p['w2_t'][l].astype(jnp.float32) + p['b2'][l]
        xf = ln(xf + y, p['n2w'][l], p['n2b'][l])
    return xf[:, 0, :]


if __name__ == "__main__":
    # small shapes consistent with the module (d_model divisible by nhead)
    d_model, nhead, dim_feedforward, num_layers = 128, 8, 256, 2
    B, L = 2, 7                                   # seq becomes 8 after CLS prepend

    key = jax.random.PRNGKey(0)
    kx, kp = jax.random.split(key)
    x = jax.random.normal(kx, (B, L, d_model), jnp.float32)
    params = init_params(kp, d_model, nhead, dim_feedforward, num_layers)

    fwd = jax.jit(functools.partial(transformer_encoder_block, nhead=nhead))
    out = jax.block_until_ready(fwd(x, params))
    assert out.shape == (B, d_model)
    assert bool(jnp.all(jnp.isfinite(out)))

    # Tolerance check vs f32 reference (kernel uses bf16 matmul operands + approx
    # reciprocal in softmax -> expect ~1e-2-level deviations, well inside 0.15).
    x_cls = jnp.concatenate([jnp.zeros((B, 1, d_model), x.dtype), x], axis=1)
    ref = _ref_forward(x_cls, params, nhead)
    err = float(jnp.max(jnp.abs(out - ref)))
    assert err < 0.15, f"max abs diff vs reference too large: {err}"

    print("KERNEL_OK")
</pallas_src>

<mosaic_0001>
module attributes {stable_mosaic.version = 11 : i64} {
  func.func @_encoder_layer_kernel(%arg0: i32, %arg1: i32, %arg2: memref<1x8x128xf32, #tpu.memory_space<vmem>>, %arg3: memref<1x128x384xbf16, #tpu.memory_space<vmem>>, %arg4: memref<1x1x384xf32, #tpu.memory_space<vmem>>, %arg5: memref<1x128x128xbf16, #tpu.memory_space<vmem>>, %arg6: memref<1x1x128xf32, #tpu.memory_space<vmem>>, %arg7: memref<1x1x128xf32, #tpu.memory_space<vmem>>, %arg8: memref<1x1x128xf32, #tpu.memory_space<vmem>>, %arg9: memref<1x128x256xbf16, #tpu.memory_space<vmem>>, %arg10: memref<1x1x256xf32, #tpu.memory_space<vmem>>, %arg11: memref<1x256x128xbf16, #tpu.memory_space<vmem>>, %arg12: memref<1x1x128xf32, #tpu.memory_space<vmem>>, %arg13: memref<1x1x128xf32, #tpu.memory_space<vmem>>, %arg14: memref<1x1x128xf32, #tpu.memory_space<vmem>>, %arg15: memref<1x1x128xf32, #tpu.memory_space<vmem>>, %arg16: memref<8x128xf32, #tpu.memory_space<vmem>>) attributes {dimension_semantics = [#tpu.dimension_semantics<parallel>, #tpu.dimension_semantics<arbitrary>], iteration_bounds = array<i64: 2, 2>, scalar_prefetch = 0 : i64, scratch_operands = 1 : i64, tpu.core_type = #tpu.core_type<tc>, window_params = [{transform_indices = @transform_0, window_bounds = array<i64: 1, 8, 128>}, {transform_indices = @transform_1, window_bounds = array<i64: 1, 128, 384>}, {transform_indices = @transform_2, window_bounds = array<i64: 1, 1, 384>}, {transform_indices = @transform_3, window_bounds = array<i64: 1, 128, 128>}, {transform_indices = @transform_4, window_bounds = array<i64: 1, 1, 128>}, {transform_indices = @transform_5, window_bounds = array<i64: 1, 1, 128>}, {transform_indices = @transform_6, window_bounds = array<i64: 1, 1, 128>}, {transform_indices = @transform_7, window_bounds = array<i64: 1, 128, 256>}, {transform_indices = @transform_8, window_bounds = array<i64: 1, 1, 256>}, {transform_indices = @transform_9, window_bounds = array<i64: 1, 256, 128>}, {transform_indices = @transform_10, window_bounds = array<i64: 1, 1, 128>}, {transform_indices = @transform_11, window_bounds = array<i64: 1, 1, 128>}, {transform_indices = @transform_12, window_bounds = array<i64: 1, 1, 128>}, {transform_indices = @transform_13, window_bounds = array<i64: 1, 1, 128>}]} {
    %c0_i32 = arith.constant 0 : i32
    %0 = arith.cmpi eq, %arg1, %c0_i32 : i32
    %1 = arith.extui %0 : i1 to i32
    %c0_i32_0 = arith.constant 0 : i32
    %2 = arith.cmpi ne, %1, %c0_i32_0 : i32
    scf.if %2 {
      %c0_59 = arith.constant 0 : index
      %c0_60 = arith.constant 0 : index
      %c0_61 = arith.constant 0 : index
      %123 = vector.load %arg2[%c0_59, %c0_60, %c0_61] : memref<1x8x128xf32, #tpu.memory_space<vmem>>, vector<1x8x128xf32>
      %124 = vector.shape_cast %123 : vector<1x8x128xf32> to vector<8x128xf32>
      %c0_62 = arith.constant 0 : index
      %c0_63 = arith.constant 0 : index
      %125 = vector.load %arg16[%c0_62, %c0_63] : memref<8x128xf32, #tpu.memory_space<vmem>>, vector<8x128xf32>
      tpu.vector_store %arg16[%c0_62, %c0_63], %124 {strides = array<i32>} : memref<8x128xf32, #tpu.memory_space<vmem>>, vector<8x128xf32>,
    } else {
    }
    %c0 = arith.constant 0 : index
    %c0_1 = arith.constant 0 : index
    %3 = vector.load %arg16[%c0, %c0_1] : memref<8x128xf32, #tpu.memory_space<vmem>>, vector<8x128xf32>
    %4 = arith.truncf %3 : vector<8x128xf32> to vector<8x128xbf16>
    %c0_2 = arith.constant 0 : index
    %c0_3 = arith.constant 0 : index
    %c0_4 = arith.constant 0 : index
    %5 = vector.load %arg3[%c0_2, %c0_3, %c0_4] : memref<1x128x384xbf16, #tpu.memory_space<vmem>>, vector<1x128x384xbf16>
    %6 = vector.shape_cast %5 : vector<1x128x384xbf16> to vector<128x384xbf16>
    %cst = arith.constant dense<0.000000e+00> : vector<8x384xf32>
    %7 = tpu.matmul %4, %6, %cst {dimension_numbers = #tpu.dot_dimension_numbers<[1], [0], [0], [1], [0, 0, 1, 1], [], []>} : vector<8x128xbf16>, vector<128x384xbf16>, vector<8x384xf32> -> vector<8x384xf32>
    %c0_5 = arith.constant 0 : index
    %c0_6 = arith.constant 0 : index
    %c0_7 = arith.constant 0 : index
    %8 = vector.load %arg4[%c0_5, %c0_6, %c0_7] : memref<1x1x384xf32, #tpu.memory_space<vmem>>, vector<1x1x384xf32>
    %9 = vector.shape_cast %8 : vector<1x1x384xf32> to vector<1x384xf32>
    %10 = vector.broadcast %9 : vector<1x384xf32> to vector<8x384xf32>
    %11 = arith.addf %7, %10 : vector<8x384xf32>
    %12 = vector.shape_cast %11 : vector<8x384xf32> to vector<1x8x24x16xf32>
    %13 = tpu.transpose %12, [0, 2, 1, 3] : vector<1x8x24x16xf32> -> vector<1x24x8x16xf32>
    %14 = vector.extract_strided_slice %13 {offsets = [0, 0, 0, 0], sizes = [1, 8, 8, 16], strides = [1, 1, 1, 1]} : vector<1x24x8x16xf32> to vector<1x8x8x16xf32>
    %15 = vector.shape_cast %14 : vector<1x8x8x16xf32> to vector<8x8x16xf32>
    %16 = vector.extract_strided_slice %13 {offsets = [0, 8, 0, 0], sizes = [1, 8, 8, 16], strides = [1, 1, 1, 1]} : vector<1x24x8x16xf32> to vector<1x8x8x16xf32>
    %17 = vector.shape_cast %16 : vector<1x8x8x16xf32> to vector<8x8x16xf32>
    %18 = vector.extract_strided_slice %13 {offsets = [0, 16, 0, 0], sizes = [1, 8, 8, 16], strides = [1, 1, 1, 1]} : vector<1x24x8x16xf32> to vector<1x8x8x16xf32>
    %19 = vector.shape_cast %18 : vector<1x8x8x16xf32> to vector<8x8x16xf32>
    %20 = arith.truncf %15 : vector<8x8x16xf32> to vector<8x8x16xbf16>
    %21 = arith.truncf %17 : vector<8x8x16xf32> to vector<8x8x16xbf16>
    "tpu.trace_start"() <{level = 10 : i32, message = "bqd,bkd->bqk"}> : () -> ()
    %cst_8 = arith.constant dense<0.000000e+00> : vector<8x8x8xf32>
    %22 = tpu.matmul %20, %21, %cst_8 {dimension_numbers = #tpu.dot_dimension_numbers<[2], [2], [1], [1], [0, 0, 0, 1, 1, 1], [0], [0]>} : vector<8x8x16xbf16>, vector<8x8x16xbf16>, vector<8x8x8xf32> -> vector<8x8x8xf32>
    "tpu.trace_stop"() : () -> ()
    %cst_9 = arith.constant dense<0xFF800000> : vector<8x8xf32>
    %23 = vector.multi_reduction <maximumf>, %22, %cst_9 [2] : vector<8x8x8xf32> to vector<8x8xf32>
    %24 = vector.shape_cast %23 : vector<8x8xf32> to vector<8x8x1xf32>
    %25 = vector.broadcast %24 : vector<8x8x1xf32> to vector<8x8x8xf32>
    %26 = arith.subf %22, %25 : vector<8x8x8xf32>
    %27 = math.exp %26 : vector<8x8x8xf32>
    %cst_10 = arith.constant dense<0.000000e+00> : vector<8x8xf32>
    %28 = vector.multi_reduction <add>, %27, %cst_10 [2] : vector<8x8x8xf32> to vector<8x8xf32>
    %29 = vector.shape_cast %28 : vector<8x8xf32> to vector<8x8x1xf32>
    %30 = tpu.reciprocal %29 {approx = true} : vector<8x8x1xf32> -> vector<8x8x1xf32>
    %31 = vector.broadcast %30 : vector<8x8x1xf32> to vector<8x8x8xf32>
    %32 = arith.mulf %27, %31 : vector<8x8x8xf32>
    %33 = arith.truncf %32 : vector<8x8x8xf32> to vector<8x8x8xbf16>
    %34 = arith.truncf %19 : vector<8x8x16xf32> to vector<8x8x16xbf16>
    "tpu.trace_start"() <{level = 10 : i32, message = "bqk,bkd->bqd"}> : () -> ()
    %cst_11 = arith.constant dense<0.000000e+00> : vector<8x8x16xf32>
    %35 = tpu.matmul %33, %34, %cst_11 {dimension_numbers = #tpu.dot_dimension_numbers<[2], [1], [1], [2], [0, 0, 0, 1, 1, 2], [0], [0]>} : vector<8x8x8xbf16>, vector<8x8x16xbf16>, vector<8x8x16xf32> -> vector<8x8x16xf32>
    "tpu.trace_stop"() : () -> ()
    %36 = vector.shape_cast %35 : vector<8x8x16xf32> to vector<1x8x8x16xf32>
    %37 = tpu.transpose %36, [0, 2, 1, 3] : vector<1x8x8x16xf32> -> vector<1x8x8x16xf32>
    %38 = vector.shape_cast %37 : vector<1x8x8x16xf32> to vector<8x128xf32>
    %39 = arith.truncf %38 : vector<8x128xf32> to vector<8x128xbf16>
    %c0_12 = arith.constant 0 : index
    %c0_13 = arith.constant 0 : index
    %c0_14 = arith.constant 0 : index
    %40 = vector.load %arg5[%c0_12, %c0_13, %c0_14] : memref<1x128x128xbf16, #tpu.memory_space<vmem>>, vector<1x128x128xbf16>
    %41 = vector.shape_cast %40 : vector<1x128x128xbf16> to vector<128x128xbf16>
    %cst_15 = arith.constant dense<0.000000e+00> : vector<8x128xf32>
    %42 = tpu.matmul %39, %41, %cst_15 {dimension_numbers = #tpu.dot_dimension_numbers<[1], [0], [0], [1], [0, 0, 1, 1], [], []>} : vector<8x128xbf16>, vector<128x128xbf16>, vector<8x128xf32> -> vector<8x128xf32>
    %c0_16 = arith.constant 0 : index
    %c0_17 = arith.constant 0 : index
    %c0_18 = arith.constant 0 : index
    %43 = vector.load %arg6[%c0_16, %c0_17, %c0_18] : memref<1x1x128xf32, #tpu.memory_space<vmem>>, vector<1x1x128xf32>
    %44 = vector.shape_cast %43 : vector<1x1x128xf32> to vector<1x128xf32>
    %45 = vector.broadcast %44 : vector<1x128xf32> to vector<8x128xf32>
    %46 = arith.addf %42, %45 : vector<8x128xf32>
    %47 = arith.addf %3, %46 : vector<8x128xf32>
    %cst_19 = arith.constant dense<0.000000e+00> : vector<8xf32>
    %48 = vector.multi_reduction <add>, %47, %cst_19 [1] : vector<8x128xf32> to vector<8xf32>
    %49 = vector.shape_cast %48 : vector<8xf32> to vector<8x1xf32>
    %cst_20 = arith.constant 1.280000e+02 : f32
    %50 = vector.broadcast %cst_20 : f32 to vector<8x1xf32>
    %51 = arith.divf %49, %50 : vector<8x1xf32>
    %52 = arith.mulf %47, %47 : vector<8x128xf32>
    %cst_21 = arith.constant dense<0.000000e+00> : vector<8xf32>
    %53 = vector.multi_reduction <add>, %52, %cst_21 [1] : vector<8x128xf32> to vector<8xf32>
    %54 = vector.shape_cast %53 : vector<8xf32> to vector<8x1xf32>
    %cst_22 = arith.constant 1.280000e+02 : f32
    %55 = vector.broadcast %cst_22 : f32 to vector<8x1xf32>
    %56 = arith.divf %54, %55 : vector<8x1xf32>
    %57 = arith.mulf %51, %51 : vector<8x1xf32>
    %58 = arith.subf %56, %57 : vector<8x1xf32>
    %59 = vector.broadcast %51 : vector<8x1xf32> to vector<8x128xf32>
    %60 = arith.subf %47, %59 : vector<8x128xf32>
    %cst_23 = arith.constant 9.99999974E-6 : f32
    %61 = vector.broadcast %cst_23 : f32 to vector<8x1xf32>
    %62 = arith.addf %58, %61 : vector<8x1xf32>
    %63 = math.rsqrt %62 : vector<8x1xf32>
    %64 = vector.broadcast %63 : vector<8x1xf32> to vector<8x128xf32>
    %65 = arith.mulf %60, %64 : vector<8x128xf32>
    %c0_24 = arith.constant 0 : index
    %c0_25 = arith.constant 0 : index
    %c0_26 = arith.constant 0 : index
    %66 = vector.load %arg7[%c0_24, %c0_25, %c0_26] : memref<1x1x128xf32, #tpu.memory_space<vmem>>, vector<1x1x128xf32>
    %67 = vector.shape_cast %66 : vector<1x1x128xf32> to vector<1x128xf32>
    %68 = vector.broadcast %67 : vector<1x128xf32> to vector<8x128xf32>
    %69 = arith.mulf %65, %68 : vector<8x128xf32>
    %c0_27 = arith.constant 0 : index
    %c0_28 = arith.constant 0 : index
    %c0_29 = arith.constant 0 : index
    %70 = vector.load %arg8[%c0_27, %c0_28, %c0_29] : memref<1x1x128xf32, #tpu.memory_space<vmem>>, vector<1x1x128xf32>
    %71 = vector.shape_cast %70 : vector<1x1x128xf32> to vector<1x128xf32>
    %72 = vector.broadcast %71 : vector<1x128xf32> to vector<8x128xf32>
    %73 = arith.addf %69, %72 : vector<8x128xf32>
    %74 = arith.truncf %73 : vector<8x128xf32> to vector<8x128xbf16>
    %c0_30 = arith.constant 0 : index
    %c0_31 = arith.constant 0 : index
    %c0_32 = arith.constant 0 : index
    %75 = vector.load %arg9[%c0_30, %c0_31, %c0_32] : memref<1x128x256xbf16, #tpu.memory_space<vmem>>, vector<1x128x256xbf16>
    %76 = vector.shape_cast %75 : vector<1x128x256xbf16> to vector<128x256xbf16>
    %cst_33 = arith.constant dense<0.000000e+00> : vector<8x256xf32>
    %77 = tpu.matmul %74, %76, %cst_33 {dimension_numbers = #tpu.dot_dimension_numbers<[1], [0], [0], [1], [0, 0, 1, 1], [], []>} : vector<8x128xbf16>, vector<128x256xbf16>, vector<8x256xf32> -> vector<8x256xf32>
    %c0_34 = arith.constant 0 : index
    %c0_35 = arith.constant 0 : index
    %c0_36 = arith.constant 0 : index
    %78 = vector.load %arg10[%c0_34, %c0_35, %c0_36] : memref<1x1x256xf32, #tpu.memory_space<vmem>>, vector<1x1x256xf32>
    %79 = vector.shape_cast %78 : vector<1x1x256xf32> to vector<1x256xf32>
    %80 = vector.broadcast %79 : vector<1x256xf32> to vector<8x256xf32>
    %81 = arith.addf %77, %80 : vector<8x256xf32>
    %cst_37 = arith.constant 0.000000e+00 : f32
    %82 = vector.broadcast %cst_37 : f32 to vector<8x256xf32>
    %83 = arith.maximumf %81, %82 : vector<8x256xf32>
    %84 = arith.truncf %83 : vector<8x256xf32> to vector<8x256xbf16>
    %c0_38 = arith.constant 0 : index
    %c0_39 = arith.constant 0 : index
    %c0_40 = arith.constant 0 : index
    %85 = vector.load %arg11[%c0_38, %c0_39, %c0_40] : memref<1x256x128xbf16, #tpu.memory_space<vmem>>, vector<1x256x128xbf16>
    %86 = vector.shape_cast %85 : vector<1x256x128xbf16> to vector<256x128xbf16>
    %cst_41 = arith.constant dense<0.000000e+00> : vector<8x128xf32>
    %87 = tpu.matmul %84, %86, %cst_41 {dimension_numbers = #tpu.dot_dimension_numbers<[1], [0], [0], [1], [0, 0, 1, 1], [], []>} : vector<8x256xbf16>, vector<256x128xbf16>, vector<8x128xf32> -> vector<8x128xf32>
    %c0_42 = arith.constant 0 : index
    %c0_43 = arith.constant 0 : index
    %c0_44 = arith.constant 0 : index
    %88 = vector.load %arg12[%c0_42, %c0_43, %c0_44] : memref<1x1x128xf32, #tpu.memory_space<vmem>>, vector<1x1x128xf32>
    %89 = vector.shape_cast %88 : vector<1x1x128xf32> to vector<1x128xf32>
    %90 = vector.broadcast %89 : vector<1x128xf32> to vector<8x128xf32>
    %91 = arith.addf %87, %90 : vector<8x128xf32>
    %92 = arith.addf %73, %91 : vector<8x128xf32>
    %cst_45 = arith.constant dense<0.000000e+00> : vector<8xf32>
    %93 = vector.multi_reduction <add>, %92, %cst_45 [1] : vector<8x128xf32> to vector<8xf32>
    %94 = vector.shape_cast %93 : vector<8xf32> to vector<8x1xf32>
    %cst_46 = arith.constant 1.280000e+02 : f32
    %95 = vector.broadcast %cst_46 : f32 to vector<8x1xf32>
    %96 = arith.divf %94, %95 : vector<8x1xf32>
    %97 = arith.mulf %92, %92 : vector<8x128xf32>
    %cst_47 = arith.constant dense<0.000000e+00> : vector<8xf32>
    %98 = vector.multi_reduction <add>, %97, %cst_47 [1] : vector<8x128xf32> to vector<8xf32>
    %99 = vector.shape_cast %98 : vector<8xf32> to vector<8x1xf32>
    %cst_48 = arith.constant 1.280000e+02 : f32
    %100 = vector.broadcast %cst_48 : f32 to vector<8x1xf32>
    %101 = arith.divf %99, %100 : vector<8x1xf32>
    %102 = arith.mulf %96, %96 : vector<8x1xf32>
    %103 = arith.subf %101, %102 : vector<8x1xf32>
    %104 = vector.broadcast %96 : vector<8x1xf32> to vector<8x128xf32>
    %105 = arith.subf %92, %104 : vector<8x128xf32>
    %cst_49 = arith.constant 9.99999974E-6 : f32
    %106 = vector.broadcast %cst_49 : f32 to vector<8x1xf32>
    %107 = arith.addf %103, %106 : vector<8x1xf32>
    %108 = math.rsqrt %107 : vector<8x1xf32>
    %109 = vector.broadcast %108 : vector<8x1xf32> to vector<8x128xf32>
    %110 = arith.mulf %105, %109 : vector<8x128xf32>
    %c0_50 = arith.constant 0 : index
    %c0_51 = arith.constant 0 : index
    %c0_52 = arith.constant 0 : index
    %111 = vector.load %arg13[%c0_50, %c0_51, %c0_52] : memref<1x1x128xf32, #tpu.memory_space<vmem>>, vector<1x1x128xf32>
    %112 = vector.shape_cast %111 : vector<1x1x128xf32> to vector<1x128xf32>
    %113 = vector.broadcast %112 : vector<1x128xf32> to vector<8x128xf32>
    %114 = arith.mulf %110, %113 : vector<8x128xf32>
    %c0_53 = arith.constant 0 : index
    %c0_54 = arith.constant 0 : index
    %c0_55 = arith.constant 0 : index
    %115 = vector.load %arg14[%c0_53, %c0_54, %c0_55] : memref<1x1x128xf32, #tpu.memory_space<vmem>>, vector<1x1x128xf32>
    %116 = vector.shape_cast %115 : vector<1x1x128xf32> to vector<1x128xf32>
    %117 = vector.broadcast %116 : vector<1x128xf32> to vector<8x128xf32>
    %118 = arith.addf %114, %117 : vector<8x128xf32>
    %c0_56 = arith.constant 0 : index
    %c0_57 = arith.constant 0 : index
    %119 = vector.load %arg16[%c0_56, %c0_57] : memref<8x128xf32, #tpu.memory_space<vmem>>, vector<8x128xf32>
    tpu.vector_store %arg16[%c0_56, %c0_57], %118 {strides = array<i32>} : memref<8x128xf32, #tpu.memory_space<vmem>>, vector<8x128xf32>,
    %c1_i32 = arith.constant 1 : i32
    %120 = arith.cmpi eq, %arg1, %c1_i32 : i32
    %121 = arith.extui %120 : i1 to i32
    %c0_i32_58 = arith.constant 0 : i32
    %122 = arith.cmpi ne, %121, %c0_i32_58 : i32
    scf.if %122 {
      %123 = vector.shape_cast %118 : vector<8x128xf32> to vector<1x8x128xf32>
      %124 = vector.extract_strided_slice %123 {offsets = [0, 0, 0], sizes = [1, 1, 128], strides = [1, 1, 1]} : vector<1x8x128xf32> to vector<1x1x128xf32>
      %c0_59 = arith.constant 0 : index
      %c0_60 = arith.constant 0 : index
      %c0_61 = arith.constant 0 : index
      %125 = vector.load %arg15[%c0_59, %c0_60, %c0_61] : memref<1x1x128xf32, #tpu.memory_space<vmem>>, vector<1x1x128xf32>
      tpu.vector_store %arg15[%c0_59, %c0_60, %c0_61], %124 {strides = array<i32>} : memref<1x1x128xf32, #tpu.memory_space<vmem>>, vector<1x1x128xf32>,
    } else {
    }
    return
  }
  func.func @transform_0(%arg0: i32, %arg1: i32) -> (i32, i32, i32) {
    %c0_i32 = arith.constant 0 : i32
    %c0_i32_0 = arith.constant 0 : i32
    %c0_i32_1 = arith.constant 0 : i32
    return %arg0, %c0_i32, %c0_i32_0 : i32, i32, i32
  }
  func.func @transform_1(%arg0: i32, %arg1: i32) -> (i32, i32, i32) {
    %c0_i32 = arith.constant 0 : i32
    %c0_i32_0 = arith.constant 0 : i32
    %c0_i32_1 = arith.constant 0 : i32
    return %arg1, %c0_i32, %c0_i32_0 : i32, i32, i32
  }
  func.func @transform_2(%arg0: i32, %arg1: i32) -> (i32, i32, i32) {
    %c0_i32 = arith.constant 0 : i32
    %c0_i32_0 = arith.constant 0 : i32
    %c0_i32_1 = arith.constant 0 : i32
    return %arg1, %c0_i32, %c0_i32_0 : i32, i32, i32
  }
  func.func @transform_3(%arg0: i32, %arg1: i32) -> (i32, i32, i32) {
    %c0_i32 = arith.constant 0 : i32
    %c0_i32_0 = arith.constant 0 : i32
    %c0_i32_1 = arith.constant 0 : i32
    return %arg1, %c0_i32, %c0_i32_0 : i32, i32, i32
  }
  func.func @transform_4(%arg0: i32, %arg1: i32) -> (i32, i32, i32) {
    %c0_i32 = arith.constant 0 : i32
    %c0_i32_0 = arith.constant 0 : i32
    %c0_i32_1 = arith.constant 0 : i32
    return %arg1, %c0_i32, %c0_i32_0 : i32, i32, i32
  }
  func.func @transform_5(%arg0: i32, %arg1: i32) -> (i32, i32, i32) {
    %c0_i32 = arith.constant 0 : i32
    %c0_i32_0 = arith.constant 0 : i32
    %c0_i32_1 = arith.constant 0 : i32
    return %arg1, %c0_i32, %c0_i32_0 : i32, i32, i32
  }
  func.func @transform_6(%arg0: i32, %arg1: i32) -> (i32, i32, i32) {
    %c0_i32 = arith.constant 0 : i32
    %c0_i32_0 = arith.constant 0 : i32
    %c0_i32_1 = arith.constant 0 : i32
    return %arg1, %c0_i32, %c0_i32_0 : i32, i32, i32
  }
  func.func @transform_7(%arg0: i32, %arg1: i32) -> (i32, i32, i32) {
    %c0_i32 = arith.constant 0 : i32
    %c0_i32_0 = arith.constant 0 : i32
    %c0_i32_1 = arith.constant 0 : i32
    return %arg1, %c0_i32, %c0_i32_0 : i32, i32, i32
  }
  func.func @transform_8(%arg0: i32, %arg1: i32) -> (i32, i32, i32) {
    %c0_i32 = arith.constant 0 : i32
    %c0_i32_0 = arith.constant 0 : i32
    %c0_i32_1 = arith.constant 0 : i32
    return %arg1, %c0_i32, %c0_i32_0 : i32, i32, i32
  }
  func.func @transform_9(%arg0: i32, %arg1: i32) -> (i32, i32, i32) {
    %c0_i32 = arith.constant 0 : i32
    %c0_i32_0 = arith.constant 0 : i32
    %c0_i32_1 = arith.constant 0 : i32
    return %arg1, %c0_i32, %c0_i32_0 : i32, i32, i32
  }
  func.func @transform_10(%arg0: i32, %arg1: i32) -> (i32, i32, i32) {
    %c0_i32 = arith.constant 0 : i32
    %c0_i32_0 = arith.constant 0 : i32
    %c0_i32_1 = arith.constant 0 : i32
    return %arg1, %c0_i32, %c0_i32_0 : i32, i32, i32
  }
  func.func @transform_11(%arg0: i32, %arg1: i32) -> (i32, i32, i32) {
    %c0_i32 = arith.constant 0 : i32
    %c0_i32_0 = arith.constant 0 : i32
    %c0_i32_1 = arith.constant 0 : i32
    return %arg1, %c0_i32, %c0_i32_0 : i32, i32, i32
  }
  func.func @transform_12(%arg0: i32, %arg1: i32) -> (i32, i32, i32) {
    %c0_i32 = arith.constant 0 : i32
    %c0_i32_0 = arith.constant 0 : i32
    %c0_i32_1 = arith.constant 0 : i32
    return %arg1, %c0_i32, %c0_i32_0 : i32, i32, i32
  }
  func.func @transform_13(%arg0: i32, %arg1: i32) -> (i32, i32, i32) {
    %c0_i32 = arith.constant 0 : i32
    %c0_i32_0 = arith.constant 0 : i32
    %c0_i32_1 = arith.constant 0 : i32
    return %arg0, %c0_i32, %c0_i32_0 : i32, i32, i32
  }
}

</mosaic_0001>

<llo_original>
// kernel: transformer_encoder_block.1
$region0: #{transformer_encoder_block.1}
  #allocation0 [shape = 'u32[]', space=smem, size = 0x4, offset = 0x4, fixed_abs, tag = 'smem constant byte address 0x4 - core index']
  #allocation1 [shape = 'u32[144,128]{1,0:T(1,128)}', space=vmem, size = 0x12000, scoped, tag = 'internal scratch']
  #allocation2 [shape = 'f32[8,128]{1,0:T(8,128)}', space=vmem, size = 0x1000, scoped, tag = 'scratch operand']
  %s0 = inlined_call_operand.vmem [shape: f32[2,8,128], index: 0, kind: input, shape index: {}]
  %s1 = inlined_call_operand.hbm [shape: bf16[2,128,384], index: 1, kind: input, shape index: {}]
  %s2 = inlined_call_operand.vmem [shape: f32[2,1,384], index: 2, kind: input, shape index: {}]
  %s3 = inlined_call_operand.hbm [shape: bf16[2,128,128], index: 3, kind: input, shape index: {}]
  %s4 = inlined_call_operand.vmem [shape: f32[2,1,128], index: 4, kind: input, shape index: {}]
  %s5 = inlined_call_operand.vmem [shape: f32[2,1,128], index: 5, kind: input, shape index: {}]
  %s6 = inlined_call_operand.vmem [shape: f32[2,1,128], index: 6, kind: input, shape index: {}]
  %s7 = inlined_call_operand.hbm [shape: bf16[2,128,256], index: 7, kind: input, shape index: {}]
  %s8 = inlined_call_operand.vmem [shape: f32[2,1,256], index: 8, kind: input, shape index: {}]
  %s9 = inlined_call_operand.hbm [shape: bf16[2,256,128], index: 9, kind: input, shape index: {}]
  %s10 = inlined_call_operand.vmem [shape: f32[2,1,128], index: 10, kind: input, shape index: {}]
  %s11 = inlined_call_operand.vmem [shape: f32[2,1,128], index: 11, kind: input, shape index: {}]
  %s12 = inlined_call_operand.vmem [shape: f32[2,1,128], index: 12, kind: input, shape index: {}]
  %s13 = inlined_call_operand.hbm [shape: f32[2,1,128], index: 13, kind: output, shape index: {}]
  %s14 = sld [smem:[#allocation0]]
  $region109: #{transformer_encoder_block.1} parent=0
    _
  %s16 = ssub.s32 1, %s14
  %s17 = scalar_select 0, %s16, %s14
  $region1: #{transformer_encoder_block.1} parent=0
    #allocation3 [shape = 'u8[196608]{0}', space=vmem, size = 0x30000, scoped, tag = 'input window, operand 1']
    #allocation4 [shape = 's32[2]{0}', space=sflag, size = 0x8, scoped, tag = 'scoped memory for transformer_encoder_block.1']
    #allocation5 [shape = 's32[2]{0}', space=sflag, size = 0x8, scoped, tag = 'scoped memory for transformer_encoder_block.1']
    #allocation6 [shape = 'u8[65536]{0}', space=vmem, size = 0x10000, scoped, tag = 'input window, operand 3']
    #allocation7 [shape = 's32[2]{0}', space=sflag, size = 0x8, scoped, tag = 'scoped memory for transformer_encoder_block.1']
    #allocation8 [shape = 'u8[131072]{0}', space=vmem, size = 0x20000, scoped, tag = 'input window, operand 7']
    #allocation9 [shape = 'u8[131072]{0}', space=vmem, size = 0x20000, scoped, tag = 'input window, operand 9']
    #allocation10 [shape = 's32[2]{0}', space=sflag, size = 0x8, scoped, tag = 'scoped memory for transformer_encoder_block.1']
    #allocation11 [shape = 'u8[1024]{0}', space=vmem, size = 0x400, scoped, tag = 'output window, operand 0']
    %18 = vsyncpa [#allocation4], 0
    %s19 = scalar_lea.sflag [#allocation4], 1
    %20 = vsyncpa %s19, 0
    %21 = vsyncpa [#allocation7], 0
    %s22 = scalar_lea.sflag [#allocation7], 1
    %23 = vsyncpa %s22, 0
    %24 = vsyncpa [#allocation10], 0
    %s25 = scalar_lea.sflag [#allocation10], 1
    %26 = vsyncpa %s25, 0
    %27 = vsyncpa [#allocation5], 0
    %s28 = scalar_lea.sflag [#allocation5], 1
    %29 = vsyncpa %s28, 0
    loop: start=0, step=1, limit=6
    $region2: #{transformer_encoder_block.1} parent=1 // loop_pre_header
      _
    $region3: #{transformer_encoder_block.1} parent=1 // loop_header
      %s31 = sphi 0, %s35
      %p32 = scmp.ge.s32.totalorder %s31, 6
      %s38 = sphi 0, %s50
      %s39 = sphi 0, %s46
      %s40 = sphi 0, %s38
      %s41 = sphi 0, %s39
      %s42 = sphi 0, %s40
      %s43 = sphi 0, %s41
      %s53 = sphi 0, %s55
      %s56 = sphi 0, %s53
      %s57 = sphi 0, %s56
      %s73 = sphi 0, %s57
      %s79 = sphi 0, %s81
      %s82 = sphi 0, %s79
      %s83 = sphi 0, %s82
      %s99 = sphi 0, %s83
      %s105 = sphi 0, %s107
      %s108 = sphi 0, %s105
      %s109 = sphi 0, %s108
      %s125 = sphi 0, %s109
      %s131 = sphi 0, %s133
      %s134 = sphi 0, %s131
      %s135 = sphi 0, %s134
      %s151 = sphi 0, %s135
      %s157 = sphi 0, %s159
      %s160 = sphi 0, %s157
      %s161 = sphi 0, %s160
      %s177 = sphi 0, %s161
      %s183 = sphi 0, %s185
      %s186 = sphi 0, %s183
      %s187 = sphi 0, %s186
      %s203 = sphi 0, %s187
      %s209 = sphi 0, %s211
      %s212 = sphi 0, %s209
      %s213 = sphi 0, %s212
      %s229 = sphi 0, %s213
      %s235 = sphi 0, %s237
      %s238 = sphi 0, %s235
      %s239 = sphi 0, %s238
      %s255 = sphi 0, %s239
      %s261 = sphi 0, %s263
      %s264 = sphi 0, %s261
      %s265 = sphi 0, %s264
      %s281 = sphi 0, %s265
      %s287 = sphi 0, %s289
      %s290 = sphi 0, %s287
      %s291 = sphi 0, %s290
      %s307 = sphi 0, %s291
      %s313 = sphi 0, %s315
      %s316 = sphi 0, %s313
      %s317 = sphi 0, %s316
      %s333 = sphi 0, %s317
      %s339 = sphi 0, %s341
      %s342 = sphi 0, %s339
      %s343 = sphi 0, %s342
      %s359 = sphi 0, %s343
      %s365 = sphi 0, %s367
      %s368 = sphi 0, %s365
      %s369 = sphi 0, %s368
      %s385 = sphi 0, %s369
      %s391 = sphi 0, %s393
      %s394 = sphi 0, %s391
      %s395 = sphi 0, %s394
      %s411 = sphi 0, %s395
    $region4: #{transformer_encoder_block.1} parent=1 // loop_header_branch
      %34 = sbr.rel (%p32) target = $region8
    $region5: #{transformer_encoder_block.1} parent=1 // loop_body
      %s36 = ssub.s32 %s31, 1
      %s37 = ssub.s32 %s31, 2
      %s44 = sadd.s32 1, %s39
      %p45 = scmp.ge.s32.totalorder %s44, 2
      %s46 = scalar_select %p45, 0, %s44
      %s47 = sadd.s32 1, %s38
      %s48 = scalar_select %p45, %s47, %s38
      %p49 = scmp.ge.s32.totalorder %s48, 2
      %s50 = scalar_select %p49, 0, %s48
      %s51 = ssub.s32 %s38, %s50
      %p52 = scmp.eq.s32.totalorder %s51, 0
      %s54 = sadd.s32 %s53, 1
      %s55 = scalar_select %p52, %s53, %s54
      %p58 = pneg %p52
      %p59 = scmp.eq.s32.totalorder %s31, 3
      %p60 = por %p58, %p59
      %p61 = scmp.ne.s32.totalorder %s53, %s56
      %p62 = scmp.eq.s32.totalorder %s31, 0
      %p63 = por %p61, %p62
      %p64 = scmp.ne.s32.totalorder %s53, %s56
      %p65 = scmp.eq.s32.totalorder %s36, 3
      %p66 = por %p64, %p65
      %p67 = scmp.ne.s32.totalorder %s56, %s57
      %p68 = scmp.eq.s32.totalorder %s36, 0
      %p69 = por %p67, %p68
      %p70 = scmp.ne.s32.totalorder %s56, %s57
      %p71 = scmp.eq.s32.totalorder %s37, 3
      %p72 = por %p70, %p71
      %p74 = scmp.ne.s32.totalorder %s57, %s73
      %p75 = scmp.eq.s32.totalorder %s37, 0
      %p76 = por %p74, %p75
      %s77 = ssub.s32 %s39, %s46
      %p78 = scmp.eq.s32.totalorder %s77, 0
      %s80 = sadd.s32 %s79, 1
      %s81 = scalar_select %p78, %s79, %s80
      %p84 = pneg %p78
      %p85 = scmp.eq.s32.totalorder %s31, 3
      %p86 = por %p84, %p85
      %p87 = scmp.ne.s32.totalorder %s79, %s82
      %p88 = scmp.eq.s32.totalorder %s31, 0
      %p89 = por %p87, %p88
      %p90 = scmp.ne.s32.totalorder %s79, %s82
      %p91 = scmp.eq.s32.totalorder %s36, 3
      %p92 = por %p90, %p91
      %p93 = scmp.ne.s32.totalorder %s82, %s83
      %p94 = scmp.eq.s32.totalorder %s36, 0
      %p95 = por %p93, %p94
      %p96 = scmp.ne.s32.totalorder %s82, %s83
      %p97 = scmp.eq.s32.totalorder %s37, 3
      %p98 = por %p96, %p97
      %p100 = scmp.ne.s32.totalorder %s83, %s99
      %p101 = scmp.eq.s32.totalorder %s37, 0
      %p102 = por %p100, %p101
      %s103 = ssub.s32 %s39, %s46
      %p104 = scmp.eq.s32.totalorder %s103, 0
      %s106 = sadd.s32 %s105, 1
      %s107 = scalar_select %p104, %s105, %s106
      %p110 = pneg %p104
      %p111 = scmp.eq.s32.totalorder %s31, 3
      %p112 = por %p110, %p111
      %p113 = scmp.ne.s32.totalorder %s105, %s108
      %p114 = scmp.eq.s32.totalorder %s31, 0
      %p115 = por %p113, %p114
      %p116 = scmp.ne.s32.totalorder %s105, %s108
      %p117 = scmp.eq.s32.totalorder %s36, 3
      %p118 = por %p116, %p117
      %p119 = scmp.ne.s32.totalorder %s108, %s109
      %p120 = scmp.eq.s32.totalorder %s36, 0
      %p121 = por %p119, %p120
      %p122 = scmp.ne.s32.totalorder %s108, %s109
      %p123 = scmp.eq.s32.totalorder %s37, 3
      %p124 = por %p122, %p123
      %p126 = scmp.ne.s32.totalorder %s109, %s125
      %p127 = scmp.eq.s32.totalorder %s37, 0
      %p128 = por %p126, %p127
      %s129 = ssub.s32 %s39, %s46
      %p130 = scmp.eq.s32.totalorder %s129, 0
      %s132 = sadd.s32 %s131, 1
      %s133 = scalar_select %p130, %s131, %s132
      %p136 = pneg %p130
      %p137 = scmp.eq.s32.totalorder %s31, 3
      %p138 = por %p136, %p137
      %p139 = scmp.ne.s32.totalorder %s131, %s134
      %p140 = scmp.eq.s32.totalorder %s31, 0
      %p141 = por %p139, %p140
      %p142 = scmp.ne.s32.totalorder %s131, %s134
      %p143 = scmp.eq.s32.totalorder %s36, 3
      %p144 = por %p142, %p143
      %p145 = scmp.ne.s32.totalorder %s134, %s135
      %p146 = scmp.eq.s32.totalorder %s36, 0
      %p147 = por %p145, %p146
      %p148 = scmp.ne.s32.totalorder %s134, %s135
      %p149 = scmp.eq.s32.totalorder %s37, 3
      %p150 = por %p148, %p149
      %p152 = scmp.ne.s32.totalorder %s135, %s151
      %p153 = scmp.eq.s32.totalorder %s37, 0
      %p154 = por %p152, %p153
      %s155 = ssub.s32 %s39, %s46
      %p156 = scmp.eq.s32.totalorder %s155, 0
      %s158 = sadd.s32 %s157, 1
      %s159 = scalar_select %p156, %s157, %s158
      %p162 = pneg %p156
      %p163 = scmp.eq.s32.totalorder %s31, 3
      %p164 = por %p162, %p163
      %p165 = scmp.ne.s32.totalorder %s157, %s160
      %p166 = scmp.eq.s32.totalorder %s31, 0
      %p167 = por %p165, %p166
      %p168 = scmp.ne.s32.totalorder %s157, %s160
      %p169 = scmp.eq.s32.totalorder %s36, 3
      %p170 = por %p168, %p169
      %p171 = scmp.ne.s32.totalorder %s160, %s161
      %p172 = scmp.eq.s32.totalorder %s36, 0
      %p173 = por %p171, %p172
      %p174 = scmp.ne.s32.totalorder %s160, %s161
      %p175 = scmp.eq.s32.totalorder %s37, 3
      %p176 = por %p174, %p175
      %p178 = scmp.ne.s32.totalorder %s161, %s177
      %p179 = scmp.eq.s32.totalorder %s37, 0
      %p180 = por %p178, %p179
      %s181 = ssub.s32 %s39, %s46
      %p182 = scmp.eq.s32.totalorder %s181, 0
      %s184 = sadd.s32 %s183, 1
      %s185 = scalar_select %p182, %s183, %s184
      %p188 = pneg %p182
      %p189 = scmp.eq.s32.totalorder %s31, 3
      %p190 = por %p188, %p189
      %p191 = scmp.ne.s32.totalorder %s183, %s186
      %p192 = scmp.eq.s32.totalorder %s31, 0
      %p193 = por %p191, %p192
      %p194 = scmp.ne.s32.totalorder %s183, %s186
      %p195 = scmp.eq.s32.totalorder %s36, 3
      %p196 = por %p194, %p195
      %p197 = scmp.ne.s32.totalorder %s186, %s187
      %p198 = scmp.eq.s32.totalorder %s36, 0
      %p199 = por %p197, %p198
      %p200 = scmp.ne.s32.totalorder %s186, %s187
      %p201 = scmp.eq.s32.totalorder %s37, 3
      %p202 = por %p200, %p201
      %p204 = scmp.ne.s32.totalorder %s187, %s203
      %p205 = scmp.eq.s32.totalorder %s37, 0
      %p206 = por %p204, %p205
      %s207 = ssub.s32 %s39, %s46
      %p208 = scmp.eq.s32.totalorder %s207, 0
      %s210 = sadd.s32 %s209, 1
      %s211 = scalar_select %p208, %s209, %s210
      %p214 = pneg %p208
      %p215 = scmp.eq.s32.totalorder %s31, 3
      %p216 = por %p214, %p215
      %p217 = scmp.ne.s32.totalorder %s209, %s212
      %p218 = scmp.eq.s32.totalorder %s31, 0
      %p219 = por %p217, %p218
      %p220 = scmp.ne.s32.totalorder %s209, %s212
      %p221 = scmp.eq.s32.totalorder %s36, 3
      %p222 = por %p220, %p221
      %p223 = scmp.ne.s32.totalorder %s212, %s213
      %p224 = scmp.eq.s32.totalorder %s36, 0
      %p225 = por %p223, %p224
      %p226 = scmp.ne.s32.totalorder %s212, %s213
      %p227 = scmp.eq.s32.totalorder %s37, 3
      %p228 = por %p226, %p227
      %p230 = scmp.ne.s32.totalorder %s213, %s229
      %p231 = scmp.eq.s32.totalorder %s37, 0
      %p232 = por %p230, %p231
      %s233 = ssub.s32 %s39, %s46
      %p234 = scmp.eq.s32.totalorder %s233, 0
      %s236 = sadd.s32 %s235, 1
      %s237 = scalar_select %p234, %s235, %s236
      %p240 = pneg %p234
      %p241 = scmp.eq.s32.totalorder %s31, 3
      %p242 = por %p240, %p241
      %p243 = scmp.ne.s32.totalorder %s235, %s238
      %p244 = scmp.eq.s32.totalorder %s31, 0
      %p245 = por %p243, %p244
      %p246 = scmp.ne.s32.totalorder %s235, %s238
      %p247 = scmp.eq.s32.totalorder %s36, 3
      %p248 = por %p246, %p247
      %p249 = scmp.ne.s32.totalorder %s238, %s239
      %p250 = scmp.eq.s32.totalorder %s36, 0
      %p251 = por %p249, %p250
      %p252 = scmp.ne.s32.totalorder %s238, %s239
      %p253 = scmp.eq.s32.totalorder %s37, 3
      %p254 = por %p252, %p253
      %p256 = scmp.ne.s32.totalorder %s239, %s255
      %p257 = scmp.eq.s32.totalorder %s37, 0
      %p258 = por %p256, %p257
      %s259 = ssub.s32 %s39, %s46
      %p260 = scmp.eq.s32.totalorder %s259, 0
      %s262 = sadd.s32 %s261, 1
      %s263 = scalar_select %p260, %s261, %s262
      %p266 = pneg %p260
      %p267 = scmp.eq.s32.totalorder %s31, 3
      %p268 = por %p266, %p267
      %p269 = scmp.ne.s32.totalorder %s261, %s264
      %p270 = scmp.eq.s32.totalorder %s31, 0
      %p271 = por %p269, %p270
      %p272 = scmp.ne.s32.totalorder %s261, %s264
      %p273 = scmp.eq.s32.totalorder %s36, 3
      %p274 = por %p272, %p273
      %p275 = scmp.ne.s32.totalorder %s264, %s265
      %p276 = scmp.eq.s32.totalorder %s36, 0
      %p277 = por %p275, %p276
      %p278 = scmp.ne.s32.totalorder %s264, %s265
      %p279 = scmp.eq.s32.totalorder %s37, 3
      %p280 = por %p278, %p279
      %p282 = scmp.ne.s32.totalorder %s265, %s281
      %p283 = scmp.eq.s32.totalorder %s37, 0
      %p284 = por %p282, %p283
      %s285 = ssub.s32 %s39, %s46
      %p286 = scmp.eq.s32.totalorder %s285, 0
      %s288 = sadd.s32 %s287, 1
      %s289 = scalar_select %p286, %s287, %s288
      %p292 = pneg %p286
      %p293 = scmp.eq.s32.totalorder %s31, 3
      %p294 = por %p292, %p293
      %p295 = scmp.ne.s32.totalorder %s287, %s290
      %p296 = scmp.eq.s32.totalorder %s31, 0
      %p297 = por %p295, %p296
      %p298 = scmp.ne.s32.totalorder %s287, %s290
      %p299 = scmp.eq.s32.totalorder %s36, 3
      %p300 = por %p298, %p299
      %p301 = scmp.ne.s32.totalorder %s290, %s291
      %p302 = scmp.eq.s32.totalorder %s36, 0
      %p303 = por %p301, %p302
      %p304 = scmp.ne.s32.totalorder %s290, %s291
      %p305 = scmp.eq.s32.totalorder %s37, 3
      %p306 = por %p304, %p305
      %p308 = scmp.ne.s32.totalorder %s291, %s307
      %p309 = scmp.eq.s32.totalorder %s37, 0
      %p310 = por %p308, %p309
      %s311 = ssub.s32 %s39, %s46
      %p312 = scmp.eq.s32.totalorder %s311, 0
      %s314 = sadd.s32 %s313, 1
      %s315 = scalar_select %p312, %s313, %s314
      %p318 = pneg %p312
      %p319 = scmp.eq.s32.totalorder %s31, 3
      %p320 = por %p318, %p319
      %p321 = scmp.ne.s32.totalorder %s313, %s316
      %p322 = scmp.eq.s32.totalorder %s31, 0
      %p323 = por %p321, %p322
      %p324 = scmp.ne.s32.totalorder %s313, %s316
      %p325 = scmp.eq.s32.totalorder %s36, 3
      %p326 = por %p324, %p325
      %p327 = scmp.ne.s32.totalorder %s316, %s317
      %p328 = scmp.eq.s32.totalorder %s36, 0
      %p329 = por %p327, %p328
      %p330 = scmp.ne.s32.totalorder %s316, %s317
      %p331 = scmp.eq.s32.totalorder %s37, 3
      %p332 = por %p330, %p331
      %p334 = scmp.ne.s32.totalorder %s317, %s333
      %p335 = scmp.eq.s32.totalorder %s37, 0
      %p336 = por %p334, %p335
      %s337 = ssub.s32 %s39, %s46
      %p338 = scmp.eq.s32.totalorder %s337, 0
      %s340 = sadd.s32 %s339, 1
      %s341 = scalar_select %p338, %s339, %s340
      %p344 = pneg %p338
      %p345 = scmp.eq.s32.totalorder %s31, 3
      %p346 = por %p344, %p345
      %p347 = scmp.ne.s32.totalorder %s339, %s342
      %p348 = scmp.eq.s32.totalorder %s31, 0
      %p349 = por %p347, %p348
      %p350 = scmp.ne.s32.totalorder %s339, %s342
      %p351 = scmp.eq.s32.totalorder %s36, 3
      %p352 = por %p350, %p351
      %p353 = scmp.ne.s32.totalorder %s342, %s343
      %p354 = scmp.eq.s32.totalorder %s36, 0
      %p355 = por %p353, %p354
      %p356 = scmp.ne.s32.totalorder %s342, %s343
      %p357 = scmp.eq.s32.totalorder %s37, 3
      %p358 = por %p356, %p357
      %p360 = scmp.ne.s32.totalorder %s343, %s359
      %p361 = scmp.eq.s32.totalorder %s37, 0
      %p362 = por %p360, %p361
      %s363 = ssub.s32 %s39, %s46
      %p364 = scmp.eq.s32.totalorder %s363, 0
      %s366 = sadd.s32 %s365, 1
      %s367 = scalar_select %p364, %s365, %s366
      %p370 = pneg %p364
      %p371 = scmp.eq.s32.totalorder %s31, 3
      %p372 = por %p370, %p371
      %p373 = scmp.ne.s32.totalorder %s365, %s368
      %p374 = scmp.eq.s32.totalorder %s31, 0
      %p375 = por %p373, %p374
      %p376 = scmp.ne.s32.totalorder %s365, %s368
      %p377 = scmp.eq.s32.totalorder %s36, 3
      %p378 = por %p376, %p377
      %p379 = scmp.ne.s32.totalorder %s368, %s369
      %p380 = scmp.eq.s32.totalorder %s36, 0
      %p381 = por %p379, %p380
      %p382 = scmp.ne.s32.totalorder %s368, %s369
      %p383 = scmp.eq.s32.totalorder %s37, 3
      %p384 = por %p382, %p383
      %p386 = scmp.ne.s32.totalorder %s369, %s385
      %p387 = scmp.eq.s32.totalorder %s37, 0
      %p388 = por %p386, %p387
      %s389 = ssub.s32 %s38, %s50
      %p390 = scmp.eq.s32.totalorder %s389, 0
      %s392 = sadd.s32 %s391, 1
      %s393 = scalar_select %p390, %s391, %s392
      %p396 = pneg %p390
      %p397 = scmp.eq.s32.totalorder %s31, 3
      %p398 = por %p396, %p397
      %p399 = scmp.ne.s32.totalorder %s391, %s394
      %p400 = scmp.eq.s32.totalorder %s31, 0
      %p401 = por %p399, %p400
      %p402 = scmp.ne.s32.totalorder %s391, %s394
      %p403 = scmp.eq.s32.totalorder %s36, 3
      %p404 = por %p402, %p403
      %p405 = scmp.ne.s32.totalorder %s394, %s395
      %p406 = scmp.eq.s32.totalorder %s36, 0
      %p407 = por %p405, %p406
      %p408 = scmp.ne.s32.totalorder %s394, %s395
      %p409 = scmp.eq.s32.totalorder %s37, 3
      %p410 = por %p408, %p409
      %p412 = scmp.ne.s32.totalorder %s395, %s411
      %p413 = scmp.eq.s32.totalorder %s37, 0
      %p414 = por %p412, %p413
      %p415 = scmp.le.s32.totalorder 1, %s31
      %p416 = scmp.lt.s32.totalorder %s31, 5
      %p417 = pnand %p415, %p416
      %p418 = pneg %p417
      // Predicated region
      $region9: #{transformer_encoder_block.1} parent=5 // pred_check
        _
      $region10: #{transformer_encoder_block.1} parent=5 // pred_check_branch
        %420 = sbr.rel (%p417) target = $region12
      $region11: #{transformer_encoder_block.1} parent=5 // pred_region
        %s421 = ssub.s32 %s31, 1
      $region12: #{transformer_encoder_block.1} parent=5 // pred_fallthru
        _
      %p422 = scmp.lt.s32.totalorder %s31, 4
      // Predicated region
      $region13: #{transformer_encoder_block.1} parent=5 // pred_check
        %p423 = pneg %p422
      $region14: #{transformer_encoder_block.1} parent=5 // pred_check_branch
        %425 = sbr.rel (%p423) target = $region16
      $region15: #{transformer_encoder_block.1} parent=5 // pred_region
        // Predicated region
        $region17: #{transformer_encoder_block.1} parent=15 // pred_check
          %p426 = pneg %p63
        $region18: #{transformer_encoder_block.1} parent=15 // pred_check_branch
          %428 = sbr.rel (%p426) target = $region20
        $region19: #{transformer_encoder_block.1} parent=15 // pred_region
          %p429 = scmp.lt.s32.totalorder %s38, 1
          %s430 = scalar_select %p429, %s38, 1
          %s431 = smul.addr %s430, 8
          %s432 = scalar_lea.vmem %s0, %s431
        $region20: #{transformer_encoder_block.1} parent=15 // pred_fallthru
          _
        // Predicated region
        $region21: #{transformer_encoder_block.1} parent=15 // pred_check
          %p433 = pneg %p89
        $region22: #{transformer_encoder_block.1} parent=15 // pred_check_branch
          %435 = sbr.rel (%p433) target = $region24
        $region23: #{transformer_encoder_block.1} parent=15 // pred_region
          %s436 = sand.u32 %s79, 1
          %s437 = scalar_lea.sflag [#allocation4], %s436
          %s438 = sand.u32 %s79, 1
          %s439 = smul.addr %s438, 192
          %s440 = scalar_lea.vmem [#allocation3], %s439
          %s442 = ssub.s32 3072, 3072
          %443 = vsyncadd %s437, %s442
          %s444 = smul.addr %s39, 48
          %s445 = smul.addr %s444, 64
          %s446 = scalar_lea.hbm %s1, %s445
          %s447 = sshll.u32 %s440, 4
          %s448 = int_to_ptr.vmem [resolvable:$true] %s447
          %453 = dma.hbm_to_vmem [thread:$0]  %s446, 3072, %s448, %s437, 192, 192, 12
        $region24: #{transformer_encoder_block.1} parent=15 // pred_fallthru
          _
        // Predicated region
        $region25: #{transformer_encoder_block.1} parent=15 // pred_check
          %p454 = pneg %p115
        $region26: #{transformer_encoder_block.1} parent=15 // pred_check_branch
          %456 = sbr.rel (%p454) target = $region28
        $region27: #{transformer_encoder_block.1} parent=15 // pred_region
          %p457 = scmp.lt.s32.totalorder %s39, 1
          %s458 = scalar_select %p457, %s39, 1
          %s459 = smul.addr %s458, 3
          %s460 = scalar_lea.vmem %s2, %s459
        $region28: #{transformer_encoder_block.1} parent=15 // pred_fallthru
          _
        // Predicated region
        $region29: #{transformer_encoder_block.1} parent=15 // pred_check
          %p461 = pneg %p141
        $region30: #{transformer_encoder_block.1} parent=15 // pred_check_branch
          %463 = sbr.rel (%p461) target = $region32
        $region31: #{transformer_encoder_block.1} parent=15 // pred_region
          %s464 = sand.u32 %s31, 1
          %s465 = scalar_lea.sflag [#allocation7], %s464
          %s466 = sand.u32 %s131, 1
          %s467 = smul.addr %s466, 64
          %s468 = scalar_lea.vmem [#allocation6], %s467
          %s470 = ssub.s32 1024, 1024
          %471 = vsyncadd %s465, %s470
          %s472 = smul.addr %s39, 16
          %s473 = smul.addr %s472, 64
          %s474 = scalar_lea.hbm %s3, %s473
          %s475 = sshll.u32 %s468, 4
          %s476 = int_to_ptr.vmem [resolvable:$true] %s475
          %481 = dma.hbm_to_vmem [thread:$0]  %s474, 1024, %s476, %s465, 64, 64, 4
        $region32: #{transformer_encoder_block.1} parent=15 // pred_fallthru
          _
        // Predicated region
        $region33: #{transformer_encoder_block.1} parent=15 // pred_check
          %p482 = pneg %p167
        $region34: #{transformer_encoder_block.1} parent=15 // pred_check_branch
          %484 = sbr.rel (%p482) target = $region36
        $region35: #{transformer_encoder_block.1} parent=15 // pred_region
          %p485 = scmp.lt.s32.totalorder %s39, 1
          %s486 = scalar_select %p485, %s39, 1
          %s487 = scalar_lea.vmem %s4, %s486
        $region36: #{transformer_encoder_block.1} parent=15 // pred_fallthru
          _
        // Predicated region
        $region37: #{transformer_encoder_block.1} parent=15 // pred_check
          %p488 = pneg %p193
        $region38: #{transformer_encoder_block.1} parent=15 // pred_check_branch
          %490 = sbr.rel (%p488) target = $region40
        $region39: #{transformer_encoder_block.1} parent=15 // pred_region
          %p491 = scmp.lt.s32.totalorder %s39, 1
          %s492 = scalar_select %p491, %s39, 1
          %s493 = scalar_lea.vmem %s5, %s492
        $region40: #{transformer_encoder_block.1} parent=15 // pred_fallthru
          _
        // Predicated region
        $region41: #{transformer_encoder_block.1} parent=15 // pred_check
          %p494 = pneg %p219
        $region42: #{transformer_encoder_block.1} parent=15 // pred_check_branch
          %496 = sbr.rel (%p494) target = $region44
        $region43: #{transformer_encoder_block.1} parent=15 // pred_region
          %p497 = scmp.lt.s32.totalorder %s39, 1
          %s498 = scalar_select %p497, %s39, 1
          %s499 = scalar_lea.vmem %s6, %s498
        $region44: #{transformer_encoder_block.1} parent=15 // pred_fallthru
          _
        // Predicated region
        $region45: #{transformer_encoder_block.1} parent=15 // pred_check
          %p500 = pneg %p245
        $region46: #{transformer_encoder_block.1} parent=15 // pred_check_branch
          %502 = sbr.rel (%p500) target = $region48
        $region47: #{transformer_encoder_block.1} parent=15 // pred_region
          %s503 = sand.u32 %s31, 1
          %s504 = scalar_lea.sflag [#allocation7], %s503
          %s505 = sand.u32 %s235, 1
          %s506 = smul.addr %s505, 128
          %s507 = scalar_lea.vmem [#allocation8], %s506
          %s509 = ssub.s32 2048, 2048
          %510 = vsyncadd %s504, %s509
          %s511 = smul.addr %s39, 32
          %s512 = smul.addr %s511, 64
          %s513 = scalar_lea.hbm %s7, %s512
          %s514 = sshll.u32 %s507, 4
          %s515 = int_to_ptr.vmem [resolvable:$true] %s514
          %520 = dma.hbm_to_vmem [thread:$0]  %s513, 2048, %s515, %s504, 128, 128, 8
        $region48: #{transformer_encoder_block.1} parent=15 // pred_fallthru
          _
        // Predicated region
        $region49: #{transformer_encoder_block.1} parent=15 // pred_check
          %p521 = pneg %p271
        $region50: #{transformer_encoder_block.1} parent=15 // pred_check_branch
          %523 = sbr.rel (%p521) target = $region52
        $region51: #{transformer_encoder_block.1} parent=15 // pred_region
          %p524 = scmp.lt.s32.totalorder %s39, 1
          %s525 = scalar_select %p524, %s39, 1
          %s526 = smul.addr %s525, 2
          %s527 = scalar_lea.vmem %s8, %s526
        $region52: #{transformer_encoder_block.1} parent=15 // pred_fallthru
          _
        // Predicated region
        $region53: #{transformer_encoder_block.1} parent=15 // pred_check
          %p528 = pneg %p297
        $region54: #{transformer_encoder_block.1} parent=15 // pred_check_branch
          %530 = sbr.rel (%p528) target = $region56
        $region55: #{transformer_encoder_block.1} parent=15 // pred_region
          %s531 = sand.u32 %s287, 1
          %s532 = scalar_lea.sflag [#allocation10], %s531
          %s533 = sand.u32 %s287, 1
          %s534 = smul.addr %s533, 128
          %s535 = scalar_lea.vmem [#allocation9], %s534
          %s537 = ssub.s32 2048, 2048
          %538 = vsyncadd %s532, %s537
          %s539 = smul.addr %s39, 32
          %s540 = smul.addr %s539, 64
          %s541 = scalar_lea.hbm %s9, %s540
          %s542 = sshll.u32 %s535, 4
          %s543 = int_to_ptr.vmem [resolvable:$true] %s542
          %548 = dma.hbm_to_vmem [thread:$0]  %s541, 2048, %s543, %s532, 64, 64, 4
        $region56: #{transformer_encoder_block.1} parent=15 // pred_fallthru
          _
        // Predicated region
        $region57: #{transformer_encoder_block.1} parent=15 // pred_check
          %p549 = pneg %p323
        $region58: #{transformer_encoder_block.1} parent=15 // pred_check_branch
          %551 = sbr.rel (%p549) target = $region60
        $region59: #{transformer_encoder_block.1} parent=15 // pred_region
          %p552 = scmp.lt.s32.totalorder %s39, 1
          %s553 = scalar_select %p552, %s39, 1
          %s554 = scalar_lea.vmem %s10, %s553
        $region60: #{transformer_encoder_block.1} parent=15 // pred_fallthru
          _
        // Predicated region
        $region61: #{transformer_encoder_block.1} parent=15 // pred_check
          %p555 = pneg %p349
        $region62: #{transformer_encoder_block.1} parent=15 // pred_check_branch
          %557 = sbr.rel (%p555) target = $region64
        $region63: #{transformer_encoder_block.1} parent=15 // pred_region
          %p558 = scmp.lt.s32.totalorder %s39, 1
          %s559 = scalar_select %p558, %s39, 1
          %s560 = scalar_lea.vmem %s11, %s559
        $region64: #{transformer_encoder_block.1} parent=15 // pred_fallthru
          _
        // Predicated region
        $region65: #{transformer_encoder_block.1} parent=15 // pred_check
          %p561 = pneg %p375
        $region66: #{transformer_encoder_block.1} parent=15 // pred_check_branch
          %563 = sbr.rel (%p561) target = $region68
        $region67: #{transformer_encoder_block.1} parent=15 // pred_region
          %p564 = scmp.lt.s32.totalorder %s39, 1
          %s565 = scalar_select %p564, %s39, 1
          %s566 = scalar_lea.vmem %s12, %s565
        $region68: #{transformer_encoder_block.1} parent=15 // pred_fallthru
          _
      $region16: #{transformer_encoder_block.1} parent=5 // pred_fallthru
        _
      %p567 = scmp.le.s32.totalorder 1, %s31
      %p568 = scmp.lt.s32.totalorder %s31, 5
      %p569 = pnand %p567, %p568
      %p570 = pneg %p569
      // Predicated region
      $region69: #{transformer_encoder_block.1} parent=5 // pred_check
        _
      $region70: #{transformer_encoder_block.1} parent=5 // pred_check_branch
        %572 = sbr.rel (%p569) target = $region72
      $region71: #{transformer_encoder_block.1} parent=5 // pred_region
        %s573 = ssub.s32 %s31, 1
        %s574 = sand.u32 %s82, 1
        %s575 = scalar_lea.sflag [#allocation4], %s574
        %s576 = sand.u32 %s82, 1
        %s577 = smul.addr %s576, 192
        %s578 = scalar_lea.vmem [#allocation3], %s577
        // Predicated region
        $region73: #{transformer_encoder_block.1} parent=71 // pred_check
          %p579 = pneg %p95
        $region74: #{transformer_encoder_block.1} parent=71 // pred_check_branch
          %581 = sbr.rel (%p579) target = $region76
        $region75: #{transformer_encoder_block.1} parent=71 // pred_region
          %582 = dma.done %s575, 3072
        $region76: #{transformer_encoder_block.1} parent=71 // pred_fallthru
          _
        %s583 = sand.u32 %s36, 1
        %s584 = scalar_lea.sflag [#allocation7], %s583
        %s585 = sand.u32 %s134, 1
        %s586 = smul.addr %s585, 64
        %s587 = scalar_lea.vmem [#allocation6], %s586
        // Predicated region
        $region77: #{transformer_encoder_block.1} parent=71 // pred_check
          %p588 = pneg %p147
        $region78: #{transformer_encoder_block.1} parent=71 // pred_check_branch
          %590 = sbr.rel (%p588) target = $region80
        $region79: #{transformer_encoder_block.1} parent=71 // pred_region
          %591 = dma.done %s584, 1024
        $region80: #{transformer_encoder_block.1} parent=71 // pred_fallthru
          _
        %s592 = sand.u32 %s36, 1
        %s593 = scalar_lea.sflag [#allocation7], %s592
        %s594 = sand.u32 %s238, 1
        %s595 = smul.addr %s594, 128
        %s596 = scalar_lea.vmem [#allocation8], %s595
        // Predicated region
        $region81: #{transformer_encoder_block.1} parent=71 // pred_check
          %p597 = pneg %p251
        $region82: #{transformer_encoder_block.1} parent=71 // pred_check_branch
          %599 = sbr.rel (%p597) target = $region84
        $region83: #{transformer_encoder_block.1} parent=71 // pred_region
          %600 = dma.done %s593, 2048
        $region84: #{transformer_encoder_block.1} parent=71 // pred_fallthru
          _
        %s601 = sand.u32 %s290, 1
        %s602 = scalar_lea.sflag [#allocation10], %s601
        %s603 = sand.u32 %s290, 1
        %s604 = smul.addr %s603, 128
        %s605 = scalar_lea.vmem [#allocation9], %s604
        // Predicated region
        $region85: #{transformer_encoder_block.1} parent=71 // pred_check
          %p606 = pneg %p303
        $region86: #{transformer_encoder_block.1} parent=71 // pred_check_branch
          %608 = sbr.rel (%p606) target = $region88
        $region87: #{transformer_encoder_block.1} parent=71 // pred_region
          %609 = dma.done %s602, 2048
        $region88: #{transformer_encoder_block.1} parent=71 // pred_fallthru
          _
        %p610 = scmp.lt.s32.totalorder %s40, 1
        %s611 = scalar_select %p610, %s40, 1
        %s612 = smul.addr %s611, 8
        %s613 = scalar_lea.vmem %s0, %s612
        %p614 = pneg %p69
        %p615 = pneg %p66
        %s616 = sand.u32 %s82, 1
        %s617 = scalar_lea.sflag [#allocation4], %s616
        %s618 = sand.u32 %s82, 1
        %s619 = smul.addr %s618, 192
        %s620 = scalar_lea.vmem [#allocation3], %s619
        %p621 = pneg %p95
        %p622 = pneg %p92
        %p623 = scmp.lt.s32.totalorder %s41, 1
        %s624 = scalar_select %p623, %s41, 1
        %s625 = smul.addr %s624, 3
        %s626 = scalar_lea.vmem %s2, %s625
        %p627 = pneg %p121
        %p628 = pneg %p118
        %s629 = sand.u32 %s36, 1
        %s630 = scalar_lea.sflag [#allocation7], %s629
        %s631 = sand.u32 %s134, 1
        %s632 = smul.addr %s631, 64
        %s633 = scalar_lea.vmem [#allocation6], %s632
        %p634 = pneg %p147
        %p635 = pneg %p144
        %p636 = scmp.lt.s32.totalorder %s41, 1
        %s637 = scalar_select %p636, %s41, 1
        %s638 = scalar_lea.vmem %s4, %s637
        %p639 = pneg %p173
        %p640 = pneg %p170
        %p641 = scmp.lt.s32.totalorder %s41, 1
        %s642 = scalar_select %p641, %s41, 1
        %s643 = scalar_lea.vmem %s5, %s642
        %p644 = pneg %p199
        %p645 = pneg %p196
        %p646 = scmp.lt.s32.totalorder %s41, 1
        %s647 = scalar_select %p646, %s41, 1
        %s648 = scalar_lea.vmem %s6, %s647
        %p649 = pneg %p225
        %p650 = pneg %p222
        %s651 = sand.u32 %s36, 1
        %s652 = scalar_lea.sflag [#allocation7], %s651
        %s653 = sand.u32 %s238, 1
        %s654 = smul.addr %s653, 128
        %s655 = scalar_lea.vmem [#allocation8], %s654
        %p656 = pneg %p251
        %p657 = pneg %p248
        %p658 = scmp.lt.s32.totalorder %s41, 1
        %s659 = scalar_select %p658, %s41, 1
        %s660 = smul.addr %s659, 2
        %s661 = scalar_lea.vmem %s8, %s660
        %p662 = pneg %p277
        %p663 = pneg %p274
        %s664 = sand.u32 %s290, 1
        %s665 = scalar_lea.sflag [#allocation10], %s664
        %s666 = sand.u32 %s290, 1
        %s667 = smul.addr %s666, 128
        %s668 = scalar_lea.vmem [#allocation9], %s667
        %p669 = pneg %p303
        %p670 = pneg %p300
        %p671 = scmp.lt.s32.totalorder %s41, 1
        %s672 = scalar_select %p671, %s41, 1
        %s673 = scalar_lea.vmem %s10, %s672
        %p674 = pneg %p329
        %p675 = pneg %p326
        %p676 = scmp.lt.s32.totalorder %s41, 1
        %s677 = scalar_select %p676, %s41, 1
        %s678 = scalar_lea.vmem %s11, %s677
        %p679 = pneg %p355
        %p680 = pneg %p352
        %p681 = scmp.lt.s32.totalorder %s41, 1
        %s682 = scalar_select %p681, %s41, 1
        %s683 = scalar_lea.vmem %s12, %s682
        %p684 = pneg %p381
        %p685 = pneg %p378
        %p686 = pneg %p407
        %p687 = pneg %p404
        %s688 = sand.u32 %s394, 1
        %s689 = scalar_lea.sflag [#allocation5], %s688
        %s690 = sand.u32 %s394, 1
        %s691 = scalar_lea.vmem [#allocation11], %s690
        %p692 = scmp.lt.s32.totalorder %s40, 1
        %s693 = scalar_select %p692, %s40, 1
        %s694 = smul.addr %s693, 8
        %s695 = scalar_lea.vmem %s0, %s694
        %p696 = scmp.lt.s32.totalorder %s41, 1
        %s697 = scalar_select %p696, %s41, 1
        %s698 = smul.addr %s697, 3
        %s699 = scalar_lea.vmem %s2, %s698
        %p700 = scmp.lt.s32.totalorder %s41, 1
        %s701 = scalar_select %p700, %s41, 1
        %s702 = scalar_lea.vmem %s4, %s701
        %p703 = scmp.lt.s32.totalorder %s41, 1
        %s704 = scalar_select %p703, %s41, 1
        %s705 = scalar_lea.vmem %s5, %s704
        %p706 = scmp.lt.s32.totalorder %s41, 1
        %s707 = scalar_select %p706, %s41, 1
        %s708 = scalar_lea.vmem %s6, %s707
        %p709 = scmp.lt.s32.totalorder %s41, 1
        %s710 = scalar_select %p709, %s41, 1
        %s711 = smul.addr %s710, 2
        %s712 = scalar_lea.vmem %s8, %s711
        %p713 = scmp.lt.s32.totalorder %s41, 1
        %s714 = scalar_select %p713, %s41, 1
        %s715 = scalar_lea.vmem %s10, %s714
        %p716 = scmp.lt.s32.totalorder %s41, 1
        %s717 = scalar_select %p716, %s41, 1
        %s718 = scalar_lea.vmem %s11, %s717
        %p719 = scmp.lt.s32.totalorder %s41, 1
        %s720 = scalar_select %p719, %s41, 1
        %s721 = scalar_lea.vmem %s12, %s720
        %p723 = scmp.eq.s32.totalorder %s41, 0
        // Predicated region
        $region89: #{transformer_encoder_block.1} parent=71 // pred_check
          %p724 = pneg %p723
        $region90: #{transformer_encoder_block.1} parent=71 // pred_check_branch
          %726 = sbr.rel (%p724) target = $region92
        $region91: #{transformer_encoder_block.1} parent=71 // pred_region
          %v727 = vld [vmem:[%s695] sm:$0xff]
          %728 = vst [vmem:[#allocation2] sm:$0xff] %v727
        $region92: #{transformer_encoder_block.1} parent=71 // pred_fallthru
          _
        %v729 = vld [vmem:[#allocation2] sm:$0xff]
        %v730 = vpack.c.bf16 %v729, %v729
        %v731 = vld [vmem:[%s578] sm:$0xff]
        %v732 = vld [vmem:[%s578 + $0x8] sm:$0xf]
        %v733 = vld [vmem:[%s578 + $0xc] sm:$0xff]
        %v734 = vld [vmem:[%s578 + $0x14] sm:$0xf]
        %v735 = vld [vmem:[%s578 + $0x18] sm:$0xff]
        %v736 = vld [vmem:[%s578 + $0x20] sm:$0xf]
        %v737 = vld [vmem:[%s578 + $0x24] sm:$0xff]
        %v738 = vld [vmem:[%s578 + $0x2c] sm:$0xf]
        %v739 = vld [vmem:[%s578 + $0x30] sm:$0xff]
        %v740 = vld [vmem:[%s578 + $0x38] sm:$0xf]
        %v741 = vld [vmem:[%s578 + $0x3c] sm:$0xff]
        %v742 = vld [vmem:[%s578 + $0x44] sm:$0xf]
        %v743 = vld [vmem:[%s578 + $0x48] sm:$0xff]
        %v744 = vld [vmem:[%s578 + $0x50] sm:$0xf]
        %v745 = vld [vmem:[%s578 + $0x54] sm:$0xff]
        %v746 = vld [vmem:[%s578 + $0x5c] sm:$0xf]
        %v747 = vld [vmem:[%s578 + $0x60] sm:$0xff]
        %v748 = vld [vmem:[%s578 + $0x68] sm:$0xf]
        %v749 = vld [vmem:[%s578 + $0x6c] sm:$0xff]
        %v750 = vld [vmem:[%s578 + $0x74] sm:$0xf]
        %v751 = vld [vmem:[%s578 + $0x78] sm:$0xff]
        %v752 = vld [vmem:[%s578 + $0x80] sm:$0xf]
        %v753 = vld [vmem:[%s578 + $0x84] sm:$0xff]
        %v754 = vld [vmem:[%s578 + $0x8c] sm:$0xf]
        %v755 = vld [vmem:[%s578 + $0x90] sm:$0xff]
        %v756 = vld [vmem:[%s578 + $0x98] sm:$0xf]
        %v757 = vld [vmem:[%s578 + $0x9c] sm:$0xff]
        %v758 = vld [vmem:[%s578 + $0xa4] sm:$0xf]
        %v759 = vld [vmem:[%s578 + $0xa8] sm:$0xff]
        %v760 = vld [vmem:[%s578 + $0xb0] sm:$0xf]
        %v761 = vld [vmem:[%s578 + $0xb4] sm:$0xff]
        %v762 = vld [vmem:[%s578 + $0xbc] sm:$0xf]
        %v763 = vld [vmem:[%s699] sm:$0x7]
        %v765 = vlaneseq
        %v766 = vshrl.u32 %v765, 7
        %v767 = vsub.s32 0, %v766
        %v768 = vrot.slane %v763, %v767
        %v769 = vlaneseq
        %v770 = vshrl.u32 %v769, 7
        %v771 = vsub.s32 1, %v770
        %v772 = vrot.slane %v763, %v771
        %v773 = vlaneseq
        %v774 = vshrl.u32 %v773, 7
        %v775 = vsub.s32 2, %v774
        %v776 = vrot.slane %v763, %v775
        %v812 = vunpack.c.l.b16 %v731
        %v813 = vunpack.c.h.b16 %v731
        %v814 = vunpack.c.l.b16 %v732
        %v815 = vunpack.c.l.b16 %v733
        %v816 = vunpack.c.h.b16 %v733
        %v817 = vunpack.c.l.b16 %v734
        %v818 = vunpack.c.l.b16 %v735
        %v819 = vunpack.c.h.b16 %v735
        %v820 = vunpack.c.l.b16 %v736
        %v821 = vunpack.c.l.b16 %v737
        %v822 = vunpack.c.h.b16 %v737
        %v823 = vunpack.c.l.b16 %v738
        %v824 = vunpack.c.l.b16 %v739
        %v825 = vunpack.c.h.b16 %v739
        %v826 = vunpack.c.l.b16 %v740
        %v827 = vunpack.c.l.b16 %v741
        %v828 = vunpack.c.h.b16 %v741
        %v829 = vunpack.c.l.b16 %v742
        %v830 = vunpack.c.l.b16 %v743
        %v831 = vunpack.c.h.b16 %v743
        %v832 = vunpack.c.l.b16 %v744
        %v833 = vunpack.c.l.b16 %v745
        %v834 = vunpack.c.h.b16 %v745
        %v835 = vunpack.c.l.b16 %v746
        %v836 = vunpack.c.l.b16 %v747
        %v837 = vunpack.c.h.b16 %v747
        %v838 = vunpack.c.l.b16 %v748
        %v839 = vunpack.c.l.b16 %v749
        %v840 = vunpack.c.h.b16 %v749
        %v841 = vunpack.c.l.b16 %v750
        %v842 = vunpack.c.l.b16 %v751
        %v843 = vunpack.c.h.b16 %v751
        %v844 = vunpack.c.l.b16 %v752
        %v845 = vunpack.c.l.b16 %v753
        %v846 = vunpack.c.h.b16 %v753
        %v847 = vunpack.c.l.b16 %v754
        %v848 = vunpack.c.l.b16 %v755
        %v849 = vunpack.c.h.b16 %v755
        %v850 = vunpack.c.l.b16 %v756
        %v851 = vunpack.c.l.b16 %v757
        %v852 = vunpack.c.h.b16 %v757
        %v853 = vunpack.c.l.b16 %v758
        %v854 = vunpack.c.l.b16 %v759
        %v855 = vunpack.c.h.b16 %v759
        %v856 = vunpack.c.l.b16 %v760
        %v857 = vunpack.c.l.b16 %v761
        %v858 = vunpack.c.h.b16 %v761
        %v859 = vunpack.c.l.b16 %v762
        %v860 = vpack.c.b16 %v815, %v812
        %v861 = vpack.c.b16 %v816, %v813
        %v862 = vpack.c.b16 %v817, %v814
        %v863 = vpack.c.b16 %v821, %v818
        %v864 = vpack.c.b16 %v822, %v819
        %v865 = vpack.c.b16 %v823, %v820
        %v866 = vpack.c.b16 %v827, %v824
        %v867 = vpack.c.b16 %v828, %v825
        %v868 = vpack.c.b16 %v829, %v826
        %v869 = vpack.c.b16 %v833, %v830
        %v870 = vpack.c.b16 %v834, %v831
        %v871 = vpack.c.b16 %v835, %v832
        %v872 = vpack.c.b16 %v839, %v836
        %v873 = vpack.c.b16 %v840, %v837
        %v874 = vpack.c.b16 %v841, %v838
        %v875 = vpack.c.b16 %v845, %v842
        %v876 = vpack.c.b16 %v846, %v843
        %v877 = vpack.c.b16 %v847, %v844
        %v878 = vpack.c.b16 %v851, %v848
        %v879 = vpack.c.b16 %v852, %v849
        %v880 = vpack.c.b16 %v853, %v850
        %v881 = vpack.c.b16 %v857, %v854
        %v882 = vpack.c.b16 %v858, %v855
        %v883 = vpack.c.b16 %v859, %v856
        %908 = vmatprep.subr.bf16.mxu0 %v861
        %909 = vmatpush1.bf16.msra.mxu0 %v860
        %910 = vmatprep.subr.bf16.mxu0 %v864
        %911 = vmatpush1.bf16.msra.mxu0 %v863
        %912 = vmatprep.subr.bf16.mxu0 %v867
        %913 = vmatpush1.bf16.msra.mxu0 %v866
        %914 = vmatprep.subr.bf16.mxu0 %v870
        %915 = vmatpush1.bf16.msra.mxu0 %v869
        %916 = vmatprep.subr.bf16.mxu0 %v873
        %917 = vmatpush1.bf16.msra.mxu0 %v872
        %918 = vmatprep.subr.bf16.mxu0 %v876
        %919 = vmatpush1.bf16.msra.mxu0 %v875
        %920 = vmatprep.subr.bf16.mxu0 %v879
        %921 = vmatpush1.bf16.msra.mxu0 %v878
        %922 = vmatprep.subr.bf16.mxu0 %v882
        %923 = vmatpush1.bf16.msra.mxu0 %v881
        %924 = vmatprep.subr.bf16.mxu0 0
        %925 = vmatpush1.bf16.msra.mxu0 0
        %926 = vmatprep.subr.bf16.mxu0 0
        %927 = vmatpush1.bf16.msra.mxu0 0
        %928 = vmatprep.subr.bf16.mxu0 0
        %929 = vmatpush1.bf16.msra.mxu0 0
        %930 = vmatprep.subr.bf16.mxu0 0
        %931 = vmatpush1.bf16.msra.mxu0 0
        %932 = vmatprep.subr.bf16.mxu0 0
        %933 = vmatpush1.bf16.msra.mxu0 0
        %934 = vmatprep.subr.bf16.mxu0 0
        %935 = vmatpush1.bf16.msra.mxu0 0
        %936 = vmatprep.subr.bf16.mxu0 0
        %937 = vmatpush1.bf16.msra.mxu0 0
        %938 = vmatprep.subr.bf16.mxu0 0
        %939 = vmatpush1.bf16.msra.mxu0 0
        %940 = vmatprep.mubr.bf16.mxu0 0
        %941 = vmatmul.mubr.bf16.gmra.mrb[0].mxu0 %v730
        %v942 = vpop.f32.mrb[0].mxu0
        %v943 = vadd.f32 %v768, %v942
        %v944 = vpop.f32.mrb[0].mxu0
        %v945 = vadd.f32 %v772, %v944
        %v946 = vpop.f32.mrb[0].mxu0
        %v947 = vpop.f32.mrb[0].mxu0
        %948 = vdwg.mxu0
        %949 = vmatprep.subr.bf16.mxu0 0
        %950 = vmatpush1.bf16.msra.mxu0 %v862
        %951 = vmatprep.subr.bf16.mxu0 0
        %952 = vmatpush1.bf16.msra.mxu0 %v865
        %953 = vmatprep.subr.bf16.mxu0 0
        %954 = vmatpush1.bf16.msra.mxu0 %v868
        %955 = vmatprep.subr.bf16.mxu0 0
        %956 = vmatpush1.bf16.msra.mxu0 %v871
        %957 = vmatprep.subr.bf16.mxu0 0
        %958 = vmatpush1.bf16.msra.mxu0 %v874
        %959 = vmatprep.subr.bf16.mxu0 0
        %960 = vmatpush1.bf16.msra.mxu0 %v877
        %961 = vmatprep.subr.bf16.mxu0 0
        %962 = vmatpush1.bf16.msra.mxu0 %v880
        %963 = vmatprep.subr.bf16.mxu0 0
        %964 = vmatpush1.bf16.msra.mxu0 %v883
        %965 = vmatprep.subr.bf16.mxu0 0
        %966 = vmatpush1.bf16.msra.mxu0 0
        %967 = vmatprep.subr.bf16.mxu0 0
        %968 = vmatpush1.bf16.msra.mxu0 0
        %969 = vmatprep.subr.bf16.mxu0 0
        %970 = vmatpush1.bf16.msra.mxu0 0
        %971 = vmatprep.subr.bf16.mxu0 0
        %972 = vmatpush1.bf16.msra.mxu0 0
        %973 = vmatprep.subr.bf16.mxu0 0
        %974 = vmatpush1.bf16.msra.mxu0 0
        %975 = vmatprep.subr.bf16.mxu0 0
        %976 = vmatpush1.bf16.msra.mxu0 0
        %977 = vmatprep.subr.bf16.mxu0 0
        %978 = vmatpush1.bf16.msra.mxu0 0
        %979 = vmatprep.subr.bf16.mxu0 0
        %980 = vmatpush1.bf16.msra.mxu0 0
        %981 = vmatprep.mubr.bf16.mxu0 0
        %982 = vmatmul.mubr.bf16.gmra.mrb[0].mxu0 %v730
        %v983 = vpop.f32.mrb[0].mxu0
        %v984 = vadd.f32 %v776, %v983
        %v985 = vpop.f32.mrb[0].mxu0
        %v986 = vpop.f32.mrb[0].mxu0
        %v987 = vpop.f32.mrb[0].mxu0
        %988 = vdwg.mxu0
        %990 = vrot.lane.b32.xlu0 %v943, 112
        %v991 = vpop.permute.xlu0 %990
        %993 = vrot.lane.b32.xlu0 %v943, 96
        %v994 = vpop.permute.xlu0 %993
        %996 = vrot.lane.b32.xlu0 %v943, 80
        %v997 = vpop.permute.xlu0 %996
        %999 = vrot.lane.b32.xlu0 %v943, 64
        %v1000 = vpop.permute.xlu0 %999
        %1002 = vrot.lane.b32.xlu0 %v943, 48
        %v1003 = vpop.permute.xlu0 %1002
        %1005 = vrot.lane.b32.xlu0 %v943, 32
        %v1006 = vpop.permute.xlu0 %1005
        %1008 = vrot.lane.b32.xlu0 %v943, 16
        %v1009 = vpop.permute.xlu0 %1008
        %1012 = vrot.lane.b32.xlu0 %v945, 112
        %v1013 = vpop.permute.xlu0 %1012
        %1015 = vrot.lane.b32.xlu0 %v945, 96
        %v1016 = vpop.permute.xlu0 %1015
        %1018 = vrot.lane.b32.xlu0 %v945, 80
        %v1019 = vpop.permute.xlu0 %1018
        %1021 = vrot.lane.b32.xlu0 %v945, 64
        %v1022 = vpop.permute.xlu0 %1021
        %1024 = vrot.lane.b32.xlu0 %v945, 48
        %v1025 = vpop.permute.xlu0 %1024
        %1027 = vrot.lane.b32.xlu0 %v945, 32
        %v1028 = vpop.permute.xlu0 %1027
        %1030 = vrot.lane.b32.xlu0 %v945, 16
        %v1031 = vpop.permute.xlu0 %1030
        %1034 = vrot.lane.b32.xlu0 %v984, 112
        %v1035 = vpop.permute.xlu0 %1034
        %1037 = vrot.lane.b32.xlu0 %v984, 96
        %v1038 = vpop.permute.xlu0 %1037
        %1040 = vrot.lane.b32.xlu0 %v984, 80
        %v1041 = vpop.permute.xlu0 %1040
        %1043 = vrot.lane.b32.xlu0 %v984, 64
        %v1044 = vpop.permute.xlu0 %1043
        %1046 = vrot.lane.b32.xlu0 %v984, 48
        %v1047 = vpop.permute.xlu0 %1046
        %1049 = vrot.lane.b32.xlu0 %v984, 32
        %v1050 = vpop.permute.xlu0 %1049
        %1052 = vrot.lane.b32.xlu0 %v984, 16
        %v1053 = vpop.permute.xlu0 %1052
        %v1055 = vcombine.low %v943, %v994
        %v1056 = vcombine.high %v943, %v994
        %v1058 = vunpack.c.l.s4 1983009808
        %v1059 = vunpack.c.0.s8 %v1058
        %v1060 = vlaneseq
        %v1061 = vshrl.u32 %v1060, 7
        %v1062 = vsub.s32 %v1059, %v1061
        %v1063 = vrot.slane %v1055, %v1062
        %v1065 = vunpack.c.l.s4 1983009808
        %v1066 = vunpack.c.0.s8 %v1065
        %v1067 = vlaneseq
        %v1068 = vshrl.u32 %v1067, 7
        %v1069 = vsub.s32 %v1066, %v1068
        %v1070 = vrot.slane %v1056, %v1069
        %v1071 = vcombine.low %v991, %v997
        %v1072 = vcombine.high %v991, %v997
        %v1074 = vunpack.c.l.s4 1983009808
        %v1075 = vunpack.c.0.s8 %v1074
        %v1076 = vlaneseq
        %v1077 = vshrl.u32 %v1076, 7
        %v1078 = vsub.s32 %v1075, %v1077
        %v1079 = vrot.slane %v1071, %v1078
        %v1081 = vunpack.c.l.s4 1983009808
        %v1082 = vunpack.c.0.s8 %v1081
        %v1083 = vlaneseq
        %v1084 = vshrl.u32 %v1083, 7
        %v1085 = vsub.s32 %v1082, %v1084
        %v1086 = vrot.slane %v1072, %v1085
        %v1087 = vcombine.low %v1000, %v1006
        %v1088 = vcombine.high %v1000, %v1006
        %v1090 = vunpack.c.l.s4 1983009808
        %v1091 = vunpack.c.0.s8 %v1090
        %v1092 = vlaneseq
        %v1093 = vshrl.u32 %v1092, 7
        %v1094 = vsub.s32 %v1091, %v1093
        %v1095 = vrot.slane %v1087, %v1094
        %v1097 = vunpack.c.l.s4 1983009808
        %v1098 = vunpack.c.0.s8 %v1097
        %v1099 = vlaneseq
        %v1100 = vshrl.u32 %v1099, 7
        %v1101 = vsub.s32 %v1098, %v1100
        %v1102 = vrot.slane %v1088, %v1101
        %v1103 = vcombine.low %v1003, %v1009
        %v1104 = vcombine.high %v1003, %v1009
        %v1106 = vunpack.c.l.s4 1983009808
        %v1107 = vunpack.c.0.s8 %v1106
        %v1108 = vlaneseq
        %v1109 = vshrl.u32 %v1108, 7
        %v1110 = vsub.s32 %v1107, %v1109
        %v1111 = vrot.slane %v1103, %v1110
        %v1113 = vunpack.c.l.s4 1983009808
        %v1114 = vunpack.c.0.s8 %v1113
        %v1115 = vlaneseq
        %v1116 = vshrl.u32 %v1115, 7
        %v1117 = vsub.s32 %v1114, %v1116
        %v1118 = vrot.slane %v1104, %v1117
        %v1119 = vcombine.low %v1063, %v1079
        %v1120 = vcombine.high %v1063, %v1079
        %v1122 = vunpack.c.l.s4 1934713408
        %v1123 = vunpack.c.0.s8 %v1122
        %v1124 = vlaneseq
        %v1125 = vshrl.u32 %v1124, 7
        %v1126 = vsub.s32 %v1123, %v1125
        %v1127 = vrot.slane %v1119, %v1126
        %v1129 = vunpack.c.l.s4 1934713408
        %v1130 = vunpack.c.0.s8 %v1129
        %v1131 = vlaneseq
        %v1132 = vshrl.u32 %v1131, 7
        %v1133 = vsub.s32 %v1130, %v1132
        %v1134 = vrot.slane %v1120, %v1133
        %v1135 = vcombine.low %v1070, %v1086
        %v1136 = vcombine.high %v1070, %v1086
        %v1138 = vunpack.c.l.s4 1934713408
        %v1139 = vunpack.c.0.s8 %v1138
        %v1140 = vlaneseq
        %v1141 = vshrl.u32 %v1140, 7
        %v1142 = vsub.s32 %v1139, %v1141
        %v1143 = vrot.slane %v1135, %v1142
        %v1145 = vunpack.c.l.s4 1934713408
        %v1146 = vunpack.c.0.s8 %v1145
        %v1147 = vlaneseq
        %v1148 = vshrl.u32 %v1147, 7
        %v1149 = vsub.s32 %v1146, %v1148
        %v1150 = vrot.slane %v1136, %v1149
        %v1151 = vcombine.low %v1095, %v1111
        %v1152 = vcombine.high %v1095, %v1111
        %v1154 = vunpack.c.l.s4 1934713408
        %v1155 = vunpack.c.0.s8 %v1154
        %v1156 = vlaneseq
        %v1157 = vshrl.u32 %v1156, 7
        %v1158 = vsub.s32 %v1155, %v1157
        %v1159 = vrot.slane %v1151, %v1158
        %v1161 = vunpack.c.l.s4 1934713408
        %v1162 = vunpack.c.0.s8 %v1161
        %v1163 = vlaneseq
        %v1164 = vshrl.u32 %v1163, 7
        %v1165 = vsub.s32 %v1162, %v1164
        %v1166 = vrot.slane %v1152, %v1165
        %v1167 = vcombine.low %v1102, %v1118
        %v1168 = vcombine.high %v1102, %v1118
        %v1170 = vunpack.c.l.s4 1934713408
        %v1171 = vunpack.c.0.s8 %v1170
        %v1172 = vlaneseq
        %v1173 = vshrl.u32 %v1172, 7
        %v1174 = vsub.s32 %v1171, %v1173
        %v1175 = vrot.slane %v1167, %v1174
        %v1177 = vunpack.c.l.s4 1934713408
        %v1178 = vunpack.c.0.s8 %v1177
        %v1179 = vlaneseq
        %v1180 = vshrl.u32 %v1179, 7
        %v1181 = vsub.s32 %v1178, %v1180
        %v1182 = vrot.slane %v1168, %v1181
        %v1183 = vcombine.low %v1127, %v1159
        %v1184 = vcombine.high %v1127, %v1159
        %v1185 = vcombine.low %v1134, %v1166
        %v1186 = vcombine.high %v1134, %v1166
        %v1187 = vcombine.low %v1143, %v1175
        %v1188 = vcombine.high %v1143, %v1175
        %v1189 = vcombine.low %v1150, %v1182
        %v1190 = vcombine.high %v1150, %v1182
        %v1191 = vcombine.low %v945, %v1016
        %v1192 = vcombine.high %v945, %v1016
        %v1194 = vunpack.c.l.s4 1983009808
        %v1195 = vunpack.c.0.s8 %v1194
        %v1196 = vlaneseq
        %v1197 = vshrl.u32 %v1196, 7
        %v1198 = vsub.s32 %v1195, %v1197
        %v1199 = vrot.slane %v1191, %v1198
        %v1201 = vunpack.c.l.s4 1983009808
        %v1202 = vunpack.c.0.s8 %v1201
        %v1203 = vlaneseq
        %v1204 = vshrl.u32 %v1203, 7
        %v1205 = vsub.s32 %v1202, %v1204
        %v1206 = vrot.slane %v1192, %v1205
        %v1207 = vcombine.low %v1013, %v1019
        %v1208 = vcombine.high %v1013, %v1019
        %v1210 = vunpack.c.l.s4 1983009808
        %v1211 = vunpack.c.0.s8 %v1210
        %v1212 = vlaneseq
        %v1213 = vshrl.u32 %v1212, 7
        %v1214 = vsub.s32 %v1211, %v1213
        %v1215 = vrot.slane %v1207, %v1214
        %v1217 = vunpack.c.l.s4 1983009808
        %v1218 = vunpack.c.0.s8 %v1217
        %v1219 = vlaneseq
        %v1220 = vshrl.u32 %v1219, 7
        %v1221 = vsub.s32 %v1218, %v1220
        %v1222 = vrot.slane %v1208, %v1221
        %v1223 = vcombine.low %v1022, %v1028
        %v1224 = vcombine.high %v1022, %v1028
        %v1226 = vunpack.c.l.s4 1983009808
        %v1227 = vunpack.c.0.s8 %v1226
        %v1228 = vlaneseq
        %v1229 = vshrl.u32 %v1228, 7
        %v1230 = vsub.s32 %v1227, %v1229
        %v1231 = vrot.slane %v1223, %v1230
        %v1233 = vunpack.c.l.s4 1983009808
        %v1234 = vunpack.c.0.s8 %v1233
        %v1235 = vlaneseq
        %v1236 = vshrl.u32 %v1235, 7
        %v1237 = vsub.s32 %v1234, %v1236
        %v1238 = vrot.slane %v1224, %v1237
        %v1239 = vcombine.low %v1025, %v1031
        %v1240 = vcombine.high %v1025, %v1031
        %v1242 = vunpack.c.l.s4 1983009808
        %v1243 = vunpack.c.0.s8 %v1242
        %v1244 = vlaneseq
        %v1245 = vshrl.u32 %v1244, 7
        %v1246 = vsub.s32 %v1243, %v1245
        %v1247 = vrot.slane %v1239, %v1246
        %v1249 = vunpack.c.l.s4 1983009808
        %v1250 = vunpack.c.0.s8 %v1249
        %v1251 = vlaneseq
        %v1252 = vshrl.u32 %v1251, 7
        %v1253 = vsub.s32 %v1250, %v1252
        %v1254 = vrot.slane %v1240, %v1253
        %v1255 = vcombine.low %v1199, %v1215
        %v1256 = vcombine.high %v1199, %v1215
        %v1258 = vunpack.c.l.s4 1934713408
        %v1259 = vunpack.c.0.s8 %v1258
        %v1260 = vlaneseq
        %v1261 = vshrl.u32 %v1260, 7
        %v1262 = vsub.s32 %v1259, %v1261
        %v1263 = vrot.slane %v1255, %v1262
        %v1265 = vunpack.c.l.s4 1934713408
        %v1266 = vunpack.c.0.s8 %v1265
        %v1267 = vlaneseq
        %v1268 = vshrl.u32 %v1267, 7
        %v1269 = vsub.s32 %v1266, %v1268
        %v1270 = vrot.slane %v1256, %v1269
        %v1271 = vcombine.low %v1206, %v1222
        %v1272 = vcombine.high %v1206, %v1222
        %v1274 = vunpack.c.l.s4 1934713408
        %v1275 = vunpack.c.0.s8 %v1274
        %v1276 = vlaneseq
        %v1277 = vshrl.u32 %v1276, 7
        %v1278 = vsub.s32 %v1275, %v1277
        %v1279 = vrot.slane %v1271, %v1278
        %v1281 = vunpack.c.l.s4 1934713408
        %v1282 = vunpack.c.0.s8 %v1281
        %v1283 = vlaneseq
        %v1284 = vshrl.u32 %v1283, 7
        %v1285 = vsub.s32 %v1282, %v1284
        %v1286 = vrot.slane %v1272, %v1285
        %v1287 = vcombine.low %v1231, %v1247
        %v1288 = vcombine.high %v1231, %v1247
        %v1290 = vunpack.c.l.s4 1934713408
        %v1291 = vunpack.c.0.s8 %v1290
        %v1292 = vlaneseq
        %v1293 = vshrl.u32 %v1292, 7
        %v1294 = vsub.s32 %v1291, %v1293
        %v1295 = vrot.slane %v1287, %v1294
        %v1297 = vunpack.c.l.s4 1934713408
        %v1298 = vunpack.c.0.s8 %v1297
        %v1299 = vlaneseq
        %v1300 = vshrl.u32 %v1299, 7
        %v1301 = vsub.s32 %v1298, %v1300
        %v1302 = vrot.slane %v1288, %v1301
        %v1303 = vcombine.low %v1238, %v1254
        %v1304 = vcombine.high %v1238, %v1254
        %v1306 = vunpack.c.l.s4 1934713408
        %v1307 = vunpack.c.0.s8 %v1306
        %v1308 = vlaneseq
        %v1309 = vshrl.u32 %v1308, 7
        %v1310 = vsub.s32 %v1307, %v1309
        %v1311 = vrot.slane %v1303, %v1310
        %v1313 = vunpack.c.l.s4 1934713408
        %v1314 = vunpack.c.0.s8 %v1313
        %v1315 = vlaneseq
        %v1316 = vshrl.u32 %v1315, 7
        %v1317 = vsub.s32 %v1314, %v1316
        %v1318 = vrot.slane %v1304, %v1317
        %v1319 = vcombine.low %v1263, %v1295
        %v1320 = vcombine.high %v1263, %v1295
        %v1321 = vcombine.low %v1270, %v1302
        %v1322 = vcombine.high %v1270, %v1302
        %v1323 = vcombine.low %v1279, %v1311
        %v1324 = vcombine.high %v1279, %v1311
        %v1325 = vcombine.low %v1286, %v1318
        %v1326 = vcombine.high %v1286, %v1318
        %v1327 = vcombine.low %v984, %v1038
        %v1328 = vcombine.high %v984, %v1038
        %v1330 = vunpack.c.l.s4 1983009808
        %v1331 = vunpack.c.0.s8 %v1330
        %v1332 = vlaneseq
        %v1333 = vshrl.u32 %v1332, 7
        %v1334 = vsub.s32 %v1331, %v1333
        %v1335 = vrot.slane %v1327, %v1334
        %v1337 = vunpack.c.l.s4 1983009808
        %v1338 = vunpack.c.0.s8 %v1337
        %v1339 = vlaneseq
        %v1340 = vshrl.u32 %v1339, 7
        %v1341 = vsub.s32 %v1338, %v1340
        %v1342 = vrot.slane %v1328, %v1341
        %v1343 = vcombine.low %v1035, %v1041
        %v1344 = vcombine.high %v1035, %v1041
        %v1346 = vunpack.c.l.s4 1983009808
        %v1347 = vunpack.c.0.s8 %v1346
        %v1348 = vlaneseq
        %v1349 = vshrl.u32 %v1348, 7
        %v1350 = vsub.s32 %v1347, %v1349
        %v1351 = vrot.slane %v1343, %v1350
        %v1353 = vunpack.c.l.s4 1983009808
        %v1354 = vunpack.c.0.s8 %v1353
        %v1355 = vlaneseq
        %v1356 = vshrl.u32 %v1355, 7
        %v1357 = vsub.s32 %v1354, %v1356
        %v1358 = vrot.slane %v1344, %v1357
        %v1359 = vcombine.low %v1044, %v1050
        %v1360 = vcombine.high %v1044, %v1050
        %v1362 = vunpack.c.l.s4 1983009808
        %v1363 = vunpack.c.0.s8 %v1362
        %v1364 = vlaneseq
        %v1365 = vshrl.u32 %v1364, 7
        %v1366 = vsub.s32 %v1363, %v1365
        %v1367 = vrot.slane %v1359, %v1366
        %v1369 = vunpack.c.l.s4 1983009808
        %v1370 = vunpack.c.0.s8 %v1369
        %v1371 = vlaneseq
        %v1372 = vshrl.u32 %v1371, 7
        %v1373 = vsub.s32 %v1370, %v1372
        %v1374 = vrot.slane %v1360, %v1373
        %v1375 = vcombine.low %v1047, %v1053
        %v1376 = vcombine.high %v1047, %v1053
        %v1378 = vunpack.c.l.s4 1983009808
        %v1379 = vunpack.c.0.s8 %v1378
        %v1380 = vlaneseq
        %v1381 = vshrl.u32 %v1380, 7
        %v1382 = vsub.s32 %v1379, %v1381
        %v1383 = vrot.slane %v1375, %v1382
        %v1385 = vunpack.c.l.s4 1983009808
        %v1386 = vunpack.c.0.s8 %v1385
        %v1387 = vlaneseq
        %v1388 = vshrl.u32 %v1387, 7
        %v1389 = vsub.s32 %v1386, %v1388
        %v1390 = vrot.slane %v1376, %v1389
        %v1391 = vcombine.low %v1335, %v1351
        %v1392 = vcombine.high %v1335, %v1351
        %v1394 = vunpack.c.l.s4 1934713408
        %v1395 = vunpack.c.0.s8 %v1394
        %v1396 = vlaneseq
        %v1397 = vshrl.u32 %v1396, 7
        %v1398 = vsub.s32 %v1395, %v1397
        %v1399 = vrot.slane %v1391, %v1398
        %v1401 = vunpack.c.l.s4 1934713408
        %v1402 = vunpack.c.0.s8 %v1401
        %v1403 = vlaneseq
        %v1404 = vshrl.u32 %v1403, 7
        %v1405 = vsub.s32 %v1402, %v1404
        %v1406 = vrot.slane %v1392, %v1405
        %v1407 = vcombine.low %v1342, %v1358
        %v1408 = vcombine.high %v1342, %v1358
        %v1410 = vunpack.c.l.s4 1934713408
        %v1411 = vunpack.c.0.s8 %v1410
        %v1412 = vlaneseq
        %v1413 = vshrl.u32 %v1412, 7
        %v1414 = vsub.s32 %v1411, %v1413
        %v1415 = vrot.slane %v1407, %v1414
        %v1417 = vunpack.c.l.s4 1934713408
        %v1418 = vunpack.c.0.s8 %v1417
        %v1419 = vlaneseq
        %v1420 = vshrl.u32 %v1419, 7
        %v1421 = vsub.s32 %v1418, %v1420
        %v1422 = vrot.slane %v1408, %v1421
        %v1423 = vcombine.low %v1367, %v1383
        %v1424 = vcombine.high %v1367, %v1383
        %v1426 = vunpack.c.l.s4 1934713408
        %v1427 = vunpack.c.0.s8 %v1426
        %v1428 = vlaneseq
        %v1429 = vshrl.u32 %v1428, 7
        %v1430 = vsub.s32 %v1427, %v1429
        %v1431 = vrot.slane %v1423, %v1430
        %v1433 = vunpack.c.l.s4 1934713408
        %v1434 = vunpack.c.0.s8 %v1433
        %v1435 = vlaneseq
        %v1436 = vshrl.u32 %v1435, 7
        %v1437 = vsub.s32 %v1434, %v1436
        %v1438 = vrot.slane %v1424, %v1437
        %v1439 = vcombine.low %v1374, %v1390
        %v1440 = vcombine.high %v1374, %v1390
        %v1442 = vunpack.c.l.s4 1934713408
        %v1443 = vunpack.c.0.s8 %v1442
        %v1444 = vlaneseq
        %v1445 = vshrl.u32 %v1444, 7
        %v1446 = vsub.s32 %v1443, %v1445
        %v1447 = vrot.slane %v1439, %v1446
        %v1449 = vunpack.c.l.s4 1934713408
        %v1450 = vunpack.c.0.s8 %v1449
        %v1451 = vlaneseq
        %v1452 = vshrl.u32 %v1451, 7
        %v1453 = vsub.s32 %v1450, %v1452
        %v1454 = vrot.slane %v1440, %v1453
        %v1455 = vcombine.low %v1399, %v1431
        %v1456 = vcombine.high %v1399, %v1431
        %v1457 = vcombine.low %v1406, %v1438
        %v1458 = vcombine.high %v1406, %v1438
        %v1459 = vcombine.low %v1415, %v1447
        %v1460 = vcombine.high %v1415, %v1447
        %v1461 = vcombine.low %v1422, %v1454
        %v1462 = vcombine.high %v1422, %v1454
        %v1463 = vcombine.low %v1183, %v1185
        %v1464 = vcombine.high %v1183, %v1185
        %v1466 = vunpack.c.l.s4 1983009808
        %v1467 = vunpack.c.0.s8 %v1466
        %v1468 = vlaneseq
        %v1469 = vshrl.u32 %v1468, 7
        %v1470 = vsub.s32 %v1467, %v1469
        %v1471 = vrot.slane %v1463, %v1470
        %v1473 = vunpack.c.l.s4 1983009808
        %v1474 = vunpack.c.0.s8 %v1473
        %v1475 = vlaneseq
        %v1476 = vshrl.u32 %v1475, 7
        %v1477 = vsub.s32 %v1474, %v1476
        %v1478 = vrot.slane %v1464, %v1477
        %v1479 = vcombine.low %v1184, %v1186
        %v1480 = vcombine.high %v1184, %v1186
        %v1482 = vunpack.c.l.s4 1983009808
        %v1483 = vunpack.c.0.s8 %v1482
        %v1484 = vlaneseq
        %v1485 = vshrl.u32 %v1484, 7
        %v1486 = vsub.s32 %v1483, %v1485
        %v1487 = vrot.slane %v1479, %v1486
        %v1489 = vunpack.c.l.s4 1983009808
        %v1490 = vunpack.c.0.s8 %v1489
        %v1491 = vlaneseq
        %v1492 = vshrl.u32 %v1491, 7
        %v1493 = vsub.s32 %v1490, %v1492
        %v1494 = vrot.slane %v1480, %v1493
        %v1495 = vcombine.low %v1187, %v1189
        %v1496 = vcombine.high %v1187, %v1189
        %v1498 = vunpack.c.l.s4 1983009808
        %v1499 = vunpack.c.0.s8 %v1498
        %v1500 = vlaneseq
        %v1501 = vshrl.u32 %v1500, 7
        %v1502 = vsub.s32 %v1499, %v1501
        %v1503 = vrot.slane %v1495, %v1502
        %v1505 = vunpack.c.l.s4 1983009808
        %v1506 = vunpack.c.0.s8 %v1505
        %v1507 = vlaneseq
        %v1508 = vshrl.u32 %v1507, 7
        %v1509 = vsub.s32 %v1506, %v1508
        %v1510 = vrot.slane %v1496, %v1509
        %v1511 = vcombine.low %v1188, %v1190
        %v1512 = vcombine.high %v1188, %v1190
        %v1514 = vunpack.c.l.s4 1983009808
        %v1515 = vunpack.c.0.s8 %v1514
        %v1516 = vlaneseq
        %v1517 = vshrl.u32 %v1516, 7
        %v1518 = vsub.s32 %v1515, %v1517
        %v1519 = vrot.slane %v1511, %v1518
        %v1521 = vunpack.c.l.s4 1983009808
        %v1522 = vunpack.c.0.s8 %v1521
        %v1523 = vlaneseq
        %v1524 = vshrl.u32 %v1523, 7
        %v1525 = vsub.s32 %v1522, %v1524
        %v1526 = vrot.slane %v1512, %v1525
        %v1527 = vcombine.low %v1471, %v1487
        %v1528 = vcombine.high %v1471, %v1487
        %v1530 = vunpack.c.l.s4 1934713408
        %v1531 = vunpack.c.0.s8 %v1530
        %v1532 = vlaneseq
        %v1533 = vshrl.u32 %v1532, 7
        %v1534 = vsub.s32 %v1531, %v1533
        %v1535 = vrot.slane %v1527, %v1534
        %v1537 = vunpack.c.l.s4 1934713408
        %v1538 = vunpack.c.0.s8 %v1537
        %v1539 = vlaneseq
        %v1540 = vshrl.u32 %v1539, 7
        %v1541 = vsub.s32 %v1538, %v1540
        %v1542 = vrot.slane %v1528, %v1541
        %v1543 = vcombine.low %v1478, %v1494
        %v1544 = vcombine.high %v1478, %v1494
        %v1546 = vunpack.c.l.s4 1934713408
        %v1547 = vunpack.c.0.s8 %v1546
        %v1548 = vlaneseq
        %v1549 = vshrl.u32 %v1548, 7
        %v1550 = vsub.s32 %v1547, %v1549
        %v1551 = vrot.slane %v1543, %v1550
        %v1553 = vunpack.c.l.s4 1934713408
        %v1554 = vunpack.c.0.s8 %v1553
        %v1555 = vlaneseq
        %v1556 = vshrl.u32 %v1555, 7
        %v1557 = vsub.s32 %v1554, %v1556
        %v1558 = vrot.slane %v1544, %v1557
        %v1559 = vcombine.low %v1503, %v1519
        %v1560 = vcombine.high %v1503, %v1519
        %v1562 = vunpack.c.l.s4 1934713408
        %v1563 = vunpack.c.0.s8 %v1562
        %v1564 = vlaneseq
        %v1565 = vshrl.u32 %v1564, 7
        %v1566 = vsub.s32 %v1563, %v1565
        %v1567 = vrot.slane %v1559, %v1566
        %v1569 = vunpack.c.l.s4 1934713408
        %v1570 = vunpack.c.0.s8 %v1569
        %v1571 = vlaneseq
        %v1572 = vshrl.u32 %v1571, 7
        %v1573 = vsub.s32 %v1570, %v1572
        %v1574 = vrot.slane %v1560, %v1573
        %v1575 = vcombine.low %v1510, %v1526
        %v1576 = vcombine.high %v1510, %v1526
        %v1578 = vunpack.c.l.s4 1934713408
        %v1579 = vunpack.c.0.s8 %v1578
        %v1580 = vlaneseq
        %v1581 = vshrl.u32 %v1580, 7
        %v1582 = vsub.s32 %v1579, %v1581
        %v1583 = vrot.slane %v1575, %v1582
        %v1585 = vunpack.c.l.s4 1934713408
        %v1586 = vunpack.c.0.s8 %v1585
        %v1587 = vlaneseq
        %v1588 = vshrl.u32 %v1587, 7
        %v1589 = vsub.s32 %v1586, %v1588
        %v1590 = vrot.slane %v1576, %v1589
        %v1591 = vcombine.low %v1535, %v1567
        %v1592 = vcombine.high %v1535, %v1567
        %v1593 = vcombine.low %v1542, %v1574
        %v1594 = vcombine.high %v1542, %v1574
        %v1595 = vcombine.low %v1551, %v1583
        %v1596 = vcombine.high %v1551, %v1583
        %v1597 = vcombine.low %v1558, %v1590
        %v1598 = vcombine.high %v1558, %v1590
        %v1599 = vcombine.low %v1319, %v1321
        %v1600 = vcombine.high %v1319, %v1321
        %v1602 = vunpack.c.l.s4 1983009808
        %v1603 = vunpack.c.0.s8 %v1602
        %v1604 = vlaneseq
        %v1605 = vshrl.u32 %v1604, 7
        %v1606 = vsub.s32 %v1603, %v1605
        %v1607 = vrot.slane %v1599, %v1606
        %v1609 = vunpack.c.l.s4 1983009808
        %v1610 = vunpack.c.0.s8 %v1609
        %v1611 = vlaneseq
        %v1612 = vshrl.u32 %v1611, 7
        %v1613 = vsub.s32 %v1610, %v1612
        %v1614 = vrot.slane %v1600, %v1613
        %v1615 = vcombine.low %v1320, %v1322
        %v1616 = vcombine.high %v1320, %v1322
        %v1618 = vunpack.c.l.s4 1983009808
        %v1619 = vunpack.c.0.s8 %v1618
        %v1620 = vlaneseq
        %v1621 = vshrl.u32 %v1620, 7
        %v1622 = vsub.s32 %v1619, %v1621
        %v1623 = vrot.slane %v1615, %v1622
        %v1625 = vunpack.c.l.s4 1983009808
        %v1626 = vunpack.c.0.s8 %v1625
        %v1627 = vlaneseq
        %v1628 = vshrl.u32 %v1627, 7
        %v1629 = vsub.s32 %v1626, %v1628
        %v1630 = vrot.slane %v1616, %v1629
        %v1631 = vcombine.low %v1323, %v1325
        %v1632 = vcombine.high %v1323, %v1325
        %v1634 = vunpack.c.l.s4 1983009808
        %v1635 = vunpack.c.0.s8 %v1634
        %v1636 = vlaneseq
        %v1637 = vshrl.u32 %v1636, 7
        %v1638 = vsub.s32 %v1635, %v1637
        %v1639 = vrot.slane %v1631, %v1638
        %v1641 = vunpack.c.l.s4 1983009808
        %v1642 = vunpack.c.0.s8 %v1641
        %v1643 = vlaneseq
        %v1644 = vshrl.u32 %v1643, 7
        %v1645 = vsub.s32 %v1642, %v1644
        %v1646 = vrot.slane %v1632, %v1645
        %v1647 = vcombine.low %v1324, %v1326
        %v1648 = vcombine.high %v1324, %v1326
        %v1650 = vunpack.c.l.s4 1983009808
        %v1651 = vunpack.c.0.s8 %v1650
        %v1652 = vlaneseq
        %v1653 = vshrl.u32 %v1652, 7
        %v1654 = vsub.s32 %v1651, %v1653
        %v1655 = vrot.slane %v1647, %v1654
        %v1657 = vunpack.c.l.s4 1983009808
        %v1658 = vunpack.c.0.s8 %v1657
        %v1659 = vlaneseq
        %v1660 = vshrl.u32 %v1659, 7
        %v1661 = vsub.s32 %v1658, %v1660
        %v1662 = vrot.slane %v1648, %v1661
        %v1663 = vcombine.low %v1607, %v1623
        %v1664 = vcombine.high %v1607, %v1623
        %v1666 = vunpack.c.l.s4 1934713408
        %v1667 = vunpack.c.0.s8 %v1666
        %v1668 = vlaneseq
        %v1669 = vshrl.u32 %v1668, 7
        %v1670 = vsub.s32 %v1667, %v1669
        %v1671 = vrot.slane %v1663, %v1670
        %v1673 = vunpack.c.l.s4 1934713408
        %v1674 = vunpack.c.0.s8 %v1673
        %v1675 = vlaneseq
        %v1676 = vshrl.u32 %v1675, 7
        %v1677 = vsub.s32 %v1674, %v1676
        %v1678 = vrot.slane %v1664, %v1677
        %v1679 = vcombine.low %v1614, %v1630
        %v1680 = vcombine.high %v1614, %v1630
        %v1682 = vunpack.c.l.s4 1934713408
        %v1683 = vunpack.c.0.s8 %v1682
        %v1684 = vlaneseq
        %v1685 = vshrl.u32 %v1684, 7
        %v1686 = vsub.s32 %v1683, %v1685
        %v1687 = vrot.slane %v1679, %v1686
        %v1689 = vunpack.c.l.s4 1934713408
        %v1690 = vunpack.c.0.s8 %v1689
        %v1691 = vlaneseq
        %v1692 = vshrl.u32 %v1691, 7
        %v1693 = vsub.s32 %v1690, %v1692
        %v1694 = vrot.slane %v1680, %v1693
        %v1695 = vcombine.low %v1639, %v1655
        %v1696 = vcombine.high %v1639, %v1655
        %v1698 = vunpack.c.l.s4 1934713408
        %v1699 = vunpack.c.0.s8 %v1698
        %v1700 = vlaneseq
        %v1701 = vshrl.u32 %v1700, 7
        %v1702 = vsub.s32 %v1699, %v1701
        %v1703 = vrot.slane %v1695, %v1702
        %v1705 = vunpack.c.l.s4 1934713408
        %v1706 = vunpack.c.0.s8 %v1705
        %v1707 = vlaneseq
        %v1708 = vshrl.u32 %v1707, 7
        %v1709 = vsub.s32 %v1706, %v1708
        %v1710 = vrot.slane %v1696, %v1709
        %v1711 = vcombine.low %v1646, %v1662
        %v1712 = vcombine.high %v1646, %v1662
        %v1714 = vunpack.c.l.s4 1934713408
        %v1715 = vunpack.c.0.s8 %v1714
        %v1716 = vlaneseq
        %v1717 = vshrl.u32 %v1716, 7
        %v1718 = vsub.s32 %v1715, %v1717
        %v1719 = vrot.slane %v1711, %v1718
        %v1721 = vunpack.c.l.s4 1934713408
        %v1722 = vunpack.c.0.s8 %v1721
        %v1723 = vlaneseq
        %v1724 = vshrl.u32 %v1723, 7
        %v1725 = vsub.s32 %v1722, %v1724
        %v1726 = vrot.slane %v1712, %v1725
        %v1727 = vcombine.low %v1671, %v1703
        %v1728 = vcombine.high %v1671, %v1703
        %v1729 = vcombine.low %v1678, %v1710
        %v1730 = vcombine.high %v1678, %v1710
        %v1731 = vcombine.low %v1687, %v1719
        %v1732 = vcombine.high %v1687, %v1719
        %v1733 = vcombine.low %v1694, %v1726
        %v1734 = vcombine.high %v1694, %v1726
        %v1735 = vcombine.low %v1455, %v1457
        %v1736 = vcombine.high %v1455, %v1457
        %v1738 = vunpack.c.l.s4 1983009808
        %v1739 = vunpack.c.0.s8 %v1738
        %v1740 = vlaneseq
        %v1741 = vshrl.u32 %v1740, 7
        %v1742 = vsub.s32 %v1739, %v1741
        %v1743 = vrot.slane %v1735, %v1742
        %v1745 = vunpack.c.l.s4 1983009808
        %v1746 = vunpack.c.0.s8 %v1745
        %v1747 = vlaneseq
        %v1748 = vshrl.u32 %v1747, 7
        %v1749 = vsub.s32 %v1746, %v1748
        %v1750 = vrot.slane %v1736, %v1749
        %v1751 = vcombine.low %v1456, %v1458
        %v1752 = vcombine.high %v1456, %v1458
        %v1754 = vunpack.c.l.s4 1983009808
        %v1755 = vunpack.c.0.s8 %v1754
        %v1756 = vlaneseq
        %v1757 = vshrl.u32 %v1756, 7
        %v1758 = vsub.s32 %v1755, %v1757
        %v1759 = vrot.slane %v1751, %v1758
        %v1761 = vunpack.c.l.s4 1983009808
        %v1762 = vunpack.c.0.s8 %v1761
        %v1763 = vlaneseq
        %v1764 = vshrl.u32 %v1763, 7
        %v1765 = vsub.s32 %v1762, %v1764
        %v1766 = vrot.slane %v1752, %v1765
        %v1767 = vcombine.low %v1459, %v1461
        %v1768 = vcombine.high %v1459, %v1461
        %v1770 = vunpack.c.l.s4 1983009808
        %v1771 = vunpack.c.0.s8 %v1770
        %v1772 = vlaneseq
        %v1773 = vshrl.u32 %v1772, 7
        %v1774 = vsub.s32 %v1771, %v1773
        %v1775 = vrot.slane %v1767, %v1774
        %v1777 = vunpack.c.l.s4 1983009808
        %v1778 = vunpack.c.0.s8 %v1777
        %v1779 = vlaneseq
        %v1780 = vshrl.u32 %v1779, 7
        %v1781 = vsub.s32 %v1778, %v1780
        %v1782 = vrot.slane %v1768, %v1781
        %v1783 = vcombine.low %v1460, %v1462
        %v1784 = vcombine.high %v1460, %v1462
        %v1786 = vunpack.c.l.s4 1983009808
        %v1787 = vunpack.c.0.s8 %v1786
        %v1788 = vlaneseq
        %v1789 = vshrl.u32 %v1788, 7
        %v1790 = vsub.s32 %v1787, %v1789
        %v1791 = vrot.slane %v1783, %v1790
        %v1793 = vunpack.c.l.s4 1983009808
        %v1794 = vunpack.c.0.s8 %v1793
        %v1795 = vlaneseq
        %v1796 = vshrl.u32 %v1795, 7
        %v1797 = vsub.s32 %v1794, %v1796
        %v1798 = vrot.slane %v1784, %v1797
        %v1799 = vcombine.low %v1743, %v1759
        %v1800 = vcombine.high %v1743, %v1759
        %v1802 = vunpack.c.l.s4 1934713408
        %v1803 = vunpack.c.0.s8 %v1802
        %v1804 = vlaneseq
        %v1805 = vshrl.u32 %v1804, 7
        %v1806 = vsub.s32 %v1803, %v1805
        %v1807 = vrot.slane %v1799, %v1806
        %v1809 = vunpack.c.l.s4 1934713408
        %v1810 = vunpack.c.0.s8 %v1809
        %v1811 = vlaneseq
        %v1812 = vshrl.u32 %v1811, 7
        %v1813 = vsub.s32 %v1810, %v1812
        %v1814 = vrot.slane %v1800, %v1813
        %v1815 = vcombine.low %v1750, %v1766
        %v1816 = vcombine.high %v1750, %v1766
        %v1818 = vunpack.c.l.s4 1934713408
        %v1819 = vunpack.c.0.s8 %v1818
        %v1820 = vlaneseq
        %v1821 = vshrl.u32 %v1820, 7
        %v1822 = vsub.s32 %v1819, %v1821
        %v1823 = vrot.slane %v1815, %v1822
        %v1825 = vunpack.c.l.s4 1934713408
        %v1826 = vunpack.c.0.s8 %v1825
        %v1827 = vlaneseq
        %v1828 = vshrl.u32 %v1827, 7
        %v1829 = vsub.s32 %v1826, %v1828
        %v1830 = vrot.slane %v1816, %v1829
        %v1831 = vcombine.low %v1775, %v1791
        %v1832 = vcombine.high %v1775, %v1791
        %v1834 = vunpack.c.l.s4 1934713408
        %v1835 = vunpack.c.0.s8 %v1834
        %v1836 = vlaneseq
        %v1837 = vshrl.u32 %v1836, 7
        %v1838 = vsub.s32 %v1835, %v1837
        %v1839 = vrot.slane %v1831, %v1838
        %v1841 = vunpack.c.l.s4 1934713408
        %v1842 = vunpack.c.0.s8 %v1841
        %v1843 = vlaneseq
        %v1844 = vshrl.u32 %v1843, 7
        %v1845 = vsub.s32 %v1842, %v1844
        %v1846 = vrot.slane %v1832, %v1845
        %v1847 = vcombine.low %v1782, %v1798
        %v1848 = vcombine.high %v1782, %v1798
        %v1850 = vunpack.c.l.s4 1934713408
        %v1851 = vunpack.c.0.s8 %v1850
        %v1852 = vlaneseq
        %v1853 = vshrl.u32 %v1852, 7
        %v1854 = vsub.s32 %v1851, %v1853
        %v1855 = vrot.slane %v1847, %v1854
        %v1857 = vunpack.c.l.s4 1934713408
        %v1858 = vunpack.c.0.s8 %v1857
        %v1859 = vlaneseq
        %v1860 = vshrl.u32 %v1859, 7
        %v1861 = vsub.s32 %v1858, %v1860
        %v1862 = vrot.slane %v1848, %v1861
        %v1863 = vcombine.low %v1807, %v1839
        %v1864 = vcombine.high %v1807, %v1839
        %v1865 = vcombine.low %v1814, %v1846
        %v1866 = vcombine.high %v1814, %v1846
        %v1867 = vcombine.low %v1823, %v1855
        %v1868 = vcombine.high %v1823, %v1855
        %v1869 = vcombine.low %v1830, %v1862
        %v1870 = vcombine.high %v1830, %v1862
        %v1871 = vpack.c.bf16 %v1591, %v1591
        %v1872 = vpack.c.bf16 %v1592, %v1592
        %v1873 = vpack.c.bf16 %v1593, %v1593
        %v1874 = vpack.c.bf16 %v1594, %v1594
        %v1875 = vpack.c.bf16 %v1595, %v1595
        %v1876 = vpack.c.bf16 %v1596, %v1596
        %v1877 = vpack.c.bf16 %v1597, %v1597
        %v1878 = vpack.c.bf16 %v1598, %v1598
        %v1879 = vpack.c.bf16 %v1727, %v1727
        %v1880 = vpack.c.bf16 %v1728, %v1728
        %v1881 = vpack.c.bf16 %v1729, %v1729
        %v1882 = vpack.c.bf16 %v1730, %v1730
        %v1883 = vpack.c.bf16 %v1731, %v1731
        %v1884 = vpack.c.bf16 %v1732, %v1732
        %v1885 = vpack.c.bf16 %v1733, %v1733
        %v1886 = vpack.c.bf16 %v1734, %v1734
        %vm1887 = vcmask 130048
        %v1889 = vsel %vm1887, %v1871, 0
        %v1892 = vsel %vm1887, %v1879, 0
        %1894 = vmatprep.subr.bf16.mxu0 0
        %1895 = vmatpush1.bf16.xpose.msra.mxu0 %v1892
        %1896 = vmatprep.subr.bf16.mxu0 0
        %1897 = vmatpush1.bf16.xpose.msra.mxu0 0
        %1898 = vmatprep.subr.bf16.mxu0 0
        %1899 = vmatpush1.bf16.xpose.msra.mxu0 0
        %1900 = vmatprep.subr.bf16.mxu0 0
        %1901 = vmatpush1.bf16.xpose.msra.mxu0 0
        %1902 = vmatprep.subr.bf16.mxu0 0
        %1903 = vmatpush1.bf16.xpose.msra.mxu0 0
        %1904 = vmatprep.subr.bf16.mxu0 0
        %1905 = vmatpush1.bf16.xpose.msra.mxu0 0
        %1906 = vmatprep.subr.bf16.mxu0 0
        %1907 = vmatpush1.bf16.xpose.msra.mxu0 0
        %1908 = vmatprep.subr.bf16.mxu0 0
        %1909 = vmatpush1.bf16.xpose.msra.mxu0 0
        %1910 = vmatprep.subr.bf16.mxu0 0
        %1911 = vmatpush1.bf16.xpose.msra.mxu0 0
        %1912 = vmatprep.subr.bf16.mxu0 0
        %1913 = vmatpush1.bf16.xpose.msra.mxu0 0
        %1914 = vmatprep.subr.bf16.mxu0 0
        %1915 = vmatpush1.bf16.xpose.msra.mxu0 0
        %1916 = vmatprep.subr.bf16.mxu0 0
        %1917 = vmatpush1.bf16.xpose.msra.mxu0 0
        %1918 = vmatprep.subr.bf16.mxu0 0
        %1919 = vmatpush1.bf16.xpose.msra.mxu0 0
        %1920 = vmatprep.subr.bf16.mxu0 0
        %1921 = vmatpush1.bf16.xpose.msra.mxu0 0
        %1922 = vmatprep.subr.bf16.mxu0 0
        %1923 = vmatpush1.bf16.xpose.msra.mxu0 0
        %1924 = vmatprep.subr.bf16.mxu0 0
        %1925 = vmatpush1.bf16.xpose.msra.mxu0 0
        %1926 = vmatprep.mubr.bf16.mxu0 0
        %1927 = vmatmul.mubr.bf16.gmra.mrb[0].mxu0 %v1889
        %v1928 = vpop.f32.mrb[0].mxu0
        %v1929 = vadd.f32 0.0, %v1928
        %v1930 = vpop.f32.mrb[0].mxu0
        %v1931 = vpop.f32.mrb[0].mxu0
        %v1932 = vpop.f32.mrb[0].mxu0
        %1933 = vdwg.mxu0
        %v1935 = vsel %vm1887, %v1872, 0
        %v1938 = vsel %vm1887, %v1880, 0
        %1940 = vmatprep.subr.bf16.mxu0 0
        %1941 = vmatpush1.bf16.xpose.msra.mxu0 %v1938
        %1942 = vmatprep.subr.bf16.mxu0 0
        %1943 = vmatpush1.bf16.xpose.msra.mxu0 0
        %1944 = vmatprep.subr.bf16.mxu0 0
        %1945 = vmatpush1.bf16.xpose.msra.mxu0 0
        %1946 = vmatprep.subr.bf16.mxu0 0
        %1947 = vmatpush1.bf16.xpose.msra.mxu0 0
        %1948 = vmatprep.subr.bf16.mxu0 0
        %1949 = vmatpush1.bf16.xpose.msra.mxu0 0
        %1950 = vmatprep.subr.bf16.mxu0 0
        %1951 = vmatpush1.bf16.xpose.msra.mxu0 0
        %1952 = vmatprep.subr.bf16.mxu0 0
        %1953 = vmatpush1.bf16.xpose.msra.mxu0 0
        %1954 = vmatprep.subr.bf16.mxu0 0
        %1955 = vmatpush1.bf16.xpose.msra.mxu0 0
        %1956 = vmatprep.subr.bf16.mxu0 0
        %1957 = vmatpush1.bf16.xpose.msra.mxu0 0
        %1958 = vmatprep.subr.bf16.mxu0 0
        %1959 = vmatpush1.bf16.xpose.msra.mxu0 0
        %1960 = vmatprep.subr.bf16.mxu0 0
        %1961 = vmatpush1.bf16.xpose.msra.mxu0 0
        %1962 = vmatprep.subr.bf16.mxu0 0
        %1963 = vmatpush1.bf16.xpose.msra.mxu0 0
        %1964 = vmatprep.subr.bf16.mxu0 0
        %1965 = vmatpush1.bf16.xpose.msra.mxu0 0
        %1966 = vmatprep.subr.bf16.mxu0 0
        %1967 = vmatpush1.bf16.xpose.msra.mxu0 0
        %1968 = vmatprep.subr.bf16.mxu0 0
        %1969 = vmatpush1.bf16.xpose.msra.mxu0 0
        %1970 = vmatprep.subr.bf16.mxu0 0
        %1971 = vmatpush1.bf16.xpose.msra.mxu0 0
        %1972 = vmatprep.mubr.bf16.mxu0 0
        %1973 = vmatmul.mubr.bf16.gmra.mrb[0].mxu0 %v1935
        %v1974 = vpop.f32.mrb[0].mxu0
        %v1975 = vadd.f32 0.0, %v1974
        %v1976 = vpop.f32.mrb[0].mxu0
        %v1977 = vpop.f32.mrb[0].mxu0
        %v1978 = vpop.f32.mrb[0].mxu0
        %1979 = vdwg.mxu0
        %v1981 = vsel %vm1887, %v1873, 0
        %v1984 = vsel %vm1887, %v1881, 0
        %1986 = vmatprep.subr.bf16.mxu0 0
        %1987 = vmatpush1.bf16.xpose.msra.mxu0 %v1984
        %1988 = vmatprep.subr.bf16.mxu0 0
        %1989 = vmatpush1.bf16.xpose.msra.mxu0 0
        %1990 = vmatprep.subr.bf16.mxu0 0
        %1991 = vmatpush1.bf16.xpose.msra.mxu0 0
        %1992 = vmatprep.subr.bf16.mxu0 0
        %1993 = vmatpush1.bf16.xpose.msra.mxu0 0
        %1994 = vmatprep.subr.bf16.mxu0 0
        %1995 = vmatpush1.bf16.xpose.msra.mxu0 0
        %1996 = vmatprep.subr.bf16.mxu0 0
        %1997 = vmatpush1.bf16.xpose.msra.mxu0 0
        %1998 = vmatprep.subr.bf16.mxu0 0
        %1999 = vmatpush1.bf16.xpose.msra.mxu0 0
        %2000 = vmatprep.subr.bf16.mxu0 0
        %2001 = vmatpush1.bf16.xpose.msra.mxu0 0
        %2002 = vmatprep.subr.bf16.mxu0 0
        %2003 = vmatpush1.bf16.xpose.msra.mxu0 0
        %2004 = vmatprep.subr.bf16.mxu0 0
        %2005 = vmatpush1.bf16.xpose.msra.mxu0 0
        %2006 = vmatprep.subr.bf16.mxu0 0
        %2007 = vmatpush1.bf16.xpose.msra.mxu0 0
        %2008 = vmatprep.subr.bf16.mxu0 0
        %2009 = vmatpush1.bf16.xpose.msra.mxu0 0
        %2010 = vmatprep.subr.bf16.mxu0 0
        %2011 = vmatpush1.bf16.xpose.msra.mxu0 0
        %2012 = vmatprep.subr.bf16.mxu0 0
        %2013 = vmatpush1.bf16.xpose.msra.mxu0 0
        %2014 = vmatprep.subr.bf16.mxu0 0
        %2015 = vmatpush1.bf16.xpose.msra.mxu0 0
        %2016 = vmatprep.subr.bf16.mxu0 0
        %2017 = vmatpush1.bf16.xpose.msra.mxu0 0
        %2018 = vmatprep.mubr.bf16.mxu0 0
        %2019 = vmatmul.mubr.bf16.gmra.mrb[0].mxu0 %v1981
        %v2020 = vpop.f32.mrb[0].mxu0
        %v2021 = vadd.f32 0.0, %v2020
        %v2022 = vpop.f32.mrb[0].mxu0
        %v2023 = vpop.f32.mrb[0].mxu0
        %v2024 = vpop.f32.mrb[0].mxu0
        %2025 = vdwg.mxu0
        %v2027 = vsel %vm1887, %v1874, 0
        %v2030 = vsel %vm1887, %v1882, 0
        %2032 = vmatprep.subr.bf16.mxu0 0
        %2033 = vmatpush1.bf16.xpose.msra.mxu0 %v2030
        %2034 = vmatprep.subr.bf16.mxu0 0
        %2035 = vmatpush1.bf16.xpose.msra.mxu0 0
        %2036 = vmatprep.subr.bf16.mxu0 0
        %2037 = vmatpush1.bf16.xpose.msra.mxu0 0
        %2038 = vmatprep.subr.bf16.mxu0 0
        %2039 = vmatpush1.bf16.xpose.msra.mxu0 0
        %2040 = vmatprep.subr.bf16.mxu0 0
        %2041 = vmatpush1.bf16.xpose.msra.mxu0 0
        %2042 = vmatprep.subr.bf16.mxu0 0
        %2043 = vmatpush1.bf16.xpose.msra.mxu0 0
        %2044 = vmatprep.subr.bf16.mxu0 0
        %2045 = vmatpush1.bf16.xpose.msra.mxu0 0
        %2046 = vmatprep.subr.bf16.mxu0 0
        %2047 = vmatpush1.bf16.xpose.msra.mxu0 0
        %2048 = vmatprep.subr.bf16.mxu0 0
        %2049 = vmatpush1.bf16.xpose.msra.mxu0 0
        %2050 = vmatprep.subr.bf16.mxu0 0
        %2051 = vmatpush1.bf16.xpose.msra.mxu0 0
        %2052 = vmatprep.subr.bf16.mxu0 0
        %2053 = vmatpush1.bf16.xpose.msra.mxu0 0
        %2054 = vmatprep.subr.bf16.mxu0 0
        %2055 = vmatpush1.bf16.xpose.msra.mxu0 0
        %2056 = vmatprep.subr.bf16.mxu0 0
        %2057 = vmatpush1.bf16.xpose.msra.mxu0 0
        %2058 = vmatprep.subr.bf16.mxu0 0
        %2059 = vmatpush1.bf16.xpose.msra.mxu0 0
        %2060 = vmatprep.subr.bf16.mxu0 0
        %2061 = vmatpush1.bf16.xpose.msra.mxu0 0
        %2062 = vmatprep.subr.bf16.mxu0 0
        %2063 = vmatpush1.bf16.xpose.msra.mxu0 0
        %2064 = vmatprep.mubr.bf16.mxu0 0
        %2065 = vmatmul.mubr.bf16.gmra.mrb[0].mxu0 %v2027
        %v2066 = vpop.f32.mrb[0].mxu0
        %v2067 = vadd.f32 0.0, %v2066
        %v2068 = vpop.f32.mrb[0].mxu0
        %v2069 = vpop.f32.mrb[0].mxu0
        %v2070 = vpop.f32.mrb[0].mxu0
        %2071 = vdwg.mxu0
        %v2073 = vsel %vm1887, %v1875, 0
        %v2076 = vsel %vm1887, %v1883, 0
        %2078 = vmatprep.subr.bf16.mxu0 0
        %2079 = vmatpush1.bf16.xpose.msra.mxu0 %v2076
        %2080 = vmatprep.subr.bf16.mxu0 0
        %2081 = vmatpush1.bf16.xpose.msra.mxu0 0
        %2082 = vmatprep.subr.bf16.mxu0 0
        %2083 = vmatpush1.bf16.xpose.msra.mxu0 0
        %2084 = vmatprep.subr.bf16.mxu0 0
        %2085 = vmatpush1.bf16.xpose.msra.mxu0 0
        %2086 = vmatprep.subr.bf16.mxu0 0
        %2087 = vmatpush1.bf16.xpose.msra.mxu0 0
        %2088 = vmatprep.subr.bf16.mxu0 0
        %2089 = vmatpush1.bf16.xpose.msra.mxu0 0
        %2090 = vmatprep.subr.bf16.mxu0 0
        %2091 = vmatpush1.bf16.xpose.msra.mxu0 0
        %2092 = vmatprep.subr.bf16.mxu0 0
        %2093 = vmatpush1.bf16.xpose.msra.mxu0 0
        %2094 = vmatprep.subr.bf16.mxu0 0
        %2095 = vmatpush1.bf16.xpose.msra.mxu0 0
        %2096 = vmatprep.subr.bf16.mxu0 0
        %2097 = vmatpush1.bf16.xpose.msra.mxu0 0
        %2098 = vmatprep.subr.bf16.mxu0 0
        %2099 = vmatpush1.bf16.xpose.msra.mxu0 0
        %2100 = vmatprep.subr.bf16.mxu0 0
        %2101 = vmatpush1.bf16.xpose.msra.mxu0 0
        %2102 = vmatprep.subr.bf16.mxu0 0
        %2103 = vmatpush1.bf16.xpose.msra.mxu0 0
        %2104 = vmatprep.subr.bf16.mxu0 0
        %2105 = vmatpush1.bf16.xpose.msra.mxu0 0
        %2106 = vmatprep.subr.bf16.mxu0 0
        %2107 = vmatpush1.bf16.xpose.msra.mxu0 0
        %2108 = vmatprep.subr.bf16.mxu0 0
        %2109 = vmatpush1.bf16.xpose.msra.mxu0 0
        %2110 = vmatprep.mubr.bf16.mxu0 0
        %2111 = vmatmul.mubr.bf16.gmra.mrb[0].mxu0 %v2073
        %v2112 = vpop.f32.mrb[0].mxu0
        %v2113 = vadd.f32 0.0, %v2112
        %v2114 = vpop.f32.mrb[0].mxu0
        %v2115 = vpop.f32.mrb[0].mxu0
        %v2116 = vpop.f32.mrb[0].mxu0
        %2117 = vdwg.mxu0
        %v2119 = vsel %vm1887, %v1876, 0
        %v2122 = vsel %vm1887, %v1884, 0
        %2124 = vmatprep.subr.bf16.mxu0 0
        %2125 = vmatpush1.bf16.xpose.msra.mxu0 %v2122
        %2126 = vmatprep.subr.bf16.mxu0 0
        %2127 = vmatpush1.bf16.xpose.msra.mxu0 0
        %2128 = vmatprep.subr.bf16.mxu0 0
        %2129 = vmatpush1.bf16.xpose.msra.mxu0 0
        %2130 = vmatprep.subr.bf16.mxu0 0
        %2131 = vmatpush1.bf16.xpose.msra.mxu0 0
        %2132 = vmatprep.subr.bf16.mxu0 0
        %2133 = vmatpush1.bf16.xpose.msra.mxu0 0
        %2134 = vmatprep.subr.bf16.mxu0 0
        %2135 = vmatpush1.bf16.xpose.msra.mxu0 0
        %2136 = vmatprep.subr.bf16.mxu0 0
        %2137 = vmatpush1.bf16.xpose.msra.mxu0 0
        %2138 = vmatprep.subr.bf16.mxu0 0
        %2139 = vmatpush1.bf16.xpose.msra.mxu0 0
        %2140 = vmatprep.subr.bf16.mxu0 0
        %2141 = vmatpush1.bf16.xpose.msra.mxu0 0
        %2142 = vmatprep.subr.bf16.mxu0 0
        %2143 = vmatpush1.bf16.xpose.msra.mxu0 0
        %2144 = vmatprep.subr.bf16.mxu0 0
        %2145 = vmatpush1.bf16.xpose.msra.mxu0 0
        %2146 = vmatprep.subr.bf16.mxu0 0
        %2147 = vmatpush1.bf16.xpose.msra.mxu0 0
        %2148 = vmatprep.subr.bf16.mxu0 0
        %2149 = vmatpush1.bf16.xpose.msra.mxu0 0
        %2150 = vmatprep.subr.bf16.mxu0 0
        %2151 = vmatpush1.bf16.xpose.msra.mxu0 0
        %2152 = vmatprep.subr.bf16.mxu0 0
        %2153 = vmatpush1.bf16.xpose.msra.mxu0 0
        %2154 = vmatprep.subr.bf16.mxu0 0
        %2155 = vmatpush1.bf16.xpose.msra.mxu0 0
        %2156 = vmatprep.mubr.bf16.mxu0 0
        %2157 = vmatmul.mubr.bf16.gmra.mrb[0].mxu0 %v2119
        %v2158 = vpop.f32.mrb[0].mxu0
        %v2159 = vadd.f32 0.0, %v2158
        %v2160 = vpop.f32.mrb[0].mxu0
        %v2161 = vpop.f32.mrb[0].mxu0
        %v2162 = vpop.f32.mrb[0].mxu0
        %2163 = vdwg.mxu0
        %v2165 = vsel %vm1887, %v1877, 0
        %v2168 = vsel %vm1887, %v1885, 0
        %2170 = vmatprep.subr.bf16.mxu0 0
        %2171 = vmatpush1.bf16.xpose.msra.mxu0 %v2168
        %2172 = vmatprep.subr.bf16.mxu0 0
        %2173 = vmatpush1.bf16.xpose.msra.mxu0 0
        %2174 = vmatprep.subr.bf16.mxu0 0
        %2175 = vmatpush1.bf16.xpose.msra.mxu0 0
        %2176 = vmatprep.subr.bf16.mxu0 0
        %2177 = vmatpush1.bf16.xpose.msra.mxu0 0
        %2178 = vmatprep.subr.bf16.mxu0 0
        %2179 = vmatpush1.bf16.xpose.msra.mxu0 0
        %2180 = vmatprep.subr.bf16.mxu0 0
        %2181 = vmatpush1.bf16.xpose.msra.mxu0 0
        %2182 = vmatprep.subr.bf16.mxu0 0
        %2183 = vmatpush1.bf16.xpose.msra.mxu0 0
        %2184 = vmatprep.subr.bf16.mxu0 0
        %2185 = vmatpush1.bf16.xpose.msra.mxu0 0
        %2186 = vmatprep.subr.bf16.mxu0 0
        %2187 = vmatpush1.bf16.xpose.msra.mxu0 0
        %2188 = vmatprep.subr.bf16.mxu0 0
        %2189 = vmatpush1.bf16.xpose.msra.mxu0 0
        %2190 = vmatprep.subr.bf16.mxu0 0
        %2191 = vmatpush1.bf16.xpose.msra.mxu0 0
        %2192 = vmatprep.subr.bf16.mxu0 0
        %2193 = vmatpush1.bf16.xpose.msra.mxu0 0
        %2194 = vmatprep.subr.bf16.mxu0 0
        %2195 = vmatpush1.bf16.xpose.msra.mxu0 0
        %2196 = vmatprep.subr.bf16.mxu0 0
        %2197 = vmatpush1.bf16.xpose.msra.mxu0 0
        %2198 = vmatprep.subr.bf16.mxu0 0
        %2199 = vmatpush1.bf16.xpose.msra.mxu0 0
        %2200 = vmatprep.subr.bf16.mxu0 0
        %2201 = vmatpush1.bf16.xpose.msra.mxu0 0
        %2202 = vmatprep.mubr.bf16.mxu0 0
        %2203 = vmatmul.mubr.bf16.gmra.mrb[0].mxu0 %v2165
        %v2204 = vpop.f32.mrb[0].mxu0
        %v2205 = vadd.f32 0.0, %v2204
        %v2206 = vpop.f32.mrb[0].mxu0
        %v2207 = vpop.f32.mrb[0].mxu0
        %v2208 = vpop.f32.mrb[0].mxu0
        %2209 = vdwg.mxu0
        %v2211 = vsel %vm1887, %v1878, 0
        %v2214 = vsel %vm1887, %v1886, 0
        %2216 = vmatprep.subr.bf16.mxu0 0
        %2217 = vmatpush1.bf16.xpose.msra.mxu0 %v2214
        %2218 = vmatprep.subr.bf16.mxu0 0
        %2219 = vmatpush1.bf16.xpose.msra.mxu0 0
        %2220 = vmatprep.subr.bf16.mxu0 0
        %2221 = vmatpush1.bf16.xpose.msra.mxu0 0
        %2222 = vmatprep.subr.bf16.mxu0 0
        %2223 = vmatpush1.bf16.xpose.msra.mxu0 0
        %2224 = vmatprep.subr.bf16.mxu0 0
        %2225 = vmatpush1.bf16.xpose.msra.mxu0 0
        %2226 = vmatprep.subr.bf16.mxu0 0
        %2227 = vmatpush1.bf16.xpose.msra.mxu0 0
        %2228 = vmatprep.subr.bf16.mxu0 0
        %2229 = vmatpush1.bf16.xpose.msra.mxu0 0
        %2230 = vmatprep.subr.bf16.mxu0 0
        %2231 = vmatpush1.bf16.xpose.msra.mxu0 0
        %2232 = vmatprep.subr.bf16.mxu0 0
        %2233 = vmatpush1.bf16.xpose.msra.mxu0 0
        %2234 = vmatprep.subr.bf16.mxu0 0
        %2235 = vmatpush1.bf16.xpose.msra.mxu0 0
        %2236 = vmatprep.subr.bf16.mxu0 0
        %2237 = vmatpush1.bf16.xpose.msra.mxu0 0
        %2238 = vmatprep.subr.bf16.mxu0 0
        %2239 = vmatpush1.bf16.xpose.msra.mxu0 0
        %2240 = vmatprep.subr.bf16.mxu0 0
        %2241 = vmatpush1.bf16.xpose.msra.mxu0 0
        %2242 = vmatprep.subr.bf16.mxu0 0
        %2243 = vmatpush1.bf16.xpose.msra.mxu0 0
        %2244 = vmatprep.subr.bf16.mxu0 0
        %2245 = vmatpush1.bf16.xpose.msra.mxu0 0
        %2246 = vmatprep.subr.bf16.mxu0 0
        %2247 = vmatpush1.bf16.xpose.msra.mxu0 0
        %2248 = vmatprep.mubr.bf16.mxu0 0
        %2249 = vmatmul.mubr.bf16.gmra.mrb[0].mxu0 %v2211
        %v2250 = vpop.f32.mrb[0].mxu0
        %v2251 = vadd.f32 0.0, %v2250
        %v2252 = vpop.f32.mrb[0].mxu0
        %v2253 = vpop.f32.mrb[0].mxu0
        %v2254 = vpop.f32.mrb[0].mxu0
        %2255 = vdwg.mxu0
        %vm2256 = vcmask 64512
        %v2257 = vsel %vm2256, %v1929, -inf
        %2258 = vmax.xlane.f32.xlu0 %v2257
        %v2259 = vpop.xlane.xlu0 %2258
        %v2260 = vsel %vm2256, %v1975, -inf
        %2261 = vmax.xlane.f32.xlu0 %v2260
        %v2262 = vpop.xlane.xlu0 %2261
        %v2263 = vsel %vm2256, %v2021, -inf
        %2264 = vmax.xlane.f32.xlu0 %v2263
        %v2265 = vpop.xlane.xlu0 %2264
        %v2266 = vsel %vm2256, %v2067, -inf
        %2267 = vmax.xlane.f32.xlu0 %v2266
        %v2268 = vpop.xlane.xlu0 %2267
        %v2269 = vsel %vm2256, %v2113, -inf
        %2270 = vmax.xlane.f32.xlu0 %v2269
        %v2271 = vpop.xlane.xlu0 %2270
        %v2272 = vsel %vm2256, %v2159, -inf
        %2273 = vmax.xlane.f32.xlu0 %v2272
        %v2274 = vpop.xlane.xlu0 %2273
        %v2275 = vsel %vm2256, %v2205, -inf
        %2276 = vmax.xlane.f32.xlu0 %v2275
        %v2277 = vpop.xlane.xlu0 %2276
        %v2278 = vsel %vm2256, %v2251, -inf
        %2279 = vmax.xlane.f32.xlu0 %v2278
        %v2280 = vpop.xlane.xlu0 %2279
        %v2281 = vsub.f32 %v1929, %v2259
        %v2282 = vsub.f32 %v1975, %v2262
        %v2283 = vsub.f32 %v2021, %v2265
        %v2284 = vsub.f32 %v2067, %v2268
        %v2285 = vsub.f32 %v2113, %v2271
        %v2286 = vsub.f32 %v2159, %v2274
        %v2287 = vsub.f32 %v2205, %v2277
        %v2288 = vsub.f32 %v2251, %v2280
        %v2289 = vmul.f32 %v2281, 1.442695
        %v2290 = vpow.pop %v2289
        %v2291 = vmul.f32 %v2282, 1.442695
        %v2292 = vpow.pop %v2291
        %v2293 = vmul.f32 %v2283, 1.442695
        %v2294 = vpow.pop %v2293
        %v2295 = vmul.f32 %v2284, 1.442695
        %v2296 = vpow.pop %v2295
        %v2297 = vmul.f32 %v2285, 1.442695
        %v2298 = vpow.pop %v2297
        %v2299 = vmul.f32 %v2286, 1.442695
        %v2300 = vpow.pop %v2299
        %v2301 = vmul.f32 %v2287, 1.442695
        %v2302 = vpow.pop %v2301
        %v2303 = vmul.f32 %v2288, 1.442695
        %v2304 = vpow.pop %v2303
        %v2305 = vsel %vm2256, %v2290, 0.0
        %2306 = vadd.xlane.f32.xlu0 %v2305
        %v2307 = vpop.xlane.xlu0 %2306
        %v2308 = vsel %vm2256, %v2292, 0.0
        %2309 = vadd.xlane.f32.xlu0 %v2308
        %v2310 = vpop.xlane.xlu0 %2309
        %v2311 = vsel %vm2256, %v2294, 0.0
        %2312 = vadd.xlane.f32.xlu0 %v2311
        %v2313 = vpop.xlane.xlu0 %2312
        %v2314 = vsel %vm2256, %v2296, 0.0
        %2315 = vadd.xlane.f32.xlu0 %v2314
        %v2316 = vpop.xlane.xlu0 %2315
        %v2317 = vsel %vm2256, %v2298, 0.0
        %2318 = vadd.xlane.f32.xlu0 %v2317
        %v2319 = vpop.xlane.xlu0 %2318
        %v2320 = vsel %vm2256, %v2300, 0.0
        %2321 = vadd.xlane.f32.xlu0 %v2320
        %v2322 = vpop.xlane.xlu0 %2321
        %v2323 = vsel %vm2256, %v2302, 0.0
        %2324 = vadd.xlane.f32.xlu0 %v2323
        %v2325 = vpop.xlane.xlu0 %2324
        %v2326 = vsel %vm2256, %v2304, 0.0
        %2327 = vadd.xlane.f32.xlu0 %v2326
        %v2328 = vpop.xlane.xlu0 %2327
        %v2329 = vrcp.pop %v2307
        %v2330 = vrcp.pop %v2310
        %v2331 = vrcp.pop %v2313
        %v2332 = vrcp.pop %v2316
        %v2333 = vrcp.pop %v2319
        %v2334 = vrcp.pop %v2322
        %v2335 = vrcp.pop %v2325
        %v2336 = vrcp.pop %v2328
        %v2337 = vmul.f32 %v2290, %v2329
        %v2338 = vmul.f32 %v2292, %v2330
        %v2339 = vmul.f32 %v2294, %v2331
        %v2340 = vmul.f32 %v2296, %v2332
        %v2341 = vmul.f32 %v2298, %v2333
        %v2342 = vmul.f32 %v2300, %v2334
        %v2343 = vmul.f32 %v2302, %v2335
        %v2344 = vmul.f32 %v2304, %v2336
        %v2345 = vpack.c.bf16 %v2337, %v2337
        %v2346 = vpack.c.bf16 %v2338, %v2338
        %v2347 = vpack.c.bf16 %v2339, %v2339
        %v2348 = vpack.c.bf16 %v2340, %v2340
        %v2349 = vpack.c.bf16 %v2341, %v2341
        %v2350 = vpack.c.bf16 %v2342, %v2342
        %v2351 = vpack.c.bf16 %v2343, %v2343
        %v2352 = vpack.c.bf16 %v2344, %v2344
        %v2353 = vpack.c.bf16 %v1863, %v1863
        %v2354 = vpack.c.bf16 %v1864, %v1864
        %v2355 = vpack.c.bf16 %v1865, %v1865
        %v2356 = vpack.c.bf16 %v1866, %v1866
        %v2357 = vpack.c.bf16 %v1867, %v1867
        %v2358 = vpack.c.bf16 %v1868, %v1868
        %v2359 = vpack.c.bf16 %v1869, %v1869
        %v2360 = vpack.c.bf16 %v1870, %v1870
        %v2362 = vsel %vm2256, %v2345, 0
        %vm2364 = vcmask 1043456
        %v2366 = vsel %vm2364, %v2353, 0
        %2368 = vmatprep.subr.bf16.mxu0 0
        %2369 = vmatpush1.bf16.msra.mxu0 %v2366
        %2370 = vmatprep.subr.bf16.mxu0 0
        %2371 = vmatpush1.bf16.msra.mxu0 0
        %2372 = vmatprep.subr.bf16.mxu0 0
        %2373 = vmatpush1.bf16.msra.mxu0 0
        %2374 = vmatprep.subr.bf16.mxu0 0
        %2375 = vmatpush1.bf16.msra.mxu0 0
        %2376 = vmatprep.subr.bf16.mxu0 0
        %2377 = vmatpush1.bf16.msra.mxu0 0
        %2378 = vmatprep.subr.bf16.mxu0 0
        %2379 = vmatpush1.bf16.msra.mxu0 0
        %2380 = vmatprep.subr.bf16.mxu0 0
        %2381 = vmatpush1.bf16.msra.mxu0 0
        %2382 = vmatprep.subr.bf16.mxu0 0
        %2383 = vmatpush1.bf16.msra.mxu0 0
        %2384 = vmatprep.subr.bf16.mxu0 0
        %2385 = vmatpush1.bf16.msra.mxu0 0
        %2386 = vmatprep.subr.bf16.mxu0 0
        %2387 = vmatpush1.bf16.msra.mxu0 0
        %2388 = vmatprep.subr.bf16.mxu0 0
        %2389 = vmatpush1.bf16.msra.mxu0 0
        %2390 = vmatprep.subr.bf16.mxu0 0
        %2391 = vmatpush1.bf16.msra.mxu0 0
        %2392 = vmatprep.subr.bf16.mxu0 0
        %2393 = vmatpush1.bf16.msra.mxu0 0
        %2394 = vmatprep.subr.bf16.mxu0 0
        %2395 = vmatpush1.bf16.msra.mxu0 0
        %2396 = vmatprep.subr.bf16.mxu0 0
        %2397 = vmatpush1.bf16.msra.mxu0 0
        %2398 = vmatprep.subr.bf16.mxu0 0
        %2399 = vmatpush1.bf16.msra.mxu0 0
        %2400 = vmatprep.mubr.bf16.mxu0 0
        %2401 = vmatmul.mubr.bf16.gmra.mrb[0].mxu0 %v2362
        %v2402 = vpop.f32.mrb[0].mxu0
        %v2403 = vadd.f32 0.0, %v2402
        %v2404 = vpop.f32.mrb[0].mxu0
        %v2405 = vpop.f32.mrb[0].mxu0
        %v2406 = vpop.f32.mrb[0].mxu0
        %2407 = vdwg.mxu0
        %v2409 = vsel %vm2256, %v2346, 0
        %v2412 = vsel %vm2364, %v2354, 0
        %2414 = vmatprep.subr.bf16.mxu0 0
        %2415 = vmatpush1.bf16.msra.mxu0 %v2412
        %2416 = vmatprep.subr.bf16.mxu0 0
        %2417 = vmatpush1.bf16.msra.mxu0 0
        %2418 = vmatprep.subr.bf16.mxu0 0
        %2419 = vmatpush1.bf16.msra.mxu0 0
        %2420 = vmatprep.subr.bf16.mxu0 0
        %2421 = vmatpush1.bf16.msra.mxu0 0
        %2422 = vmatprep.subr.bf16.mxu0 0
        %2423 = vmatpush1.bf16.msra.mxu0 0
        %2424 = vmatprep.subr.bf16.mxu0 0
        %2425 = vmatpush1.bf16.msra.mxu0 0
        %2426 = vmatprep.subr.bf16.mxu0 0
        %2427 = vmatpush1.bf16.msra.mxu0 0
        %2428 = vmatprep.subr.bf16.mxu0 0
        %2429 = vmatpush1.bf16.msra.mxu0 0
        %2430 = vmatprep.subr.bf16.mxu0 0
        %2431 = vmatpush1.bf16.msra.mxu0 0
        %2432 = vmatprep.subr.bf16.mxu0 0
        %2433 = vmatpush1.bf16.msra.mxu0 0
        %2434 = vmatprep.subr.bf16.mxu0 0
        %2435 = vmatpush1.bf16.msra.mxu0 0
        %2436 = vmatprep.subr.bf16.mxu0 0
        %2437 = vmatpush1.bf16.msra.mxu0 0
        %2438 = vmatprep.subr.bf16.mxu0 0
        %2439 = vmatpush1.bf16.msra.mxu0 0
        %2440 = vmatprep.subr.bf16.mxu0 0
        %2441 = vmatpush1.bf16.msra.mxu0 0
        %2442 = vmatprep.subr.bf16.mxu0 0
        %2443 = vmatpush1.bf16.msra.mxu0 0
        %2444 = vmatprep.subr.bf16.mxu0 0
        %2445 = vmatpush1.bf16.msra.mxu0 0
        %2446 = vmatprep.mubr.bf16.mxu0 0
        %2447 = vmatmul.mubr.bf16.gmra.mrb[0].mxu0 %v2409
        %v2448 = vpop.f32.mrb[0].mxu0
        %v2449 = vadd.f32 0.0, %v2448
        %v2450 = vpop.f32.mrb[0].mxu0
        %v2451 = vpop.f32.mrb[0].mxu0
        %v2452 = vpop.f32.mrb[0].mxu0
        %2453 = vdwg.mxu0
        %v2455 = vsel %vm2256, %v2347, 0
        %v2458 = vsel %vm2364, %v2355, 0
        %2460 = vmatprep.subr.bf16.mxu0 0
        %2461 = vmatpush1.bf16.msra.mxu0 %v2458
        %2462 = vmatprep.subr.bf16.mxu0 0
        %2463 = vmatpush1.bf16.msra.mxu0 0
        %2464 = vmatprep.subr.bf16.mxu0 0
        %2465 = vmatpush1.bf16.msra.mxu0 0
        %2466 = vmatprep.subr.bf16.mxu0 0
        %2467 = vmatpush1.bf16.msra.mxu0 0
        %2468 = vmatprep.subr.bf16.mxu0 0
        %2469 = vmatpush1.bf16.msra.mxu0 0
        %2470 = vmatprep.subr.bf16.mxu0 0
        %2471 = vmatpush1.bf16.msra.mxu0 0
        %2472 = vmatprep.subr.bf16.mxu0 0
        %2473 = vmatpush1.bf16.msra.mxu0 0
        %2474 = vmatprep.subr.bf16.mxu0 0
        %2475 = vmatpush1.bf16.msra.mxu0 0
        %2476 = vmatprep.subr.bf16.mxu0 0
        %2477 = vmatpush1.bf16.msra.mxu0 0
        %2478 = vmatprep.subr.bf16.mxu0 0
        %2479 = vmatpush1.bf16.msra.mxu0 0
        %2480 = vmatprep.subr.bf16.mxu0 0
        %2481 = vmatpush1.bf16.msra.mxu0 0
        %2482 = vmatprep.subr.bf16.mxu0 0
        %2483 = vmatpush1.bf16.msra.mxu0 0
        %2484 = vmatprep.subr.bf16.mxu0 0
        %2485 = vmatpush1.bf16.msra.mxu0 0
        %2486 = vmatprep.subr.bf16.mxu0 0
        %2487 = vmatpush1.bf16.msra.mxu0 0
        %2488 = vmatprep.subr.bf16.mxu0 0
        %2489 = vmatpush1.bf16.msra.mxu0 0
        %2490 = vmatprep.subr.bf16.mxu0 0
        %2491 = vmatpush1.bf16.msra.mxu0 0
        %2492 = vmatprep.mubr.bf16.mxu0 0
        %2493 = vmatmul.mubr.bf16.gmra.mrb[0].mxu0 %v2455
        %v2494 = vpop.f32.mrb[0].mxu0
        %v2495 = vadd.f32 0.0, %v2494
        %v2496 = vpop.f32.mrb[0].mxu0
        %v2497 = vpop.f32.mrb[0].mxu0
        %v2498 = vpop.f32.mrb[0].mxu0
        %2499 = vdwg.mxu0
        %v2501 = vsel %vm2256, %v2348, 0
        %v2504 = vsel %vm2364, %v2356, 0
        %2506 = vmatprep.subr.bf16.mxu0 0
        %2507 = vmatpush1.bf16.msra.mxu0 %v2504
        %2508 = vmatprep.subr.bf16.mxu0 0
        %2509 = vmatpush1.bf16.msra.mxu0 0
        %2510 = vmatprep.subr.bf16.mxu0 0
        %2511 = vmatpush1.bf16.msra.mxu0 0
        %2512 = vmatprep.subr.bf16.mxu0 0
        %2513 = vmatpush1.bf16.msra.mxu0 0
        %2514 = vmatprep.subr.bf16.mxu0 0
        %2515 = vmatpush1.bf16.msra.mxu0 0
        %2516 = vmatprep.subr.bf16.mxu0 0
        %2517 = vmatpush1.bf16.msra.mxu0 0
        %2518 = vmatprep.subr.bf16.mxu0 0
        %2519 = vmatpush1.bf16.msra.mxu0 0
        %2520 = vmatprep.subr.bf16.mxu0 0
        %2521 = vmatpush1.bf16.msra.mxu0 0
        %2522 = vmatprep.subr.bf16.mxu0 0
        %2523 = vmatpush1.bf16.msra.mxu0 0
        %2524 = vmatprep.subr.bf16.mxu0 0
        %2525 = vmatpush1.bf16.msra.mxu0 0
        %2526 = vmatprep.subr.bf16.mxu0 0
        %2527 = vmatpush1.bf16.msra.mxu0 0
        %2528 = vmatprep.subr.bf16.mxu0 0
        %2529 = vmatpush1.bf16.msra.mxu0 0
        %2530 = vmatprep.subr.bf16.mxu0 0
        %2531 = vmatpush1.bf16.msra.mxu0 0
        %2532 = vmatprep.subr.bf16.mxu0 0
        %2533 = vmatpush1.bf16.msra.mxu0 0
        %2534 = vmatprep.subr.bf16.mxu0 0
        %2535 = vmatpush1.bf16.msra.mxu0 0
        %2536 = vmatprep.subr.bf16.mxu0 0
        %2537 = vmatpush1.bf16.msra.mxu0 0
        %2538 = vmatprep.mubr.bf16.mxu0 0
        %2539 = vmatmul.mubr.bf16.gmra.mrb[0].mxu0 %v2501
        %v2540 = vpop.f32.mrb[0].mxu0
        %v2541 = vadd.f32 0.0, %v2540
        %v2542 = vpop.f32.mrb[0].mxu0
        %v2543 = vpop.f32.mrb[0].mxu0
        %v2544 = vpop.f32.mrb[0].mxu0
        %2545 = vdwg.mxu0
        %v2547 = vsel %vm2256, %v2349, 0
        %v2550 = vsel %vm2364, %v2357, 0
        %2552 = vmatprep.subr.bf16.mxu0 0
        %2553 = vmatpush1.bf16.msra.mxu0 %v2550
        %2554 = vmatprep.subr.bf16.mxu0 0
        %2555 = vmatpush1.bf16.msra.mxu0 0
        %2556 = vmatprep.subr.bf16.mxu0 0
        %2557 = vmatpush1.bf16.msra.mxu0 0
        %2558 = vmatprep.subr.bf16.mxu0 0
        %2559 = vmatpush1.bf16.msra.mxu0 0
        %2560 = vmatprep.subr.bf16.mxu0 0
        %2561 = vmatpush1.bf16.msra.mxu0 0
        %2562 = vmatprep.subr.bf16.mxu0 0
        %2563 = vmatpush1.bf16.msra.mxu0 0
        %2564 = vmatprep.subr.bf16.mxu0 0
        %2565 = vmatpush1.bf16.msra.mxu0 0
        %2566 = vmatprep.subr.bf16.mxu0 0
        %2567 = vmatpush1.bf16.msra.mxu0 0
        %2568 = vmatprep.subr.bf16.mxu0 0
        %2569 = vmatpush1.bf16.msra.mxu0 0
        %2570 = vmatprep.subr.bf16.mxu0 0
        %2571 = vmatpush1.bf16.msra.mxu0 0
        %2572 = vmatprep.subr.bf16.mxu0 0
        %2573 = vmatpush1.bf16.msra.mxu0 0
        %2574 = vmatprep.subr.bf16.mxu0 0
        %2575 = vmatpush1.bf16.msra.mxu0 0
        %2576 = vmatprep.subr.bf16.mxu0 0
        %2577 = vmatpush1.bf16.msra.mxu0 0
        %2578 = vmatprep.subr.bf16.mxu0 0
        %2579 = vmatpush1.bf16.msra.mxu0 0
        %2580 = vmatprep.subr.bf16.mxu0 0
        %2581 = vmatpush1.bf16.msra.mxu0 0
        %2582 = vmatprep.subr.bf16.mxu0 0
        %2583 = vmatpush1.bf16.msra.mxu0 0
        %2584 = vmatprep.mubr.bf16.mxu0 0
        %2585 = vmatmul.mubr.bf16.gmra.mrb[0].mxu0 %v2547
        %v2586 = vpop.f32.mrb[0].mxu0
        %v2587 = vadd.f32 0.0, %v2586
        %v2588 = vpop.f32.mrb[0].mxu0
        %v2589 = vpop.f32.mrb[0].mxu0
        %v2590 = vpop.f32.mrb[0].mxu0
        %2591 = vdwg.mxu0
        %v2593 = vsel %vm2256, %v2350, 0
        %v2596 = vsel %vm2364, %v2358, 0
        %2598 = vmatprep.subr.bf16.mxu0 0
        %2599 = vmatpush1.bf16.msra.mxu0 %v2596
        %2600 = vmatprep.subr.bf16.mxu0 0
        %2601 = vmatpush1.bf16.msra.mxu0 0
        %2602 = vmatprep.subr.bf16.mxu0 0
        %2603 = vmatpush1.bf16.msra.mxu0 0
        %2604 = vmatprep.subr.bf16.mxu0 0
        %2605 = vmatpush1.bf16.msra.mxu0 0
        %2606 = vmatprep.subr.bf16.mxu0 0
        %2607 = vmatpush1.bf16.msra.mxu0 0
        %2608 = vmatprep.subr.bf16.mxu0 0
        %2609 = vmatpush1.bf16.msra.mxu0 0
        %2610 = vmatprep.subr.bf16.mxu0 0
        %2611 = vmatpush1.bf16.msra.mxu0 0
        %2612 = vmatprep.subr.bf16.mxu0 0
        %2613 = vmatpush1.bf16.msra.mxu0 0
        %2614 = vmatprep.subr.bf16.mxu0 0
        %2615 = vmatpush1.bf16.msra.mxu0 0
        %2616 = vmatprep.subr.bf16.mxu0 0
        %2617 = vmatpush1.bf16.msra.mxu0 0
        %2618 = vmatprep.subr.bf16.mxu0 0
        %2619 = vmatpush1.bf16.msra.mxu0 0
        %2620 = vmatprep.subr.bf16.mxu0 0
        %2621 = vmatpush1.bf16.msra.mxu0 0
        %2622 = vmatprep.subr.bf16.mxu0 0
        %2623 = vmatpush1.bf16.msra.mxu0 0
        %2624 = vmatprep.subr.bf16.mxu0 0
        %2625 = vmatpush1.bf16.msra.mxu0 0
        %2626 = vmatprep.subr.bf16.mxu0 0
        %2627 = vmatpush1.bf16.msra.mxu0 0
        %2628 = vmatprep.subr.bf16.mxu0 0
        %2629 = vmatpush1.bf16.msra.mxu0 0
        %2630 = vmatprep.mubr.bf16.mxu0 0
        %2631 = vmatmul.mubr.bf16.gmra.mrb[0].mxu0 %v2593
        %v2632 = vpop.f32.mrb[0].mxu0
        %v2633 = vadd.f32 0.0, %v2632
        %v2634 = vpop.f32.mrb[0].mxu0
        %v2635 = vpop.f32.mrb[0].mxu0
        %v2636 = vpop.f32.mrb[0].mxu0
        %2637 = vdwg.mxu0
        %v2639 = vsel %vm2256, %v2351, 0
        %v2642 = vsel %vm2364, %v2359, 0
        %2644 = vmatprep.subr.bf16.mxu0 0
        %2645 = vmatpush1.bf16.msra.mxu0 %v2642
        %2646 = vmatprep.subr.bf16.mxu0 0
        %2647 = vmatpush1.bf16.msra.mxu0 0
        %2648 = vmatprep.subr.bf16.mxu0 0
        %2649 = vmatpush1.bf16.msra.mxu0 0
        %2650 = vmatprep.subr.bf16.mxu0 0
        %2651 = vmatpush1.bf16.msra.mxu0 0
        %2652 = vmatprep.subr.bf16.mxu0 0
        %2653 = vmatpush1.bf16.msra.mxu0 0
        %2654 = vmatprep.subr.bf16.mxu0 0
        %2655 = vmatpush1.bf16.msra.mxu0 0
        %2656 = vmatprep.subr.bf16.mxu0 0
        %2657 = vmatpush1.bf16.msra.mxu0 0
        %2658 = vmatprep.subr.bf16.mxu0 0
        %2659 = vmatpush1.bf16.msra.mxu0 0
        %2660 = vmatprep.subr.bf16.mxu0 0
        %2661 = vmatpush1.bf16.msra.mxu0 0
        %2662 = vmatprep.subr.bf16.mxu0 0
        %2663 = vmatpush1.bf16.msra.mxu0 0
        %2664 = vmatprep.subr.bf16.mxu0 0
        %2665 = vmatpush1.bf16.msra.mxu0 0
        %2666 = vmatprep.subr.bf16.mxu0 0
        %2667 = vmatpush1.bf16.msra.mxu0 0
        %2668 = vmatprep.subr.bf16.mxu0 0
        %2669 = vmatpush1.bf16.msra.mxu0 0
        %2670 = vmatprep.subr.bf16.mxu0 0
        %2671 = vmatpush1.bf16.msra.mxu0 0
        %2672 = vmatprep.subr.bf16.mxu0 0
        %2673 = vmatpush1.bf16.msra.mxu0 0
        %2674 = vmatprep.subr.bf16.mxu0 0
        %2675 = vmatpush1.bf16.msra.mxu0 0
        %2676 = vmatprep.mubr.bf16.mxu0 0
        %2677 = vmatmul.mubr.bf16.gmra.mrb[0].mxu0 %v2639
        %v2678 = vpop.f32.mrb[0].mxu0
        %v2679 = vadd.f32 0.0, %v2678
        %v2680 = vpop.f32.mrb[0].mxu0
        %v2681 = vpop.f32.mrb[0].mxu0
        %v2682 = vpop.f32.mrb[0].mxu0
        %2683 = vdwg.mxu0
        %v2685 = vsel %vm2256, %v2352, 0
        %v2688 = vsel %vm2364, %v2360, 0
        %2690 = vmatprep.subr.bf16.mxu0 0
        %2691 = vmatpush1.bf16.msra.mxu0 %v2688
        %2692 = vmatprep.subr.bf16.mxu0 0
        %2693 = vmatpush1.bf16.msra.mxu0 0
        %2694 = vmatprep.subr.bf16.mxu0 0
        %2695 = vmatpush1.bf16.msra.mxu0 0
        %2696 = vmatprep.subr.bf16.mxu0 0
        %2697 = vmatpush1.bf16.msra.mxu0 0
        %2698 = vmatprep.subr.bf16.mxu0 0
        %2699 = vmatpush1.bf16.msra.mxu0 0
        %2700 = vmatprep.subr.bf16.mxu0 0
        %2701 = vmatpush1.bf16.msra.mxu0 0
        %2702 = vmatprep.subr.bf16.mxu0 0
        %2703 = vmatpush1.bf16.msra.mxu0 0
        %2704 = vmatprep.subr.bf16.mxu0 0
        %2705 = vmatpush1.bf16.msra.mxu0 0
        %2706 = vmatprep.subr.bf16.mxu0 0
        %2707 = vmatpush1.bf16.msra.mxu0 0
        %2708 = vmatprep.subr.bf16.mxu0 0
        %2709 = vmatpush1.bf16.msra.mxu0 0
        %2710 = vmatprep.subr.bf16.mxu0 0
        %2711 = vmatpush1.bf16.msra.mxu0 0
        %2712 = vmatprep.subr.bf16.mxu0 0
        %2713 = vmatpush1.bf16.msra.mxu0 0
        %2714 = vmatprep.subr.bf16.mxu0 0
        %2715 = vmatpush1.bf16.msra.mxu0 0
        %2716 = vmatprep.subr.bf16.mxu0 0
        %2717 = vmatpush1.bf16.msra.mxu0 0
        %2718 = vmatprep.subr.bf16.mxu0 0
        %2719 = vmatpush1.bf16.msra.mxu0 0
        %2720 = vmatprep.subr.bf16.mxu0 0
        %2721 = vmatpush1.bf16.msra.mxu0 0
        %2722 = vmatprep.mubr.bf16.mxu0 0
        %2723 = vmatmul.mubr.bf16.gmra.mrb[0].mxu0 %v2685
        %v2724 = vpop.f32.mrb[0].mxu0
        %v2725 = vadd.f32 0.0, %v2724
        %v2726 = vpop.f32.mrb[0].mxu0
        %v2727 = vpop.f32.mrb[0].mxu0
        %v2728 = vpop.f32.mrb[0].mxu0
        %2729 = vdwg.mxu0
        %v2730 = vcombine.low %v2403, %v2495
        %v2731 = vcombine.high %v2403, %v2495
        %v2733 = vunpack.c.l.s4 1983009808
        %v2734 = vunpack.c.0.s8 %v2733
        %v2735 = vlaneseq
        %v2736 = vshrl.u32 %v2735, 7
        %v2737 = vsub.s32 %v2734, %v2736
        %v2738 = vrot.slane %v2730, %v2737
        %v2740 = vunpack.c.l.s4 1983009808
        %v2741 = vunpack.c.0.s8 %v2740
        %v2742 = vlaneseq
        %v2743 = vshrl.u32 %v2742, 7
        %v2744 = vsub.s32 %v2741, %v2743
        %v2745 = vrot.slane %v2731, %v2744
        %v2746 = vcombine.low %v2449, %v2541
        %v2747 = vcombine.high %v2449, %v2541
        %v2749 = vunpack.c.l.s4 1983009808
        %v2750 = vunpack.c.0.s8 %v2749
        %v2751 = vlaneseq
        %v2752 = vshrl.u32 %v2751, 7
        %v2753 = vsub.s32 %v2750, %v2752
        %v2754 = vrot.slane %v2746, %v2753
        %v2756 = vunpack.c.l.s4 1983009808
        %v2757 = vunpack.c.0.s8 %v2756
        %v2758 = vlaneseq
        %v2759 = vshrl.u32 %v2758, 7
        %v2760 = vsub.s32 %v2757, %v2759
        %v2761 = vrot.slane %v2747, %v2760
        %v2762 = vcombine.low %v2587, %v2679
        %v2763 = vcombine.high %v2587, %v2679
        %v2765 = vunpack.c.l.s4 1983009808
        %v2766 = vunpack.c.0.s8 %v2765
        %v2767 = vlaneseq
        %v2768 = vshrl.u32 %v2767, 7
        %v2769 = vsub.s32 %v2766, %v2768
        %v2770 = vrot.slane %v2762, %v2769
        %v2772 = vunpack.c.l.s4 1983009808
        %v2773 = vunpack.c.0.s8 %v2772
        %v2774 = vlaneseq
        %v2775 = vshrl.u32 %v2774, 7
        %v2776 = vsub.s32 %v2773, %v2775
        %v2777 = vrot.slane %v2763, %v2776
        %v2778 = vcombine.low %v2633, %v2725
        %v2779 = vcombine.high %v2633, %v2725
        %v2781 = vunpack.c.l.s4 1983009808
        %v2782 = vunpack.c.0.s8 %v2781
        %v2783 = vlaneseq
        %v2784 = vshrl.u32 %v2783, 7
        %v2785 = vsub.s32 %v2782, %v2784
        %v2786 = vrot.slane %v2778, %v2785
        %v2788 = vunpack.c.l.s4 1983009808
        %v2789 = vunpack.c.0.s8 %v2788
        %v2790 = vlaneseq
        %v2791 = vshrl.u32 %v2790, 7
        %v2792 = vsub.s32 %v2789, %v2791
        %v2793 = vrot.slane %v2779, %v2792
        %v2794 = vcombine.low %v2738, %v2754
        %v2795 = vcombine.high %v2738, %v2754
        %v2797 = vunpack.c.l.s4 1934713408
        %v2798 = vunpack.c.0.s8 %v2797
        %v2799 = vlaneseq
        %v2800 = vshrl.u32 %v2799, 7
        %v2801 = vsub.s32 %v2798, %v2800
        %v2802 = vrot.slane %v2794, %v2801
        %v2804 = vunpack.c.l.s4 1934713408
        %v2805 = vunpack.c.0.s8 %v2804
        %v2806 = vlaneseq
        %v2807 = vshrl.u32 %v2806, 7
        %v2808 = vsub.s32 %v2805, %v2807
        %v2809 = vrot.slane %v2795, %v2808
        %v2810 = vcombine.low %v2745, %v2761
        %v2811 = vcombine.high %v2745, %v2761
        %v2813 = vunpack.c.l.s4 1934713408
        %v2814 = vunpack.c.0.s8 %v2813
        %v2815 = vlaneseq
        %v2816 = vshrl.u32 %v2815, 7
        %v2817 = vsub.s32 %v2814, %v2816
        %v2818 = vrot.slane %v2810, %v2817
        %v2820 = vunpack.c.l.s4 1934713408
        %v2821 = vunpack.c.0.s8 %v2820
        %v2822 = vlaneseq
        %v2823 = vshrl.u32 %v2822, 7
        %v2824 = vsub.s32 %v2821, %v2823
        %v2825 = vrot.slane %v2811, %v2824
        %v2826 = vcombine.low %v2770, %v2786
        %v2827 = vcombine.high %v2770, %v2786
        %v2829 = vunpack.c.l.s4 1934713408
        %v2830 = vunpack.c.0.s8 %v2829
        %v2831 = vlaneseq
        %v2832 = vshrl.u32 %v2831, 7
        %v2833 = vsub.s32 %v2830, %v2832
        %v2834 = vrot.slane %v2826, %v2833
        %v2836 = vunpack.c.l.s4 1934713408
        %v2837 = vunpack.c.0.s8 %v2836
        %v2838 = vlaneseq
        %v2839 = vshrl.u32 %v2838, 7
        %v2840 = vsub.s32 %v2837, %v2839
        %v2841 = vrot.slane %v2827, %v2840
        %v2842 = vcombine.low %v2777, %v2793
        %v2843 = vcombine.high %v2777, %v2793
        %v2845 = vunpack.c.l.s4 1934713408
        %v2846 = vunpack.c.0.s8 %v2845
        %v2847 = vlaneseq
        %v2848 = vshrl.u32 %v2847, 7
        %v2849 = vsub.s32 %v2846, %v2848
        %v2850 = vrot.slane %v2842, %v2849
        %v2852 = vunpack.c.l.s4 1934713408
        %v2853 = vunpack.c.0.s8 %v2852
        %v2854 = vlaneseq
        %v2855 = vshrl.u32 %v2854, 7
        %v2856 = vsub.s32 %v2853, %v2855
        %v2857 = vrot.slane %v2843, %v2856
        %v2858 = vcombine.low %v2802, %v2834
        %v2859 = vcombine.high %v2802, %v2834
        %v2860 = vcombine.low %v2809, %v2841
        %v2861 = vcombine.high %v2809, %v2841
        %v2862 = vcombine.low %v2818, %v2850
        %v2863 = vcombine.high %v2818, %v2850
        %v2864 = vcombine.low %v2825, %v2857
        %v2865 = vcombine.high %v2825, %v2857
        %v2866 = vcombine.low %v2858, %v2860
        %v2867 = vcombine.high %v2858, %v2860
        %v2869 = vunpack.c.l.s4 1983009808
        %v2870 = vunpack.c.0.s8 %v2869
        %v2871 = vlaneseq
        %v2872 = vshrl.u32 %v2871, 7
        %v2873 = vsub.s32 %v2870, %v2872
        %v2874 = vrot.slane %v2866, %v2873
        %v2876 = vunpack.c.l.s4 1983009808
        %v2877 = vunpack.c.0.s8 %v2876
        %v2878 = vlaneseq
        %v2879 = vshrl.u32 %v2878, 7
        %v2880 = vsub.s32 %v2877, %v2879
        %v2881 = vrot.slane %v2867, %v2880
        %v2882 = vcombine.low %v2859, %v2861
        %v2883 = vcombine.high %v2859, %v2861
        %v2885 = vunpack.c.l.s4 1983009808
        %v2886 = vunpack.c.0.s8 %v2885
        %v2887 = vlaneseq
        %v2888 = vshrl.u32 %v2887, 7
        %v2889 = vsub.s32 %v2886, %v2888
        %v2890 = vrot.slane %v2882, %v2889
        %v2892 = vunpack.c.l.s4 1983009808
        %v2893 = vunpack.c.0.s8 %v2892
        %v2894 = vlaneseq
        %v2895 = vshrl.u32 %v2894, 7
        %v2896 = vsub.s32 %v2893, %v2895
        %v2897 = vrot.slane %v2883, %v2896
        %v2898 = vcombine.low %v2862, %v2864
        %v2899 = vcombine.high %v2862, %v2864
        %v2901 = vunpack.c.l.s4 1983009808
        %v2902 = vunpack.c.0.s8 %v2901
        %v2903 = vlaneseq
        %v2904 = vshrl.u32 %v2903, 7
        %v2905 = vsub.s32 %v2902, %v2904
        %v2906 = vrot.slane %v2898, %v2905
        %v2908 = vunpack.c.l.s4 1983009808
        %v2909 = vunpack.c.0.s8 %v2908
        %v2910 = vlaneseq
        %v2911 = vshrl.u32 %v2910, 7
        %v2912 = vsub.s32 %v2909, %v2911
        %v2913 = vrot.slane %v2899, %v2912
        %v2914 = vcombine.low %v2863, %v2865
        %v2915 = vcombine.high %v2863, %v2865
        %v2917 = vunpack.c.l.s4 1983009808
        %v2918 = vunpack.c.0.s8 %v2917
        %v2919 = vlaneseq
        %v2920 = vshrl.u32 %v2919, 7
        %v2921 = vsub.s32 %v2918, %v2920
        %v2922 = vrot.slane %v2914, %v2921
        %v2924 = vunpack.c.l.s4 1983009808
        %v2925 = vunpack.c.0.s8 %v2924
        %v2926 = vlaneseq
        %v2927 = vshrl.u32 %v2926, 7
        %v2928 = vsub.s32 %v2925, %v2927
        %v2929 = vrot.slane %v2915, %v2928
        %v2930 = vcombine.low %v2874, %v2890
        %v2931 = vcombine.high %v2874, %v2890
        %v2933 = vunpack.c.l.s4 1934713408
        %v2934 = vunpack.c.0.s8 %v2933
        %v2935 = vlaneseq
        %v2936 = vshrl.u32 %v2935, 7
        %v2937 = vsub.s32 %v2934, %v2936
        %v2938 = vrot.slane %v2930, %v2937
        %v2940 = vunpack.c.l.s4 1934713408
        %v2941 = vunpack.c.0.s8 %v2940
        %v2942 = vlaneseq
        %v2943 = vshrl.u32 %v2942, 7
        %v2944 = vsub.s32 %v2941, %v2943
        %v2945 = vrot.slane %v2931, %v2944
        %v2946 = vcombine.low %v2881, %v2897
        %v2947 = vcombine.high %v2881, %v2897
        %v2949 = vunpack.c.l.s4 1934713408
        %v2950 = vunpack.c.0.s8 %v2949
        %v2951 = vlaneseq
        %v2952 = vshrl.u32 %v2951, 7
        %v2953 = vsub.s32 %v2950, %v2952
        %v2954 = vrot.slane %v2946, %v2953
        %v2956 = vunpack.c.l.s4 1934713408
        %v2957 = vunpack.c.0.s8 %v2956
        %v2958 = vlaneseq
        %v2959 = vshrl.u32 %v2958, 7
        %v2960 = vsub.s32 %v2957, %v2959
        %v2961 = vrot.slane %v2947, %v2960
        %v2962 = vcombine.low %v2906, %v2922
        %v2963 = vcombine.high %v2906, %v2922
        %v2965 = vunpack.c.l.s4 1934713408
        %v2966 = vunpack.c.0.s8 %v2965
        %v2967 = vlaneseq
        %v2968 = vshrl.u32 %v2967, 7
        %v2969 = vsub.s32 %v2966, %v2968
        %v2970 = vrot.slane %v2962, %v2969
        %v2972 = vunpack.c.l.s4 1934713408
        %v2973 = vunpack.c.0.s8 %v2972
        %v2974 = vlaneseq
        %v2975 = vshrl.u32 %v2974, 7
        %v2976 = vsub.s32 %v2973, %v2975
        %v2977 = vrot.slane %v2963, %v2976
        %v2978 = vcombine.low %v2913, %v2929
        %v2979 = vcombine.high %v2913, %v2929
        %v2981 = vunpack.c.l.s4 1934713408
        %v2982 = vunpack.c.0.s8 %v2981
        %v2983 = vlaneseq
        %v2984 = vshrl.u32 %v2983, 7
        %v2985 = vsub.s32 %v2982, %v2984
        %v2986 = vrot.slane %v2978, %v2985
        %v2988 = vunpack.c.l.s4 1934713408
        %v2989 = vunpack.c.0.s8 %v2988
        %v2990 = vlaneseq
        %v2991 = vshrl.u32 %v2990, 7
        %v2992 = vsub.s32 %v2989, %v2991
        %v2993 = vrot.slane %v2979, %v2992
        %v2994 = vcombine.low %v2938, %v2970
        %v2995 = vcombine.high %v2938, %v2970
        %v2996 = vcombine.low %v2945, %v2977
        %v2997 = vcombine.high %v2945, %v2977
        %v2998 = vcombine.low %v2954, %v2986
        %v2999 = vcombine.high %v2954, %v2986
        %v3000 = vcombine.low %v2961, %v2993
        %v3001 = vcombine.high %v2961, %v2993
        %3003 = vrot.lane.b32.xlu0 %v2995, 16
        %v3004 = vpop.permute.xlu0 %3003
        %3007 = vrot.lane.b32.xlu0 %v2996, 32
        %v3008 = vpop.permute.xlu0 %3007
        %3011 = vrot.lane.b32.xlu0 %v2997, 48
        %v3012 = vpop.permute.xlu0 %3011
        %3015 = vrot.lane.b32.xlu0 %v2998, 64
        %v3016 = vpop.permute.xlu0 %3015
        %3019 = vrot.lane.b32.xlu0 %v2999, 80
        %v3020 = vpop.permute.xlu0 %3019
        %3023 = vrot.lane.b32.xlu0 %v3000, 96
        %v3024 = vpop.permute.xlu0 %3023
        %3027 = vrot.lane.b32.xlu0 %v3001, 112
        %v3028 = vpop.permute.xlu0 %3027
        %v3030 = vsel %vm1887, %v2994, %v3004
        %vm3031 = vcmask 261120
        %v3032 = vsel %vm3031, %v3030, %v3008
        %vm3033 = vcmask 392192
        %v3034 = vsel %vm3033, %v3032, %v3012
        %vm3035 = vcmask 523264
        %v3036 = vsel %vm3035, %v3034, %v3016
        %vm3037 = vcmask 654336
        %v3038 = vsel %vm3037, %v3036, %v3020
        %vm3039 = vcmask 785408
        %v3040 = vsel %vm3039, %v3038, %v3024
        %vm3041 = vcmask 916480
        %v3042 = vsel %vm3041, %v3040, %v3028
        %v3043 = vpack.c.bf16 %v3042, %v3042
        %v3044 = vld [vmem:[%s587] sm:$0xf]
        %v3045 = vld [vmem:[%s587 + $0x4] sm:$0xf]
        %v3046 = vld [vmem:[%s587 + $0x8] sm:$0xf]
        %v3047 = vld [vmem:[%s587 + $0xc] sm:$0xf]
        %v3048 = vld [vmem:[%s587 + $0x10] sm:$0xf]
        %v3049 = vld [vmem:[%s587 + $0x14] sm:$0xf]
        %v3050 = vld [vmem:[%s587 + $0x18] sm:$0xf]
        %v3051 = vld [vmem:[%s587 + $0x1c] sm:$0xf]
        %v3052 = vld [vmem:[%s587 + $0x20] sm:$0xf]
        %v3053 = vld [vmem:[%s587 + $0x24] sm:$0xf]
        %v3054 = vld [vmem:[%s587 + $0x28] sm:$0xf]
        %v3055 = vld [vmem:[%s587 + $0x2c] sm:$0xf]
        %v3056 = vld [vmem:[%s587 + $0x30] sm:$0xf]
        %v3057 = vld [vmem:[%s587 + $0x34] sm:$0xf]
        %v3058 = vld [vmem:[%s587 + $0x38] sm:$0xf]
        %v3059 = vld [vmem:[%s587 + $0x3c] sm:$0xf]
        %v3060 = vld [vmem:[%s702] sm:$0x1]
        %v3062 = vlaneseq
        %v3063 = vshrl.u32 %v3062, 7
        %v3064 = vsub.s32 0, %v3063
        %v3065 = vrot.slane %v3060, %v3064
        %v3083 = vunpack.c.l.b16 %v3044
        %v3084 = vunpack.c.l.b16 %v3045
        %v3085 = vunpack.c.l.b16 %v3046
        %v3086 = vunpack.c.l.b16 %v3047
        %v3087 = vunpack.c.l.b16 %v3048
        %v3088 = vunpack.c.l.b16 %v3049
        %v3089 = vunpack.c.l.b16 %v3050
        %v3090 = vunpack.c.l.b16 %v3051
        %v3091 = vunpack.c.l.b16 %v3052
        %v3092 = vunpack.c.l.b16 %v3053
        %v3093 = vunpack.c.l.b16 %v3054
        %v3094 = vunpack.c.l.b16 %v3055
        %v3095 = vunpack.c.l.b16 %v3056
        %v3096 = vunpack.c.l.b16 %v3057
        %v3097 = vunpack.c.l.b16 %v3058
        %v3098 = vunpack.c.l.b16 %v3059
        %v3099 = vpack.c.b16 %v3084, %v3083
        %v3100 = vpack.c.b16 %v3086, %v3085
        %v3101 = vpack.c.b16 %v3088, %v3087
        %v3102 = vpack.c.b16 %v3090, %v3089
        %v3103 = vpack.c.b16 %v3092, %v3091
        %v3104 = vpack.c.b16 %v3094, %v3093
        %v3105 = vpack.c.b16 %v3096, %v3095
        %v3106 = vpack.c.b16 %v3098, %v3097
        %3115 = vmatprep.subr.bf16.mxu0 0
        %3116 = vmatpush1.bf16.msra.mxu0 %v3099
        %3117 = vmatprep.subr.bf16.mxu0 0
        %3118 = vmatpush1.bf16.msra.mxu0 %v3100
        %3119 = vmatprep.subr.bf16.mxu0 0
        %3120 = vmatpush1.bf16.msra.mxu0 %v3101
        %3121 = vmatprep.subr.bf16.mxu0 0
        %3122 = vmatpush1.bf16.msra.mxu0 %v3102
        %3123 = vmatprep.subr.bf16.mxu0 0
        %3124 = vmatpush1.bf16.msra.mxu0 %v3103
        %3125 = vmatprep.subr.bf16.mxu0 0
        %3126 = vmatpush1.bf16.msra.mxu0 %v3104
        %3127 = vmatprep.subr.bf16.mxu0 0
        %3128 = vmatpush1.bf16.msra.mxu0 %v3105
        %3129 = vmatprep.subr.bf16.mxu0 0
        %3130 = vmatpush1.bf16.msra.mxu0 %v3106
        %3131 = vmatprep.subr.bf16.mxu0 0
        %3132 = vmatpush1.bf16.msra.mxu0 0
        %3133 = vmatprep.subr.bf16.mxu0 0
        %3134 = vmatpush1.bf16.msra.mxu0 0
        %3135 = vmatprep.subr.bf16.mxu0 0
        %3136 = vmatpush1.bf16.msra.mxu0 0
        %3137 = vmatprep.subr.bf16.mxu0 0
        %3138 = vmatpush1.bf16.msra.mxu0 0
        %3139 = vmatprep.subr.bf16.mxu0 0
        %3140 = vmatpush1.bf16.msra.mxu0 0
        %3141 = vmatprep.subr.bf16.mxu0 0
        %3142 = vmatpush1.bf16.msra.mxu0 0
        %3143 = vmatprep.subr.bf16.mxu0 0
        %3144 = vmatpush1.bf16.msra.mxu0 0
        %3145 = vmatprep.subr.bf16.mxu0 0
        %3146 = vmatpush1.bf16.msra.mxu0 0
        %3147 = vmatprep.mubr.bf16.mxu0 0
        %3148 = vmatmul.mubr.bf16.gmra.mrb[0].mxu0 %v3043
        %v3149 = vpop.f32.mrb[0].mxu0
        %v3150 = vadd.f32 %v3065, %v3149
        %v3151 = vpop.f32.mrb[0].mxu0
        %v3152 = vpop.f32.mrb[0].mxu0
        %v3153 = vpop.f32.mrb[0].mxu0
        %3154 = vdwg.mxu0
        %v3155 = vadd.f32 %v729, %v3150
        %3156 = vadd.xlane.f32.xlu0 %v3155
        %v3157 = vpop.xlane.xlu0 %3156
        %v3158 = vrcp.pop 128.0
        %v3159 = vmul.f32 %v3157, %v3158
        %v3160 = vmul.f32 %v3155, %v3155
        %3161 = vadd.xlane.f32.xlu0 %v3160
        %v3162 = vpop.xlane.xlu0 %3161
        %v3163 = vmul.f32 %v3162, %v3158
        %v3164 = vmul.f32 %v3159, %v3159
        %v3165 = vsub.f32 %v3163, %v3164
        %v3166 = vsub.f32 %v3155, %v3159
        %v3167 = vadd.f32 %v3165, 1e-05
        %v3168 = vrsqrt.pop %v3167
        %v3169 = vmul.f32 %v3166, %v3168
        %v3170 = vld [vmem:[%s705] sm:$0x1]
        %v3172 = vlaneseq
        %v3173 = vshrl.u32 %v3172, 7
        %v3174 = vsub.s32 0, %v3173
        %v3175 = vrot.slane %v3170, %v3174
        %v3177 = vmul.f32 %v3169, %v3175
        %v3178 = vld [vmem:[%s708] sm:$0x1]
        %v3180 = vlaneseq
        %v3181 = vshrl.u32 %v3180, 7
        %v3182 = vsub.s32 0, %v3181
        %v3183 = vrot.slane %v3178, %v3182
        %v3185 = vadd.f32 %v3177, %v3183
        %v3186 = vpack.c.bf16 %v3185, %v3185
        %v3187 = vld [vmem:[%s596] sm:$0xff]
        %v3188 = vld [vmem:[%s596 + $0x8] sm:$0xff]
        %v3189 = vld [vmem:[%s596 + $0x10] sm:$0xff]
        %v3190 = vld [vmem:[%s596 + $0x18] sm:$0xff]
        %v3191 = vld [vmem:[%s596 + $0x20] sm:$0xff]
        %v3192 = vld [vmem:[%s596 + $0x28] sm:$0xff]
        %v3193 = vld [vmem:[%s596 + $0x30] sm:$0xff]
        %v3194 = vld [vmem:[%s596 + $0x38] sm:$0xff]
        %v3195 = vld [vmem:[%s596 + $0x40] sm:$0xff]
        %v3196 = vld [vmem:[%s596 + $0x48] sm:$0xff]
        %v3197 = vld [vmem:[%s596 + $0x50] sm:$0xff]
        %v3198 = vld [vmem:[%s596 + $0x58] sm:$0xff]
        %v3199 = vld [vmem:[%s596 + $0x60] sm:$0xff]
        %v3200 = vld [vmem:[%s596 + $0x68] sm:$0xff]
        %v3201 = vld [vmem:[%s596 + $0x70] sm:$0xff]
        %v3202 = vld [vmem:[%s596 + $0x78] sm:$0xff]
        %v3203 = vld [vmem:[%s712] sm:$0x3]
        %v3205 = vlaneseq
        %v3206 = vshrl.u32 %v3205, 7
        %v3207 = vsub.s32 0, %v3206
        %v3208 = vrot.slane %v3203, %v3207
        %v3209 = vlaneseq
        %v3210 = vshrl.u32 %v3209, 7
        %v3211 = vsub.s32 1, %v3210
        %v3212 = vrot.slane %v3203, %v3211
        %v3231 = vunpack.c.l.b16 %v3187
        %v3232 = vunpack.c.h.b16 %v3187
        %v3233 = vunpack.c.l.b16 %v3188
        %v3234 = vunpack.c.h.b16 %v3188
        %v3235 = vunpack.c.l.b16 %v3189
        %v3236 = vunpack.c.h.b16 %v3189
        %v3237 = vunpack.c.l.b16 %v3190
        %v3238 = vunpack.c.h.b16 %v3190
        %v3239 = vunpack.c.l.b16 %v3191
        %v3240 = vunpack.c.h.b16 %v3191
        %v3241 = vunpack.c.l.b16 %v3192
        %v3242 = vunpack.c.h.b16 %v3192
        %v3243 = vunpack.c.l.b16 %v3193
        %v3244 = vunpack.c.h.b16 %v3193
        %v3245 = vunpack.c.l.b16 %v3194
        %v3246 = vunpack.c.h.b16 %v3194
        %v3247 = vunpack.c.l.b16 %v3195
        %v3248 = vunpack.c.h.b16 %v3195
        %v3249 = vunpack.c.l.b16 %v3196
        %v3250 = vunpack.c.h.b16 %v3196
        %v3251 = vunpack.c.l.b16 %v3197
        %v3252 = vunpack.c.h.b16 %v3197
        %v3253 = vunpack.c.l.b16 %v3198
        %v3254 = vunpack.c.h.b16 %v3198
        %v3255 = vunpack.c.l.b16 %v3199
        %v3256 = vunpack.c.h.b16 %v3199
        %v3257 = vunpack.c.l.b16 %v3200
        %v3258 = vunpack.c.h.b16 %v3200
        %v3259 = vunpack.c.l.b16 %v3201
        %v3260 = vunpack.c.h.b16 %v3201
        %v3261 = vunpack.c.l.b16 %v3202
        %v3262 = vunpack.c.h.b16 %v3202
        %v3263 = vpack.c.b16 %v3233, %v3231
        %v3264 = vpack.c.b16 %v3234, %v3232
        %v3265 = vpack.c.b16 %v3237, %v3235
        %v3266 = vpack.c.b16 %v3238, %v3236
        %v3267 = vpack.c.b16 %v3241, %v3239
        %v3268 = vpack.c.b16 %v3242, %v3240
        %v3269 = vpack.c.b16 %v3245, %v3243
        %v3270 = vpack.c.b16 %v3246, %v3244
        %v3271 = vpack.c.b16 %v3249, %v3247
        %v3272 = vpack.c.b16 %v3250, %v3248
        %v3273 = vpack.c.b16 %v3253, %v3251
        %v3274 = vpack.c.b16 %v3254, %v3252
        %v3275 = vpack.c.b16 %v3257, %v3255
        %v3276 = vpack.c.b16 %v3258, %v3256
        %v3277 = vpack.c.b16 %v3261, %v3259
        %v3278 = vpack.c.b16 %v3262, %v3260
        %3295 = vmatprep.subr.bf16.mxu0 %v3264
        %3296 = vmatpush1.bf16.msra.mxu0 %v3263
        %3297 = vmatprep.subr.bf16.mxu0 %v3266
        %3298 = vmatpush1.bf16.msra.mxu0 %v3265
        %3299 = vmatprep.subr.bf16.mxu0 %v3268
        %3300 = vmatpush1.bf16.msra.mxu0 %v3267
        %3301 = vmatprep.subr.bf16.mxu0 %v3270
        %3302 = vmatpush1.bf16.msra.mxu0 %v3269
        %3303 = vmatprep.subr.bf16.mxu0 %v3272
        %3304 = vmatpush1.bf16.msra.mxu0 %v3271
        %3305 = vmatprep.subr.bf16.mxu0 %v3274
        %3306 = vmatpush1.bf16.msra.mxu0 %v3273
        %3307 = vmatprep.subr.bf16.mxu0 %v3276
        %3308 = vmatpush1.bf16.msra.mxu0 %v3275
        %3309 = vmatprep.subr.bf16.mxu0 %v3278
        %3310 = vmatpush1.bf16.msra.mxu0 %v3277
        %3311 = vmatprep.subr.bf16.mxu0 0
        %3312 = vmatpush1.bf16.msra.mxu0 0
        %3313 = vmatprep.subr.bf16.mxu0 0
        %3314 = vmatpush1.bf16.msra.mxu0 0
        %3315 = vmatprep.subr.bf16.mxu0 0
        %3316 = vmatpush1.bf16.msra.mxu0 0
        %3317 = vmatprep.subr.bf16.mxu0 0
        %3318 = vmatpush1.bf16.msra.mxu0 0
        %3319 = vmatprep.subr.bf16.mxu0 0
        %3320 = vmatpush1.bf16.msra.mxu0 0
        %3321 = vmatprep.subr.bf16.mxu0 0
        %3322 = vmatpush1.bf16.msra.mxu0 0
        %3323 = vmatprep.subr.bf16.mxu0 0
        %3324 = vmatpush1.bf16.msra.mxu0 0
        %3325 = vmatprep.subr.bf16.mxu0 0
        %3326 = vmatpush1.bf16.msra.mxu0 0
        %3327 = vmatprep.mubr.bf16.mxu0 0
        %3328 = vmatmul.mubr.bf16.gmra.mrb[0].mxu0 %v3186
        %v3329 = vpop.f32.mrb[0].mxu0
        %v3330 = vadd.f32 %v3208, %v3329
        %v3331 = vpop.f32.mrb[0].mxu0
        %v3332 = vadd.f32 %v3212, %v3331
        %v3333 = vpop.f32.mrb[0].mxu0
        %v3334 = vpop.f32.mrb[0].mxu0
        %3335 = vdwg.mxu0
        %v3336 = vmax.f32 %v3330, 0.0
        %v3337 = vmax.f32 %v3332, 0.0
        %v3338 = vpack.c.bf16 %v3336, %v3336
        %v3339 = vpack.c.bf16 %v3337, %v3337
        %v3340 = vld [vmem:[%s605] sm:$0xf]
        %v3341 = vld [vmem:[%s605 + $0x4] sm:$0xf]
        %v3342 = vld [vmem:[%s605 + $0x8] sm:$0xf]
        %v3343 = vld [vmem:[%s605 + $0xc] sm:$0xf]
        %v3344 = vld [vmem:[%s605 + $0x10] sm:$0xf]
        %v3345 = vld [vmem:[%s605 + $0x14] sm:$0xf]
        %v3346 = vld [vmem:[%s605 + $0x18] sm:$0xf]
        %v3347 = vld [vmem:[%s605 + $0x1c] sm:$0xf]
        %v3348 = vld [vmem:[%s605 + $0x20] sm:$0xf]
        %v3349 = vld [vmem:[%s605 + $0x24] sm:$0xf]
        %v3350 = vld [vmem:[%s605 + $0x28] sm:$0xf]
        %v3351 = vld [vmem:[%s605 + $0x2c] sm:$0xf]
        %v3352 = vld [vmem:[%s605 + $0x30] sm:$0xf]
        %v3353 = vld [vmem:[%s605 + $0x34] sm:$0xf]
        %v3354 = vld [vmem:[%s605 + $0x38] sm:$0xf]
        %v3355 = vld [vmem:[%s605 + $0x3c] sm:$0xf]
        %v3356 = vld [vmem:[%s605 + $0x40] sm:$0xf]
        %v3357 = vld [vmem:[%s605 + $0x44] sm:$0xf]
        %v3358 = vld [vmem:[%s605 + $0x48] sm:$0xf]
        %v3359 = vld [vmem:[%s605 + $0x4c] sm:$0xf]
        %v3360 = vld [vmem:[%s605 + $0x50] sm:$0xf]
        %v3361 = vld [vmem:[%s605 + $0x54] sm:$0xf]
        %v3362 = vld [vmem:[%s605 + $0x58] sm:$0xf]
        %v3363 = vld [vmem:[%s605 + $0x5c] sm:$0xf]
        %v3364 = vld [vmem:[%s605 + $0x60] sm:$0xf]
        %v3365 = vld [vmem:[%s605 + $0x64] sm:$0xf]
        %v3366 = vld [vmem:[%s605 + $0x68] sm:$0xf]
        %v3367 = vld [vmem:[%s605 + $0x6c] sm:$0xf]
        %v3368 = vld [vmem:[%s605 + $0x70] sm:$0xf]
        %v3369 = vld [vmem:[%s605 + $0x74] sm:$0xf]
        %v3370 = vld [vmem:[%s605 + $0x78] sm:$0xf]
        %v3371 = vld [vmem:[%s605 + $0x7c] sm:$0xf]
        %v3372 = vld [vmem:[%s715] sm:$0x1]
        %v3374 = vlaneseq
        %v3375 = vshrl.u32 %v3374, 7
        %v3376 = vsub.s32 0, %v3375
        %v3377 = vrot.slane %v3372, %v3376
        %v3411 = vunpack.c.l.b16 %v3340
        %v3412 = vunpack.c.l.b16 %v3341
        %v3413 = vunpack.c.l.b16 %v3342
        %v3414 = vunpack.c.l.b16 %v3343
        %v3415 = vunpack.c.l.b16 %v3344
        %v3416 = vunpack.c.l.b16 %v3345
        %v3417 = vunpack.c.l.b16 %v3346
        %v3418 = vunpack.c.l.b16 %v3347
        %v3419 = vunpack.c.l.b16 %v3348
        %v3420 = vunpack.c.l.b16 %v3349
        %v3421 = vunpack.c.l.b16 %v3350
        %v3422 = vunpack.c.l.b16 %v3351
        %v3423 = vunpack.c.l.b16 %v3352
        %v3424 = vunpack.c.l.b16 %v3353
        %v3425 = vunpack.c.l.b16 %v3354
        %v3426 = vunpack.c.l.b16 %v3355
        %v3427 = vunpack.c.l.b16 %v3356
        %v3428 = vunpack.c.l.b16 %v3357
        %v3429 = vunpack.c.l.b16 %v3358
        %v3430 = vunpack.c.l.b16 %v3359
        %v3431 = vunpack.c.l.b16 %v3360
        %v3432 = vunpack.c.l.b16 %v3361
        %v3433 = vunpack.c.l.b16 %v3362
        %v3434 = vunpack.c.l.b16 %v3363
        %v3435 = vunpack.c.l.b16 %v3364
        %v3436 = vunpack.c.l.b16 %v3365
        %v3437 = vunpack.c.l.b16 %v3366
        %v3438 = vunpack.c.l.b16 %v3367
        %v3439 = vunpack.c.l.b16 %v3368
        %v3440 = vunpack.c.l.b16 %v3369
        %v3441 = vunpack.c.l.b16 %v3370
        %v3442 = vunpack.c.l.b16 %v3371
        %v3443 = vpack.c.b16 %v3412, %v3411
        %v3444 = vpack.c.b16 %v3414, %v3413
        %v3445 = vpack.c.b16 %v3416, %v3415
        %v3446 = vpack.c.b16 %v3418, %v3417
        %v3447 = vpack.c.b16 %v3420, %v3419
        %v3448 = vpack.c.b16 %v3422, %v3421
        %v3449 = vpack.c.b16 %v3424, %v3423
        %v3450 = vpack.c.b16 %v3426, %v3425
        %v3451 = vpack.c.b16 %v3428, %v3427
        %v3452 = vpack.c.b16 %v3430, %v3429
        %v3453 = vpack.c.b16 %v3432, %v3431
        %v3454 = vpack.c.b16 %v3434, %v3433
        %v3455 = vpack.c.b16 %v3436, %v3435
        %v3456 = vpack.c.b16 %v3438, %v3437
        %v3457 = vpack.c.b16 %v3440, %v3439
        %v3458 = vpack.c.b16 %v3442, %v3441
        %3475 = vmatprep.subr.bf16.mxu0 0
        %3476 = vmatpush1.bf16.msra.mxu0 %v3443
        %3477 = vmatprep.subr.bf16.mxu0 0
        %3478 = vmatpush1.bf16.msra.mxu0 %v3444
        %3479 = vmatprep.subr.bf16.mxu0 0
        %3480 = vmatpush1.bf16.msra.mxu0 %v3445
        %3481 = vmatprep.subr.bf16.mxu0 0
        %3482 = vmatpush1.bf16.msra.mxu0 %v3446
        %3483 = vmatprep.subr.bf16.mxu0 0
        %3484 = vmatpush1.bf16.msra.mxu0 %v3447
        %3485 = vmatprep.subr.bf16.mxu0 0
        %3486 = vmatpush1.bf16.msra.mxu0 %v3448
        %3487 = vmatprep.subr.bf16.mxu0 0
        %3488 = vmatpush1.bf16.msra.mxu0 %v3449
        %3489 = vmatprep.subr.bf16.mxu0 0
        %3490 = vmatpush1.bf16.msra.mxu0 %v3450
        %3491 = vmatprep.subr.bf16.mxu0 0
        %3492 = vmatpush1.bf16.msra.mxu0 %v3451
        %3493 = vmatprep.subr.bf16.mxu0 0
        %3494 = vmatpush1.bf16.msra.mxu0 %v3452
        %3495 = vmatprep.subr.bf16.mxu0 0
        %3496 = vmatpush1.bf16.msra.mxu0 %v3453
        %3497 = vmatprep.subr.bf16.mxu0 0
        %3498 = vmatpush1.bf16.msra.mxu0 %v3454
        %3499 = vmatprep.subr.bf16.mxu0 0
        %3500 = vmatpush1.bf16.msra.mxu0 %v3455
        %3501 = vmatprep.subr.bf16.mxu0 0
        %3502 = vmatpush1.bf16.msra.mxu0 %v3456
        %3503 = vmatprep.subr.bf16.mxu0 0
        %3504 = vmatpush1.bf16.msra.mxu0 %v3457
        %3505 = vmatprep.subr.bf16.mxu0 0
        %3506 = vmatpush1.bf16.msra.mxu0 %v3458
        %3507 = vmatprep.mubr.bf16.mxu0 %v3339
        %3508 = vmatmul.mubr.bf16.gmra.mrb[0].mxu0 %v3338
        %v3509 = vpop.f32.mrb[0].mxu0
        %v3510 = vadd.f32 %v3377, %v3509
        %v3511 = vpop.f32.mrb[0].mxu0
        %v3512 = vpop.f32.mrb[0].mxu0
        %v3513 = vpop.f32.mrb[0].mxu0
        %3514 = vdwg.mxu0
        %v3515 = vadd.f32 %v3185, %v3510
        %3516 = vadd.xlane.f32.xlu0 %v3515
        %v3517 = vpop.xlane.xlu0 %3516
        %v3518 = vmul.f32 %v3517, %v3158
        %v3519 = vmul.f32 %v3515, %v3515
        %3520 = vadd.xlane.f32.xlu0 %v3519
        %v3521 = vpop.xlane.xlu0 %3520
        %v3522 = vmul.f32 %v3521, %v3158
        %v3523 = vmul.f32 %v3518, %v3518
        %v3524 = vsub.f32 %v3522, %v3523
        %v3525 = vsub.f32 %v3515, %v3518
        %v3526 = vadd.f32 %v3524, 1e-05
        %v3527 = vrsqrt.pop %v3526
        %v3528 = vmul.f32 %v3525, %v3527
        %v3529 = vld [vmem:[%s718] sm:$0x1]
        %v3531 = vlaneseq
        %v3532 = vshrl.u32 %v3531, 7
        %v3533 = vsub.s32 0, %v3532
        %v3534 = vrot.slane %v3529, %v3533
        %v3536 = vmul.f32 %v3528, %v3534
        %v3537 = vld [vmem:[%s721] sm:$0x1]
        %v3539 = vlaneseq
        %v3540 = vshrl.u32 %v3539, 7
        %v3541 = vsub.s32 0, %v3540
        %v3542 = vrot.slane %v3537, %v3541
        %v3544 = vadd.f32 %v3536, %v3542
        %3545 = vst [vmem:[#allocation2] sm:$0xff] %v3544
        %p3546 = scmp.eq.s32.totalorder %s41, 1
        // Predicated region
        $region93: #{transformer_encoder_block.1} parent=71 // pred_check
          %p3547 = pneg %p3546
        $region94: #{transformer_encoder_block.1} parent=71 // pred_check_branch
          %3549 = sbr.rel (%p3547) target = $region96
        $region95: #{transformer_encoder_block.1} parent=71 // pred_region
          %3550 = vst [vmem:[%s691] sm:$0x1] %v3544
        $region96: #{transformer_encoder_block.1} parent=71 // pred_fallthru
          _
        %s3551 = sand.u32 %s394, 1
        %s3552 = scalar_lea.sflag [#allocation5], %s3551
        %s3553 = sand.u32 %s394, 1
        %s3554 = scalar_lea.vmem [#allocation11], %s3553
        // Predicated region
        $region97: #{transformer_encoder_block.1} parent=71 // pred_check
          %p3555 = pneg %p404
        $region98: #{transformer_encoder_block.1} parent=71 // pred_check_branch
          %3557 = sbr.rel (%p3555) target = $region100
        $region99: #{transformer_encoder_block.1} parent=71 // pred_region
          %s3559 = ssub.s32 16, 16
          %3560 = vsyncadd %s3552, %s3559
          %s3561 = smul.addr %s40, 16
          %s3562 = scalar_lea.hbm %s13, %s3561
          %s3564 = sshll.u32 %s3554, 4
          %s3565 = int_to_ptr.vmem [resolvable:$true] %s3564
          %3567 = dma.vmem_to_hbm [thread:$0]  %s3565, 16, %s3562, %s3552
        $region100: #{transformer_encoder_block.1} parent=71 // pred_fallthru
          _
      $region72: #{transformer_encoder_block.1} parent=5 // pred_fallthru
        _
      %p3568 = scmp.le.s32.totalorder 2, %s31
      // Predicated region
      $region101: #{transformer_encoder_block.1} parent=5 // pred_check
        %p3569 = pneg %p3568
      $region102: #{transformer_encoder_block.1} parent=5 // pred_check_branch
        %3571 = sbr.rel (%p3569) target = $region104
      $region103: #{transformer_encoder_block.1} parent=5 // pred_region
        %s3572 = ssub.s32 %s31, 2
        // Predicated region
        $region105: #{transformer_encoder_block.1} parent=103 // pred_check
          %p3573 = pneg %p410
        $region106: #{transformer_encoder_block.1} parent=103 // pred_check_branch
          %3575 = sbr.rel (%p3573) target = $region108
        $region107: #{transformer_encoder_block.1} parent=103 // pred_region
          %s3576 = sand.u32 %s395, 1
          %s3577 = scalar_lea.sflag [#allocation5], %s3576
          %s3578 = sand.u32 %s395, 1
          %s3579 = scalar_lea.vmem [#allocation11], %s3578
          %3580 = dma.done %s3577, 16
        $region108: #{transformer_encoder_block.1} parent=103 // pred_fallthru
          _
      $region104: #{transformer_encoder_block.1} parent=5 // pred_fallthru
        _
    $region6: #{transformer_encoder_block.1} parent=1 // loop_footer
      %s35 = sadd.s32 1, %s31
    $region7: #{transformer_encoder_block.1} parent=1 // loop_footer_branch
      %30 = sbr.rel target = $region3
    $region8: #{transformer_encoder_block.1} parent=1 // loop_exit
      _
    %3581 = vsyncpa [#allocation4], 1
    %s3582 = scalar_lea.sflag [#allocation4], 1
    %3583 = vsyncpa %s3582, 1
    %3584 = vsyncpa [#allocation7], 1
    %s3585 = scalar_lea.sflag [#allocation7], 1
    %3586 = vsyncpa %s3585, 1
    %3587 = vsyncpa [#allocation10], 1
    %s3588 = scalar_lea.sflag [#allocation10], 1
    %3589 = vsyncpa %s3588, 1
    %3590 = vsyncpa [#allocation5], 1
    %s3591 = scalar_lea.sflag [#allocation5], 1
    %3592 = vsyncpa %s3591, 1

</llo_original>
